<compile_context>
chip_gen: v5e
topology: v5e:2x2
jax: 0.10.0
libtpu: 0.0.40
codegen_flags: <defaults>
</compile_context>

<pallas_src>
import jax
import jax.numpy as jnp
from jax.experimental import pallas as pl
from jax.experimental.pallas import tpu as pltpu

TILE_M = 512                 # max row tile (multiple of 8)
NUM_CLASSES = 100
LOGIT_PAD = 128              # lane-dense logits, sliced back to 100 in the wrapper
CONV1_K = 5 * 5 * 3          # 75
CONV1_K_PAD = 128            # lane-aligned K for conv1 patches / weight
NEG_BIG = -1e30              # masks padded logit lanes via the fc2 bias


def _round_up(x, m):
    return (x + m - 1) // m * m


def _choose_tile(m):
    return min(TILE_M, _round_up(m, 8))


def _pad_rows(x, m_pad):
    m = x.shape[0]
    if m_pad == m:
        return x
    return jnp.pad(x, ((0, m_pad - m), (0, 0)))


# ----------------------------- Pallas kernels -----------------------------

def _conv_pool_relu_kernel(p0_ref, p1_ref, p2_ref, p3_ref, w_ref, b_ref, o_ref):
    """Fused im2col-conv matmul + bias + 2x2 max-pool + ReLU.

    p0..p3 are the four 2x2-pool phases of the im2col patch matrix, so the
    max-pool is simply the elementwise max of the four per-phase MXU results.
    """
    w = w_ref[...]
    y0 = jnp.dot(p0_ref[...], w, preferred_element_type=jnp.float32)
    y1 = jnp.dot(p1_ref[...], w, preferred_element_type=jnp.float32)
    y2 = jnp.dot(p2_ref[...], w, preferred_element_type=jnp.float32)
    y3 = jnp.dot(p3_ref[...], w, preferred_element_type=jnp.float32)
    m = jnp.maximum(jnp.maximum(y0, y1), jnp.maximum(y2, y3))
    m = m + b_ref[...]                      # bias is constant over the pool window
    o_ref[...] = jnp.maximum(m, 0.0).astype(o_ref.dtype)


def conv_pool_relu(phases, w, b, *, out_dtype=jnp.bfloat16):
    """phases: 4x (M, K) bf16; w: (K, OC) bf16; b: (OC,) f32 -> (M, OC)."""
    M, K = phases[0].shape
    OC = w.shape[1]
    tile = _choose_tile(M)
    m_pad = _round_up(M, tile)
    phases = [_pad_rows(p, m_pad) for p in phases]
    b2 = b.reshape(1, OC).astype(jnp.float32)

    patch_spec = pl.BlockSpec((tile, K), lambda i: (i, 0))
    out = pl.pallas_call(
        _conv_pool_relu_kernel,
        out_shape=jax.ShapeDtypeStruct((m_pad, OC), out_dtype),
        grid=(m_pad // tile,),
        in_specs=[patch_spec, patch_spec, patch_spec, patch_spec,
                  pl.BlockSpec((K, OC), lambda i: (0, 0)),     # weight: resident
                  pl.BlockSpec((1, OC), lambda i: (0, 0))],    # bias: resident
        out_specs=pl.BlockSpec((tile, OC), lambda i: (i, 0)),
        compiler_params=pltpu.CompilerParams(
            dimension_semantics=("parallel",)),
    )(*phases, w, b2)
    return out[:M]


def _fc_tail_kernel(x_ref, w1_ref, b1_ref, w2_ref, b2_ref, o_ref):
    """Fused fc1 + ReLU + fc2 + log_softmax.

    Padded logit lanes are masked by the (-1e30) entries baked into b2, so no
    iota/where is needed in the kernel.
    """
    h = jnp.dot(x_ref[...], w1_ref[...], preferred_element_type=jnp.float32)
    h = jnp.maximum(h + b1_ref[...], 0.0)
    # TODO(synk): F.dropout(training=self.training) implemented as identity (eval mode).
    logits = jnp.dot(h.astype(jnp.bfloat16), w2_ref[...],
                     preferred_element_type=jnp.float32)
    logits = logits + b2_ref[...]            # pad lanes land at ~-1e30 via the bias
    m = jnp.max(logits, axis=-1, keepdims=True)
    s = logits - m
    lse = jnp.log(jnp.sum(jnp.exp(s), axis=-1, keepdims=True))
    o_ref[...] = (s - lse).astype(o_ref.dtype)


def fc_tail(x, w1, b1, w2, b2):
    """x: (M, 1600) bf16 -> (M, NUM_CLASSES) f32 log-probs."""
    M, K = x.shape
    H = w1.shape[1]            # 128
    C = w2.shape[1]            # 128 (padded logits)
    tile = _choose_tile(M)
    m_pad = _round_up(M, tile)
    xp = _pad_rows(x, m_pad)

    out = pl.pallas_call(
        _fc_tail_kernel,
        out_shape=jax.ShapeDtypeStruct((m_pad, C), jnp.float32),
        grid=(m_pad // tile,),
        in_specs=[pl.BlockSpec((tile, K), lambda i: (i, 0)),
                  pl.BlockSpec((K, H), lambda i: (0, 0)),
                  pl.BlockSpec((1, H), lambda i: (0, 0)),
                  pl.BlockSpec((H, C), lambda i: (0, 0)),
                  pl.BlockSpec((1, C), lambda i: (0, 0))],
        out_specs=pl.BlockSpec((tile, C), lambda i: (i, 0)),
        compiler_params=pltpu.CompilerParams(
            dimension_semantics=("parallel",)),
    )(xp, w1, b1.reshape(1, H).astype(jnp.float32), w2, b2.reshape(1, C))
    return out[:M, :NUM_CLASSES]


# ------------------------------- glue (JAX) -------------------------------

def im2col_pool_phases(x_nhwc, k):
    """im2col for a k x k valid conv, pre-split into the four 2x2 pool phases.

    Returns ([p00, p01, p10, p11], (N, PH, PW)); each phase is
    (N*PH*PW, k*k*C) with patch-feature order (kh, kw, c), row order (n, ph, pw).
    Phase (py, px) holds the patches of conv-output position (2*ph+py, 2*pw+px).
    """
    N, H, W, C = x_nhwc.shape
    OH, OW = H - k + 1, W - k + 1
    PH, PW = OH // 2, OW // 2
    phases = []
    for py in range(2):
        for px in range(2):
            cols = []
            for dy in range(k):
                for dx in range(k):
                    cols.append(x_nhwc[:, py + dy: py + dy + 2 * PH: 2,
                                       px + dx: px + dx + 2 * PW: 2, :])
            p = jnp.concatenate(cols, axis=-1)            # (N, PH, PW, k*k*C)
            phases.append(p.reshape(N * PH * PW, k * k * C))
    return phases, (N, PH, PW)


def init_params(key):
    ks = jax.random.split(key, 8)

    def rnd(k, shape, scale=0.05):
        return (scale * jax.random.normal(k, shape)).astype(jnp.float32)

    return {
        "conv1_w": rnd(ks[0], (32, 3, 5, 5)),     # PyTorch (OC, IC, KH, KW)
        "conv1_b": rnd(ks[1], (32,)),
        "conv2_w": rnd(ks[2], (64, 32, 5, 5)),
        "conv2_b": rnd(ks[3], (64,)),
        "fc1_w": rnd(ks[4], (128, 64 * 5 * 5)),   # PyTorch Linear (out, in)
        "fc1_b": rnd(ks[5], (128,)),
        "fc2_w": rnd(ks[6], (100, 128)),
        "fc2_b": rnd(ks[7], (100,)),
    }


def prepare_params(params):
    """One-time weight reorder / pad / cast, hoisted out of the forward pass."""
    # conv weights -> (kh*kw*cin, oc) im2col layout, bf16 MXU operands.
    w1 = jnp.transpose(params["conv1_w"], (2, 3, 1, 0)).reshape(CONV1_K, 32)
    w1 = jnp.pad(w1, ((0, CONV1_K_PAD - CONV1_K), (0, 0))).astype(jnp.bfloat16)
    w2 = jnp.transpose(params["conv2_w"], (2, 3, 1, 0)).reshape(5 * 5 * 32, 64)
    w2 = w2.astype(jnp.bfloat16)
    # fc1: fold PyTorch's NCHW flatten into a column permutation of the weight,
    # so activations stay in (h, w, c) order and need no transpose before fc1.
    fc1 = params["fc1_w"].reshape(128, 64, 5, 5)                       # (out, c, h, w)
    fc1 = jnp.transpose(fc1, (2, 3, 1, 0)).reshape(64 * 5 * 5, 128)    # (h*w*c, out)
    fc1 = fc1.astype(jnp.bfloat16)
    # fc2: (out=100, in=128) -> (128, 100) -> pad logits to 128 lanes; padded
    # bias lanes carry -1e30 so they vanish in the in-kernel log_softmax.
    fc2 = jnp.transpose(params["fc2_w"], (1, 0))
    fc2 = jnp.pad(fc2, ((0, 0), (0, LOGIT_PAD - NUM_CLASSES))).astype(jnp.bfloat16)
    fc2_b = jnp.pad(params["fc2_b"].astype(jnp.float32),
                    (0, LOGIT_PAD - NUM_CLASSES), constant_values=NEG_BIG)
    return {
        "w1": w1, "b1": params["conv1_b"].astype(jnp.float32),
        "w2": w2, "b2": params["conv2_b"].astype(jnp.float32),
        "fc1_w": fc1, "fc1_b": params["fc1_b"].astype(jnp.float32),
        "fc2_w": fc2, "fc2_b": fc2_b,
    }


def net_forward(prep, x_nchw):
    N = x_nchw.shape[0]
    x = jnp.transpose(x_nchw, (0, 2, 3, 1)).astype(jnp.bfloat16)    # NHWC, bf16

    # conv1 -> maxpool2 -> relu (single fused kernel)
    phases, (n, ph, pw) = im2col_pool_phases(x, 5)                  # 4 x (N*196, 75)
    phases = [jnp.pad(p, ((0, 0), (0, CONV1_K_PAD - CONV1_K))) for p in phases]
    pooled1 = conv_pool_relu(phases, prep["w1"], prep["b1"])        # (N*196, 32) bf16
    pooled1 = pooled1.reshape(n, ph, pw, 32)                        # (N, 14, 14, 32)

    # conv2 -> dropout2d (identity, eval) -> maxpool2 -> relu (single fused kernel)
    # TODO(synk): Dropout2d is stochastic during training; implemented as identity (eval mode).
    phases, (n, ph, pw) = im2col_pool_phases(pooled1, 5)            # 4 x (N*25, 800)
    pooled2 = conv_pool_relu(phases, prep["w2"], prep["b2"])        # (N*25, 64) bf16

    # PyTorch's NCHW flatten is folded into fc1_w, so the (n, h, w, c)-ordered
    # rows flatten directly (free metadata reshape).
    feats = pooled2.reshape(N, 5 * 5 * 64)                          # (N, 1600)

    # fc1 -> relu -> (dropout: identity) -> fc2 -> log_softmax, one fused kernel
    return fc_tail(feats, prep["fc1_w"], prep["fc1_b"],
                   prep["fc2_w"], prep["fc2_b"])                    # (N, 100)


if __name__ == "__main__":
    key = jax.random.PRNGKey(0)
    pkey, xkey = jax.random.split(key)
    params = init_params(pkey)
    prep = prepare_params(params)
    x = jax.random.normal(xkey, (2, 3, 32, 32), dtype=jnp.float32)  # NCHW input

    fwd = jax.jit(net_forward)
    out = fwd(prep, x)
    out = jax.block_until_ready(out)

    assert out.shape == (2, NUM_CLASSES)
    # log_softmax rows must exponentiate-sum to ~1
    assert jnp.allclose(jnp.sum(jnp.exp(out), axis=-1), 1.0, atol=1e-4)
    print("KERNEL_OK")
</pallas_src>

<mosaic_0001>
module attributes {stable_mosaic.version = 11 : i64} {
  func.func @_conv_pool_relu_kernel(%arg0: i32, %arg1: memref<392x128xbf16, #tpu.memory_space<vmem>>, %arg2: memref<392x128xbf16, #tpu.memory_space<vmem>>, %arg3: memref<392x128xbf16, #tpu.memory_space<vmem>>, %arg4: memref<392x128xbf16, #tpu.memory_space<vmem>>, %arg5: memref<128x32xbf16, #tpu.memory_space<vmem>>, %arg6: memref<1x32xf32, #tpu.memory_space<vmem>>, %arg7: memref<392x32xbf16, #tpu.memory_space<vmem>>) attributes {dimension_semantics = [#tpu.dimension_semantics<parallel>], iteration_bounds = array<i64: 1>, scalar_prefetch = 0 : i64, scratch_operands = 0 : i64, tpu.core_type = #tpu.core_type<tc>, window_params = [{transform_indices = @transform_0, window_bounds = array<i64: 392, 128>}, {transform_indices = @transform_1, window_bounds = array<i64: 392, 128>}, {transform_indices = @transform_2, window_bounds = array<i64: 392, 128>}, {transform_indices = @transform_3, window_bounds = array<i64: 392, 128>}, {pipeline_mode = #tpu.pipeline_mode<synchronous>, transform_indices = @transform_4, window_bounds = array<i64: 128, 32>}, {pipeline_mode = #tpu.pipeline_mode<synchronous>, transform_indices = @transform_5, window_bounds = array<i64: 1, 32>}, {transform_indices = @transform_6, window_bounds = array<i64: 392, 32>}]} {
    %c0 = arith.constant 0 : index
    %c0_0 = arith.constant 0 : index
    %0 = vector.load %arg5[%c0, %c0_0] : memref<128x32xbf16, #tpu.memory_space<vmem>>, vector<128x32xbf16>
    %c0_1 = arith.constant 0 : index
    %c0_2 = arith.constant 0 : index
    %1 = vector.load %arg1[%c0_1, %c0_2] : memref<392x128xbf16, #tpu.memory_space<vmem>>, vector<392x128xbf16>
    %cst = arith.constant dense<0.000000e+00> : vector<392x32xf32>
    %2 = tpu.matmul %1, %0, %cst {dimension_numbers = #tpu.dot_dimension_numbers<[1], [0], [0], [1], [0, 0, 1, 1], [], []>} : vector<392x128xbf16>, vector<128x32xbf16>, vector<392x32xf32> -> vector<392x32xf32>
    %c0_3 = arith.constant 0 : index
    %c0_4 = arith.constant 0 : index
    %3 = vector.load %arg2[%c0_3, %c0_4] : memref<392x128xbf16, #tpu.memory_space<vmem>>, vector<392x128xbf16>
    %cst_5 = arith.constant dense<0.000000e+00> : vector<392x32xf32>
    %4 = tpu.matmul %3, %0, %cst_5 {dimension_numbers = #tpu.dot_dimension_numbers<[1], [0], [0], [1], [0, 0, 1, 1], [], []>} : vector<392x128xbf16>, vector<128x32xbf16>, vector<392x32xf32> -> vector<392x32xf32>
    %c0_6 = arith.constant 0 : index
    %c0_7 = arith.constant 0 : index
    %5 = vector.load %arg3[%c0_6, %c0_7] : memref<392x128xbf16, #tpu.memory_space<vmem>>, vector<392x128xbf16>
    %cst_8 = arith.constant dense<0.000000e+00> : vector<392x32xf32>
    %6 = tpu.matmul %5, %0, %cst_8 {dimension_numbers = #tpu.dot_dimension_numbers<[1], [0], [0], [1], [0, 0, 1, 1], [], []>} : vector<392x128xbf16>, vector<128x32xbf16>, vector<392x32xf32> -> vector<392x32xf32>
    %c0_9 = arith.constant 0 : index
    %c0_10 = arith.constant 0 : index
    %7 = vector.load %arg4[%c0_9, %c0_10] : memref<392x128xbf16, #tpu.memory_space<vmem>>, vector<392x128xbf16>
    %cst_11 = arith.constant dense<0.000000e+00> : vector<392x32xf32>
    %8 = tpu.matmul %7, %0, %cst_11 {dimension_numbers = #tpu.dot_dimension_numbers<[1], [0], [0], [1], [0, 0, 1, 1], [], []>} : vector<392x128xbf16>, vector<128x32xbf16>, vector<392x32xf32> -> vector<392x32xf32>
    %9 = arith.maximumf %2, %4 : vector<392x32xf32>
    %10 = arith.maximumf %6, %8 : vector<392x32xf32>
    %11 = arith.maximumf %9, %10 : vector<392x32xf32>
    %c0_12 = arith.constant 0 : index
    %c0_13 = arith.constant 0 : index
    %12 = vector.load %arg6[%c0_12, %c0_13] : memref<1x32xf32, #tpu.memory_space<vmem>>, vector<1x32xf32>
    %13 = vector.broadcast %12 : vector<1x32xf32> to vector<392x32xf32>
    %14 = arith.addf %11, %13 : vector<392x32xf32>
    %cst_14 = arith.constant 0.000000e+00 : f32
    %15 = vector.broadcast %cst_14 : f32 to vector<392x32xf32>
    %16 = arith.maximumf %14, %15 : vector<392x32xf32>
    %17 = arith.truncf %16 : vector<392x32xf32> to vector<392x32xbf16>
    %c0_15 = arith.constant 0 : index
    %c0_16 = arith.constant 0 : index
    %18 = vector.load %arg7[%c0_15, %c0_16] : memref<392x32xbf16, #tpu.memory_space<vmem>>, vector<392x32xbf16>
    tpu.vector_store %arg7[%c0_15, %c0_16], %17 {strides = array<i32>} : memref<392x32xbf16, #tpu.memory_space<vmem>>, vector<392x32xbf16>,
    return
  }
  func.func @transform_0(%arg0: i32) -> (i32, i32) {
    %c0_i32 = arith.constant 0 : i32
    %c0_i32_0 = arith.constant 0 : i32
    return %arg0, %c0_i32 : i32, i32
  }
  func.func @transform_1(%arg0: i32) -> (i32, i32) {
    %c0_i32 = arith.constant 0 : i32
    %c0_i32_0 = arith.constant 0 : i32
    return %arg0, %c0_i32 : i32, i32
  }
  func.func @transform_2(%arg0: i32) -> (i32, i32) {
    %c0_i32 = arith.constant 0 : i32
    %c0_i32_0 = arith.constant 0 : i32
    return %arg0, %c0_i32 : i32, i32
  }
  func.func @transform_3(%arg0: i32) -> (i32, i32) {
    %c0_i32 = arith.constant 0 : i32
    %c0_i32_0 = arith.constant 0 : i32
    return %arg0, %c0_i32 : i32, i32
  }
  func.func @transform_4(%arg0: i32) -> (i32, i32) {
    %c0_i32 = arith.constant 0 : i32
    %c0_i32_0 = arith.constant 0 : i32
    %c0_i32_1 = arith.constant 0 : i32
    return %c0_i32, %c0_i32_0 : i32, i32
  }
  func.func @transform_5(%arg0: i32) -> (i32, i32) {
    %c0_i32 = arith.constant 0 : i32
    %c0_i32_0 = arith.constant 0 : i32
    %c0_i32_1 = arith.constant 0 : i32
    return %c0_i32, %c0_i32_0 : i32, i32
  }
  func.func @transform_6(%arg0: i32) -> (i32, i32) {
    %c0_i32 = arith.constant 0 : i32
    %c0_i32_0 = arith.constant 0 : i32
    return %arg0, %c0_i32 : i32, i32
  }
}

module attributes {stable_mosaic.version = 11 : i64} {
  func.func @_conv_pool_relu_kernel(%arg0: i32, %arg1: memref<56x800xbf16, #tpu.memory_space<vmem>>, %arg2: memref<56x800xbf16, #tpu.memory_space<vmem>>, %arg3: memref<56x800xbf16, #tpu.memory_space<vmem>>, %arg4: memref<56x800xbf16, #tpu.memory_space<vmem>>, %arg5: memref<800x64xbf16, #tpu.memory_space<vmem>>, %arg6: memref<1x64xf32, #tpu.memory_space<vmem>>, %arg7: memref<56x64xbf16, #tpu.memory_space<vmem>>) attributes {dimension_semantics = [#tpu.dimension_semantics<parallel>], iteration_bounds = array<i64: 1>, scalar_prefetch = 0 : i64, scratch_operands = 0 : i64, tpu.core_type = #tpu.core_type<tc>, window_params = [{transform_indices = @transform_0, window_bounds = array<i64: 56, 800>}, {transform_indices = @transform_1, window_bounds = array<i64: 56, 800>}, {transform_indices = @transform_2, window_bounds = array<i64: 56, 800>}, {transform_indices = @transform_3, window_bounds = array<i64: 56, 800>}, {pipeline_mode = #tpu.pipeline_mode<synchronous>, transform_indices = @transform_4, window_bounds = array<i64: 800, 64>}, {pipeline_mode = #tpu.pipeline_mode<synchronous>, transform_indices = @transform_5, window_bounds = array<i64: 1, 64>}, {transform_indices = @transform_6, window_bounds = array<i64: 56, 64>}]} {
    %c0 = arith.constant 0 : index
    %c0_0 = arith.constant 0 : index
    %0 = vector.load %arg5[%c0, %c0_0] : memref<800x64xbf16, #tpu.memory_space<vmem>>, vector<800x64xbf16>
    %c0_1 = arith.constant 0 : index
    %c0_2 = arith.constant 0 : index
    %1 = vector.load %arg1[%c0_1, %c0_2] : memref<56x800xbf16, #tpu.memory_space<vmem>>, vector<56x800xbf16>
    %cst = arith.constant dense<0.000000e+00> : vector<56x64xf32>
    %2 = tpu.matmul %1, %0, %cst {dimension_numbers = #tpu.dot_dimension_numbers<[1], [0], [0], [1], [0, 0, 1, 1], [], []>} : vector<56x800xbf16>, vector<800x64xbf16>, vector<56x64xf32> -> vector<56x64xf32>
    %c0_3 = arith.constant 0 : index
    %c0_4 = arith.constant 0 : index
    %3 = vector.load %arg2[%c0_3, %c0_4] : memref<56x800xbf16, #tpu.memory_space<vmem>>, vector<56x800xbf16>
    %cst_5 = arith.constant dense<0.000000e+00> : vector<56x64xf32>
    %4 = tpu.matmul %3, %0, %cst_5 {dimension_numbers = #tpu.dot_dimension_numbers<[1], [0], [0], [1], [0, 0, 1, 1], [], []>} : vector<56x800xbf16>, vector<800x64xbf16>, vector<56x64xf32> -> vector<56x64xf32>
    %c0_6 = arith.constant 0 : index
    %c0_7 = arith.constant 0 : index
    %5 = vector.load %arg3[%c0_6, %c0_7] : memref<56x800xbf16, #tpu.memory_space<vmem>>, vector<56x800xbf16>
    %cst_8 = arith.constant dense<0.000000e+00> : vector<56x64xf32>
    %6 = tpu.matmul %5, %0, %cst_8 {dimension_numbers = #tpu.dot_dimension_numbers<[1], [0], [0], [1], [0, 0, 1, 1], [], []>} : vector<56x800xbf16>, vector<800x64xbf16>, vector<56x64xf32> -> vector<56x64xf32>
    %c0_9 = arith.constant 0 : index
    %c0_10 = arith.constant 0 : index
    %7 = vector.load %arg4[%c0_9, %c0_10] : memref<56x800xbf16, #tpu.memory_space<vmem>>, vector<56x800xbf16>
    %cst_11 = arith.constant dense<0.000000e+00> : vector<56x64xf32>
    %8 = tpu.matmul %7, %0, %cst_11 {dimension_numbers = #tpu.dot_dimension_numbers<[1], [0], [0], [1], [0, 0, 1, 1], [], []>} : vector<56x800xbf16>, vector<800x64xbf16>, vector<56x64xf32> -> vector<56x64xf32>
    %9 = arith.maximumf %2, %4 : vector<56x64xf32>
    %10 = arith.maximumf %6, %8 : vector<56x64xf32>
    %11 = arith.maximumf %9, %10 : vector<56x64xf32>
    %c0_12 = arith.constant 0 : index
    %c0_13 = arith.constant 0 : index
    %12 = vector.load %arg6[%c0_12, %c0_13] : memref<1x64xf32, #tpu.memory_space<vmem>>, vector<1x64xf32>
    %13 = vector.broadcast %12 : vector<1x64xf32> to vector<56x64xf32>
    %14 = arith.addf %11, %13 : vector<56x64xf32>
    %cst_14 = arith.constant 0.000000e+00 : f32
    %15 = vector.broadcast %cst_14 : f32 to vector<56x64xf32>
    %16 = arith.maximumf %14, %15 : vector<56x64xf32>
    %17 = arith.truncf %16 : vector<56x64xf32> to vector<56x64xbf16>
    %c0_15 = arith.constant 0 : index
    %c0_16 = arith.constant 0 : index
    %18 = vector.load %arg7[%c0_15, %c0_16] : memref<56x64xbf16, #tpu.memory_space<vmem>>, vector<56x64xbf16>
    tpu.vector_store %arg7[%c0_15, %c0_16], %17 {strides = array<i32>} : memref<56x64xbf16, #tpu.memory_space<vmem>>, vector<56x64xbf16>,
    return
  }
  func.func @transform_0(%arg0: i32) -> (i32, i32) {
    %c0_i32 = arith.constant 0 : i32
    %c0_i32_0 = arith.constant 0 : i32
    return %arg0, %c0_i32 : i32, i32
  }
  func.func @transform_1(%arg0: i32) -> (i32, i32) {
    %c0_i32 = arith.constant 0 : i32
    %c0_i32_0 = arith.constant 0 : i32
    return %arg0, %c0_i32 : i32, i32
  }
  func.func @transform_2(%arg0: i32) -> (i32, i32) {
    %c0_i32 = arith.constant 0 : i32
    %c0_i32_0 = arith.constant 0 : i32
    return %arg0, %c0_i32 : i32, i32
  }
  func.func @transform_3(%arg0: i32) -> (i32, i32) {
    %c0_i32 = arith.constant 0 : i32
    %c0_i32_0 = arith.constant 0 : i32
    return %arg0, %c0_i32 : i32, i32
  }
  func.func @transform_4(%arg0: i32) -> (i32, i32) {
    %c0_i32 = arith.constant 0 : i32
    %c0_i32_0 = arith.constant 0 : i32
    %c0_i32_1 = arith.constant 0 : i32
    return %c0_i32, %c0_i32_0 : i32, i32
  }
  func.func @transform_5(%arg0: i32) -> (i32, i32) {
    %c0_i32 = arith.constant 0 : i32
    %c0_i32_0 = arith.constant 0 : i32
    %c0_i32_1 = arith.constant 0 : i32
    return %c0_i32, %c0_i32_0 : i32, i32
  }
  func.func @transform_6(%arg0: i32) -> (i32, i32) {
    %c0_i32 = arith.constant 0 : i32
    %c0_i32_0 = arith.constant 0 : i32
    return %arg0, %c0_i32 : i32, i32
  }
}

module attributes {stable_mosaic.version = 11 : i64} {
  func.func @_fc_tail_kernel(%arg0: i32, %arg1: memref<8x1600xbf16, #tpu.memory_space<vmem>>, %arg2: memref<1600x128xbf16, #tpu.memory_space<vmem>>, %arg3: memref<1x128xf32, #tpu.memory_space<vmem>>, %arg4: memref<128x128xbf16, #tpu.memory_space<vmem>>, %arg5: memref<1x128xf32, #tpu.memory_space<vmem>>, %arg6: memref<8x128xf32, #tpu.memory_space<vmem>>) attributes {dimension_semantics = [#tpu.dimension_semantics<parallel>], iteration_bounds = array<i64: 1>, scalar_prefetch = 0 : i64, scratch_operands = 0 : i64, tpu.core_type = #tpu.core_type<tc>, window_params = [{transform_indices = @transform_0, window_bounds = array<i64: 8, 1600>}, {pipeline_mode = #tpu.pipeline_mode<synchronous>, transform_indices = @transform_1, window_bounds = array<i64: 1600, 128>}, {pipeline_mode = #tpu.pipeline_mode<synchronous>, transform_indices = @transform_2, window_bounds = array<i64: 1, 128>}, {pipeline_mode = #tpu.pipeline_mode<synchronous>, transform_indices = @transform_3, window_bounds = array<i64: 128, 128>}, {pipeline_mode = #tpu.pipeline_mode<synchronous>, transform_indices = @transform_4, window_bounds = array<i64: 1, 128>}, {transform_indices = @transform_5, window_bounds = array<i64: 8, 128>}]} {
    %c0 = arith.constant 0 : index
    %c0_0 = arith.constant 0 : index
    %0 = vector.load %arg1[%c0, %c0_0] : memref<8x1600xbf16, #tpu.memory_space<vmem>>, vector<8x1600xbf16>
    %c0_1 = arith.constant 0 : index
    %c0_2 = arith.constant 0 : index
    %1 = vector.load %arg2[%c0_1, %c0_2] : memref<1600x128xbf16, #tpu.memory_space<vmem>>, vector<1600x128xbf16>
    %cst = arith.constant dense<0.000000e+00> : vector<8x128xf32>
    %2 = tpu.matmul %0, %1, %cst {dimension_numbers = #tpu.dot_dimension_numbers<[1], [0], [0], [1], [0, 0, 1, 1], [], []>} : vector<8x1600xbf16>, vector<1600x128xbf16>, vector<8x128xf32> -> vector<8x128xf32>
    %c0_3 = arith.constant 0 : index
    %c0_4 = arith.constant 0 : index
    %3 = vector.load %arg3[%c0_3, %c0_4] : memref<1x128xf32, #tpu.memory_space<vmem>>, vector<1x128xf32>
    %4 = vector.broadcast %3 : vector<1x128xf32> to vector<8x128xf32>
    %5 = arith.addf %2, %4 : vector<8x128xf32>
    %cst_5 = arith.constant 0.000000e+00 : f32
    %6 = vector.broadcast %cst_5 : f32 to vector<8x128xf32>
    %7 = arith.maximumf %5, %6 : vector<8x128xf32>
    %8 = arith.truncf %7 : vector<8x128xf32> to vector<8x128xbf16>
    %c0_6 = arith.constant 0 : index
    %c0_7 = arith.constant 0 : index
    %9 = vector.load %arg4[%c0_6, %c0_7] : memref<128x128xbf16, #tpu.memory_space<vmem>>, vector<128x128xbf16>
    %cst_8 = arith.constant dense<0.000000e+00> : vector<8x128xf32>
    %10 = tpu.matmul %8, %9, %cst_8 {dimension_numbers = #tpu.dot_dimension_numbers<[1], [0], [0], [1], [0, 0, 1, 1], [], []>} : vector<8x128xbf16>, vector<128x128xbf16>, vector<8x128xf32> -> vector<8x128xf32>
    %c0_9 = arith.constant 0 : index
    %c0_10 = arith.constant 0 : index
    %11 = vector.load %arg5[%c0_9, %c0_10] : memref<1x128xf32, #tpu.memory_space<vmem>>, vector<1x128xf32>
    %12 = vector.broadcast %11 : vector<1x128xf32> to vector<8x128xf32>
    %13 = arith.addf %10, %12 : vector<8x128xf32>
    %cst_11 = arith.constant dense<0xFF800000> : vector<8xf32>
    %14 = vector.multi_reduction <maximumf>, %13, %cst_11 [1] : vector<8x128xf32> to vector<8xf32>
    %15 = vector.shape_cast %14 : vector<8xf32> to vector<8x1xf32>
    %16 = vector.broadcast %15 : vector<8x1xf32> to vector<8x128xf32>
    %17 = arith.subf %13, %16 : vector<8x128xf32>
    %18 = math.exp %17 : vector<8x128xf32>
    %cst_12 = arith.constant dense<0.000000e+00> : vector<8xf32>
    %19 = vector.multi_reduction <add>, %18, %cst_12 [1] : vector<8x128xf32> to vector<8xf32>
    %20 = vector.shape_cast %19 : vector<8xf32> to vector<8x1xf32>
    %21 = math.log %20 : vector<8x1xf32>
    %22 = vector.broadcast %21 : vector<8x1xf32> to vector<8x128xf32>
    %23 = arith.subf %17, %22 : vector<8x128xf32>
    %c0_13 = arith.constant 0 : index
    %c0_14 = arith.constant 0 : index
    %24 = vector.load %arg6[%c0_13, %c0_14] : memref<8x128xf32, #tpu.memory_space<vmem>>, vector<8x128xf32>
    tpu.vector_store %arg6[%c0_13, %c0_14], %23 {strides = array<i32>} : memref<8x128xf32, #tpu.memory_space<vmem>>, vector<8x128xf32>,
    return
  }
  func.func @transform_0(%arg0: i32) -> (i32, i32) {
    %c0_i32 = arith.constant 0 : i32
    %c0_i32_0 = arith.constant 0 : i32
    return %arg0, %c0_i32 : i32, i32
  }
  func.func @transform_1(%arg0: i32) -> (i32, i32) {
    %c0_i32 = arith.constant 0 : i32
    %c0_i32_0 = arith.constant 0 : i32
    %c0_i32_1 = arith.constant 0 : i32
    return %c0_i32, %c0_i32_0 : i32, i32
  }
  func.func @transform_2(%arg0: i32) -> (i32, i32) {
    %c0_i32 = arith.constant 0 : i32
    %c0_i32_0 = arith.constant 0 : i32
    %c0_i32_1 = arith.constant 0 : i32
    return %c0_i32, %c0_i32_0 : i32, i32
  }
  func.func @transform_3(%arg0: i32) -> (i32, i32) {
    %c0_i32 = arith.constant 0 : i32
    %c0_i32_0 = arith.constant 0 : i32
    %c0_i32_1 = arith.constant 0 : i32
    return %c0_i32, %c0_i32_0 : i32, i32
  }
  func.func @transform_4(%arg0: i32) -> (i32, i32) {
    %c0_i32 = arith.constant 0 : i32
    %c0_i32_0 = arith.constant 0 : i32
    %c0_i32_1 = arith.constant 0 : i32
    return %c0_i32, %c0_i32_0 : i32, i32
  }
  func.func @transform_5(%arg0: i32) -> (i32, i32) {
    %c0_i32 = arith.constant 0 : i32
    %c0_i32_0 = arith.constant 0 : i32
    return %arg0, %c0_i32 : i32, i32
  }
}

</mosaic_0001>

<llo_original>
// kernel: net_forward.3
$region0: #{net_forward.3}
  #allocation0 [shape = 'u32[]', space=smem, size = 0x4, offset = 0x4, fixed_abs, tag = 'smem constant byte address 0x4 - core index']
  #allocation1 [shape = 'u32[72,128]{1,0:T(1,128)}', space=vmem, size = 0x9000, scoped, tag = 'internal scratch']
  %s0 = inlined_call_operand.vmem [shape: bf16[392,128], index: 0, kind: input, shape index: {}]
  %s1 = inlined_call_operand.vmem [shape: bf16[392,128], index: 1, kind: input, shape index: {}]
  %s2 = inlined_call_operand.vmem [shape: bf16[392,128], index: 2, kind: input, shape index: {}]
  %s3 = inlined_call_operand.vmem [shape: bf16[392,128], index: 3, kind: input, shape index: {}]
  %s4 = inlined_call_operand.vmem [shape: bf16[128,32], index: 4, kind: input, shape index: {}]
  %s5 = inlined_call_operand.vmem [shape: f32[1,32], index: 5, kind: input, shape index: {}]
  %s6 = inlined_call_operand.vmem [shape: bf16[392,32], index: 6, kind: output, shape index: {}]
  %s7 = sld [smem:[#allocation0]]
  $region34: #{net_forward.3} parent=0
    _
  %s9 = ssub.s32 1, %s7
  %s10 = scalar_select 0, %s9, %s7
  // Predicated region
  $region2: #{net_forward.3} parent=0 // pred_check
    _
  $region3: #{net_forward.3} parent=0 // pred_check_branch
    %12 = sbr.rel (0) target = $region5
  $region4: #{net_forward.3} parent=0 // pred_region
    _
  $region5: #{net_forward.3} parent=0 // pred_fallthru
    _
  // Predicated region
  $region6: #{net_forward.3} parent=0 // pred_check
    _
  $region7: #{net_forward.3} parent=0 // pred_check_branch
    %14 = sbr.rel (0) target = $region9
  $region8: #{net_forward.3} parent=0 // pred_region
    _
  $region9: #{net_forward.3} parent=0 // pred_fallthru
    _
  // Predicated region
  $region10: #{net_forward.3} parent=0 // pred_check
    _
  $region11: #{net_forward.3} parent=0 // pred_check_branch
    %16 = sbr.rel (0) target = $region13
  $region12: #{net_forward.3} parent=0 // pred_region
    _
  $region13: #{net_forward.3} parent=0 // pred_fallthru
    _
  // Predicated region
  $region14: #{net_forward.3} parent=0 // pred_check
    _
  $region15: #{net_forward.3} parent=0 // pred_check_branch
    %18 = sbr.rel (0) target = $region17
  $region16: #{net_forward.3} parent=0 // pred_region
    _
  $region17: #{net_forward.3} parent=0 // pred_fallthru
    _
  // Predicated region
  $region18: #{net_forward.3} parent=0 // pred_check
    _
  $region19: #{net_forward.3} parent=0 // pred_check_branch
    %20 = sbr.rel (0) target = $region21
  $region20: #{net_forward.3} parent=0 // pred_region
    _
  $region21: #{net_forward.3} parent=0 // pred_fallthru
    _
  // Predicated region
  $region22: #{net_forward.3} parent=0 // pred_check
    _
  $region23: #{net_forward.3} parent=0 // pred_check_branch
    %22 = sbr.rel (0) target = $region25
  $region24: #{net_forward.3} parent=0 // pred_region
    _
  $region25: #{net_forward.3} parent=0 // pred_fallthru
    _
  %v23 = vld [vmem:[%s4] sm:$0xf]
  %v24 = vld [vmem:[%s4 + $0x4] sm:$0xf]
  %v25 = vld [vmem:[%s4 + $0x8] sm:$0xf]
  %v26 = vld [vmem:[%s4 + $0xc] sm:$0xf]
  %v27 = vld [vmem:[%s4 + $0x10] sm:$0xf]
  %v28 = vld [vmem:[%s4 + $0x14] sm:$0xf]
  %v29 = vld [vmem:[%s4 + $0x18] sm:$0xf]
  %v30 = vld [vmem:[%s4 + $0x1c] sm:$0xf]
  %v31 = vld [vmem:[%s4 + $0x20] sm:$0xf]
  %v32 = vld [vmem:[%s4 + $0x24] sm:$0xf]
  %v33 = vld [vmem:[%s4 + $0x28] sm:$0xf]
  %v34 = vld [vmem:[%s4 + $0x2c] sm:$0xf]
  %v35 = vld [vmem:[%s4 + $0x30] sm:$0xf]
  %v36 = vld [vmem:[%s4 + $0x34] sm:$0xf]
  %v37 = vld [vmem:[%s4 + $0x38] sm:$0xf]
  %v38 = vld [vmem:[%s4 + $0x3c] sm:$0xf]
  %v39 = vld [vmem:[%s0] sm:$0xf]
  %v40 = vld [vmem:[%s0 + $0x4] sm:$0xf]
  %v41 = vld [vmem:[%s0 + $0x8] sm:$0xf]
  %v42 = vld [vmem:[%s0 + $0xc] sm:$0xf]
  %v43 = vld [vmem:[%s0 + $0x10] sm:$0xf]
  %v44 = vld [vmem:[%s0 + $0x14] sm:$0xf]
  %v45 = vld [vmem:[%s0 + $0x18] sm:$0xf]
  %v46 = vld [vmem:[%s0 + $0x1c] sm:$0xf]
  %v47 = vld [vmem:[%s0 + $0x20] sm:$0xf]
  %v48 = vld [vmem:[%s0 + $0x24] sm:$0xf]
  %v49 = vld [vmem:[%s0 + $0x28] sm:$0xf]
  %v50 = vld [vmem:[%s0 + $0x2c] sm:$0xf]
  %v51 = vld [vmem:[%s0 + $0x30] sm:$0xf]
  %v52 = vld [vmem:[%s0 + $0x34] sm:$0xf]
  %v53 = vld [vmem:[%s0 + $0x38] sm:$0xf]
  %v54 = vld [vmem:[%s0 + $0x3c] sm:$0xf]
  %v55 = vld [vmem:[%s0 + $0x40] sm:$0xf]
  %v56 = vld [vmem:[%s0 + $0x44] sm:$0xf]
  %v57 = vld [vmem:[%s0 + $0x48] sm:$0xf]
  %v58 = vld [vmem:[%s0 + $0x4c] sm:$0xf]
  %v59 = vld [vmem:[%s0 + $0x50] sm:$0xf]
  %v60 = vld [vmem:[%s0 + $0x54] sm:$0xf]
  %v61 = vld [vmem:[%s0 + $0x58] sm:$0xf]
  %v62 = vld [vmem:[%s0 + $0x5c] sm:$0xf]
  %v63 = vld [vmem:[%s0 + $0x60] sm:$0xf]
  %v64 = vld [vmem:[%s0 + $0x64] sm:$0xf]
  %v65 = vld [vmem:[%s0 + $0x68] sm:$0xf]
  %v66 = vld [vmem:[%s0 + $0x6c] sm:$0xf]
  %v67 = vld [vmem:[%s0 + $0x70] sm:$0xf]
  %v68 = vld [vmem:[%s0 + $0x74] sm:$0xf]
  %v69 = vld [vmem:[%s0 + $0x78] sm:$0xf]
  %v70 = vld [vmem:[%s0 + $0x7c] sm:$0xf]
  %v71 = vld [vmem:[%s0 + $0x80] sm:$0xf]
  %v72 = vld [vmem:[%s0 + $0x84] sm:$0xf]
  %v73 = vld [vmem:[%s0 + $0x88] sm:$0xf]
  %v74 = vld [vmem:[%s0 + $0x8c] sm:$0xf]
  %v75 = vld [vmem:[%s0 + $0x90] sm:$0xf]
  %v76 = vld [vmem:[%s0 + $0x94] sm:$0xf]
  %v77 = vld [vmem:[%s0 + $0x98] sm:$0xf]
  %v78 = vld [vmem:[%s0 + $0x9c] sm:$0xf]
  %v79 = vld [vmem:[%s0 + $0xa0] sm:$0xf]
  %v80 = vld [vmem:[%s0 + $0xa4] sm:$0xf]
  %v81 = vld [vmem:[%s0 + $0xa8] sm:$0xf]
  %v82 = vld [vmem:[%s0 + $0xac] sm:$0xf]
  %v83 = vld [vmem:[%s0 + $0xb0] sm:$0xf]
  %v84 = vld [vmem:[%s0 + $0xb4] sm:$0xf]
  %v85 = vld [vmem:[%s0 + $0xb8] sm:$0xf]
  %v86 = vld [vmem:[%s0 + $0xbc] sm:$0xf]
  %v87 = vld [vmem:[%s0 + $0xc0] sm:$0xf]
  %v137 = vunpack.c.l.b16 %v39
  %v138 = vunpack.c.l.b16 %v40
  %v139 = vunpack.c.l.b16 %v41
  %v140 = vunpack.c.l.b16 %v42
  %v141 = vunpack.c.l.b16 %v43
  %v142 = vunpack.c.l.b16 %v44
  %v143 = vunpack.c.l.b16 %v45
  %v144 = vunpack.c.l.b16 %v46
  %v145 = vunpack.c.l.b16 %v47
  %v146 = vunpack.c.l.b16 %v48
  %v147 = vunpack.c.l.b16 %v49
  %v148 = vunpack.c.l.b16 %v50
  %v149 = vunpack.c.l.b16 %v51
  %v150 = vunpack.c.l.b16 %v52
  %v151 = vunpack.c.l.b16 %v53
  %v152 = vunpack.c.l.b16 %v54
  %v153 = vunpack.c.l.b16 %v55
  %v154 = vunpack.c.l.b16 %v56
  %v155 = vunpack.c.l.b16 %v57
  %v156 = vunpack.c.l.b16 %v58
  %v157 = vunpack.c.l.b16 %v59
  %v158 = vunpack.c.l.b16 %v60
  %v159 = vunpack.c.l.b16 %v61
  %v160 = vunpack.c.l.b16 %v62
  %v161 = vunpack.c.l.b16 %v63
  %v162 = vunpack.c.l.b16 %v64
  %v163 = vunpack.c.l.b16 %v65
  %v164 = vunpack.c.l.b16 %v66
  %v165 = vunpack.c.l.b16 %v67
  %v166 = vunpack.c.l.b16 %v68
  %v167 = vunpack.c.l.b16 %v69
  %v168 = vunpack.c.l.b16 %v70
  %v169 = vunpack.c.l.b16 %v71
  %v170 = vunpack.c.l.b16 %v72
  %v171 = vunpack.c.l.b16 %v73
  %v172 = vunpack.c.l.b16 %v74
  %v173 = vunpack.c.l.b16 %v75
  %v174 = vunpack.c.l.b16 %v76
  %v175 = vunpack.c.l.b16 %v77
  %v176 = vunpack.c.l.b16 %v78
  %v177 = vunpack.c.l.b16 %v79
  %v178 = vunpack.c.l.b16 %v80
  %v179 = vunpack.c.l.b16 %v81
  %v180 = vunpack.c.l.b16 %v82
  %v181 = vunpack.c.l.b16 %v83
  %v182 = vunpack.c.l.b16 %v84
  %v183 = vunpack.c.l.b16 %v85
  %v184 = vunpack.c.l.b16 %v86
  %v185 = vunpack.c.l.b16 %v87
  %v186 = vpack.c.b16 %v138, %v137
  %v187 = vpack.c.b16 %v140, %v139
  %v188 = vpack.c.b16 %v142, %v141
  %v189 = vpack.c.b16 %v144, %v143
  %v190 = vpack.c.b16 %v146, %v145
  %v191 = vpack.c.b16 %v148, %v147
  %v192 = vpack.c.b16 %v150, %v149
  %v193 = vpack.c.b16 %v152, %v151
  %v194 = vpack.c.b16 %v154, %v153
  %v195 = vpack.c.b16 %v156, %v155
  %v196 = vpack.c.b16 %v158, %v157
  %v197 = vpack.c.b16 %v160, %v159
  %v198 = vpack.c.b16 %v162, %v161
  %v199 = vpack.c.b16 %v164, %v163
  %v200 = vpack.c.b16 %v166, %v165
  %v201 = vpack.c.b16 %v168, %v167
  %v202 = vpack.c.b16 %v170, %v169
  %v203 = vpack.c.b16 %v172, %v171
  %v204 = vpack.c.b16 %v174, %v173
  %v205 = vpack.c.b16 %v176, %v175
  %v206 = vpack.c.b16 %v178, %v177
  %v207 = vpack.c.b16 %v180, %v179
  %v208 = vpack.c.b16 %v182, %v181
  %v209 = vpack.c.b16 %v184, %v183
  %v210 = vpack.c.b16 %v185, %v185
  %v252 = vunpack.c.l.b16 %v23
  %v253 = vunpack.c.l.b16 %v24
  %v254 = vunpack.c.l.b16 %v25
  %v255 = vunpack.c.l.b16 %v26
  %v256 = vunpack.c.l.b16 %v27
  %v257 = vunpack.c.l.b16 %v28
  %v258 = vunpack.c.l.b16 %v29
  %v259 = vunpack.c.l.b16 %v30
  %v260 = vunpack.c.l.b16 %v31
  %v261 = vunpack.c.l.b16 %v32
  %v262 = vunpack.c.l.b16 %v33
  %v263 = vunpack.c.l.b16 %v34
  %v264 = vunpack.c.l.b16 %v35
  %v265 = vunpack.c.l.b16 %v36
  %v266 = vunpack.c.l.b16 %v37
  %v267 = vunpack.c.l.b16 %v38
  %v268 = vpack.c.b16 %v253, %v252
  %v269 = vpack.c.b16 %v255, %v254
  %v270 = vpack.c.b16 %v257, %v256
  %v271 = vpack.c.b16 %v259, %v258
  %v272 = vpack.c.b16 %v261, %v260
  %v273 = vpack.c.b16 %v263, %v262
  %v274 = vpack.c.b16 %v265, %v264
  %v275 = vpack.c.b16 %v267, %v266
  %284 = vmatpush.bf16.msra.mxu0 %v275
  %285 = vmatpush.bf16.msra.mxu0 %v274
  %286 = vmatpush.bf16.msra.mxu0 %v273
  %287 = vmatpush.bf16.msra.mxu0 %v272
  %288 = vmatpush.bf16.msra.mxu0 %v271
  %289 = vmatpush.bf16.msra.mxu0 %v270
  %290 = vmatpush.bf16.msra.mxu0 %v269
  %291 = vmatpush.bf16.msra.mxu0 %v268
  %292 = vmatmul.bf16.gmra.mxu0 %v186
  %v293 = vpop.f32.mrf.mxu0
  %v294 = vadd.f32 0.0, %v293
  %v295 = vpop.f32.mrf.mxu0
  %v296 = vadd.f32 0.0, %v295
  %297 = vmatmul.bf16.gmra.mxu0 %v187
  %v298 = vpop.f32.mrf.mxu0
  %v299 = vadd.f32 0.0, %v298
  %v300 = vpop.f32.mrf.mxu0
  %v301 = vadd.f32 0.0, %v300
  %302 = vmatmul.bf16.gmra.mxu0 %v188
  %v303 = vpop.f32.mrf.mxu0
  %v304 = vadd.f32 0.0, %v303
  %v305 = vpop.f32.mrf.mxu0
  %v306 = vadd.f32 0.0, %v305
  %307 = vmatmul.bf16.gmra.mxu0 %v189
  %v308 = vpop.f32.mrf.mxu0
  %v309 = vadd.f32 0.0, %v308
  %v310 = vpop.f32.mrf.mxu0
  %v311 = vadd.f32 0.0, %v310
  %312 = vmatmul.bf16.gmra.mxu0 %v190
  %v313 = vpop.f32.mrf.mxu0
  %v314 = vadd.f32 0.0, %v313
  %v315 = vpop.f32.mrf.mxu0
  %v316 = vadd.f32 0.0, %v315
  %317 = vmatmul.bf16.gmra.mxu0 %v191
  %v318 = vpop.f32.mrf.mxu0
  %v319 = vadd.f32 0.0, %v318
  %v320 = vpop.f32.mrf.mxu0
  %v321 = vadd.f32 0.0, %v320
  %322 = vmatmul.bf16.gmra.mxu0 %v192
  %v323 = vpop.f32.mrf.mxu0
  %v324 = vadd.f32 0.0, %v323
  %v325 = vpop.f32.mrf.mxu0
  %v326 = vadd.f32 0.0, %v325
  %327 = vmatmul.bf16.gmra.mxu0 %v193
  %v328 = vpop.f32.mrf.mxu0
  %v329 = vadd.f32 0.0, %v328
  %v330 = vpop.f32.mrf.mxu0
  %v331 = vadd.f32 0.0, %v330
  %332 = vmatmul.bf16.gmra.mxu0 %v194
  %v333 = vpop.f32.mrf.mxu0
  %v334 = vadd.f32 0.0, %v333
  %v335 = vpop.f32.mrf.mxu0
  %v336 = vadd.f32 0.0, %v335
  %337 = vmatmul.bf16.gmra.mxu0 %v195
  %v338 = vpop.f32.mrf.mxu0
  %v339 = vadd.f32 0.0, %v338
  %v340 = vpop.f32.mrf.mxu0
  %v341 = vadd.f32 0.0, %v340
  %342 = vmatmul.bf16.gmra.mxu0 %v196
  %v343 = vpop.f32.mrf.mxu0
  %v344 = vadd.f32 0.0, %v343
  %v345 = vpop.f32.mrf.mxu0
  %v346 = vadd.f32 0.0, %v345
  %347 = vmatmul.bf16.gmra.mxu0 %v197
  %v348 = vpop.f32.mrf.mxu0
  %v349 = vadd.f32 0.0, %v348
  %v350 = vpop.f32.mrf.mxu0
  %v351 = vadd.f32 0.0, %v350
  %352 = vmatmul.bf16.gmra.mxu0 %v198
  %v353 = vpop.f32.mrf.mxu0
  %v354 = vadd.f32 0.0, %v353
  %v355 = vpop.f32.mrf.mxu0
  %v356 = vadd.f32 0.0, %v355
  %357 = vmatmul.bf16.gmra.mxu0 %v199
  %v358 = vpop.f32.mrf.mxu0
  %v359 = vadd.f32 0.0, %v358
  %v360 = vpop.f32.mrf.mxu0
  %v361 = vadd.f32 0.0, %v360
  %362 = vmatmul.bf16.gmra.mxu0 %v200
  %v363 = vpop.f32.mrf.mxu0
  %v364 = vadd.f32 0.0, %v363
  %v365 = vpop.f32.mrf.mxu0
  %v366 = vadd.f32 0.0, %v365
  %367 = vmatmul.bf16.gmra.mxu0 %v201
  %v368 = vpop.f32.mrf.mxu0
  %v369 = vadd.f32 0.0, %v368
  %v370 = vpop.f32.mrf.mxu0
  %v371 = vadd.f32 0.0, %v370
  %372 = vmatmul.bf16.gmra.mxu0 %v202
  %v373 = vpop.f32.mrf.mxu0
  %v374 = vadd.f32 0.0, %v373
  %v375 = vpop.f32.mrf.mxu0
  %v376 = vadd.f32 0.0, %v375
  %377 = vmatmul.bf16.gmra.mxu0 %v203
  %v378 = vpop.f32.mrf.mxu0
  %v379 = vadd.f32 0.0, %v378
  %v380 = vpop.f32.mrf.mxu0
  %v381 = vadd.f32 0.0, %v380
  %382 = vmatmul.bf16.gmra.mxu0 %v204
  %v383 = vpop.f32.mrf.mxu0
  %v384 = vadd.f32 0.0, %v383
  %v385 = vpop.f32.mrf.mxu0
  %v386 = vadd.f32 0.0, %v385
  %387 = vmatmul.bf16.gmra.mxu0 %v205
  %v388 = vpop.f32.mrf.mxu0
  %v389 = vadd.f32 0.0, %v388
  %v390 = vpop.f32.mrf.mxu0
  %v391 = vadd.f32 0.0, %v390
  %392 = vmatmul.bf16.gmra.mxu0 %v206
  %v393 = vpop.f32.mrf.mxu0
  %v394 = vadd.f32 0.0, %v393
  %v395 = vpop.f32.mrf.mxu0
  %v396 = vadd.f32 0.0, %v395
  %397 = vmatmul.bf16.gmra.mxu0 %v207
  %v398 = vpop.f32.mrf.mxu0
  %v399 = vadd.f32 0.0, %v398
  %v400 = vpop.f32.mrf.mxu0
  %v401 = vadd.f32 0.0, %v400
  %402 = vmatmul.bf16.gmra.mxu0 %v208
  %v403 = vpop.f32.mrf.mxu0
  %v404 = vadd.f32 0.0, %v403
  %v405 = vpop.f32.mrf.mxu0
  %v406 = vadd.f32 0.0, %v405
  %407 = vmatmul.bf16.gmra.mxu0 %v209
  %v408 = vpop.f32.mrf.mxu0
  %v409 = vadd.f32 0.0, %v408
  %v410 = vpop.f32.mrf.mxu0
  %v411 = vadd.f32 0.0, %v410
  %412 = vmatmul.bf16.gmra.mxu0 %v210
  %v413 = vpop.f32.mrf.mxu0
  %v414 = vadd.f32 0.0, %v413
  %v415 = vpop.f32.mrf.mxu0
  %416 = vdwg.mxu0
  %v417 = vld [vmem:[%s1] sm:$0xf]
  %v418 = vld [vmem:[%s1 + $0x4] sm:$0xf]
  %v419 = vld [vmem:[%s1 + $0x8] sm:$0xf]
  %v420 = vld [vmem:[%s1 + $0xc] sm:$0xf]
  %v421 = vld [vmem:[%s1 + $0x10] sm:$0xf]
  %v422 = vld [vmem:[%s1 + $0x14] sm:$0xf]
  %v423 = vld [vmem:[%s1 + $0x18] sm:$0xf]
  %v424 = vld [vmem:[%s1 + $0x1c] sm:$0xf]
  %v425 = vld [vmem:[%s1 + $0x20] sm:$0xf]
  %v426 = vld [vmem:[%s1 + $0x24] sm:$0xf]
  %v427 = vld [vmem:[%s1 + $0x28] sm:$0xf]
  %v428 = vld [vmem:[%s1 + $0x2c] sm:$0xf]
  %v429 = vld [vmem:[%s1 + $0x30] sm:$0xf]
  %v430 = vld [vmem:[%s1 + $0x34] sm:$0xf]
  %v431 = vld [vmem:[%s1 + $0x38] sm:$0xf]
  %v432 = vld [vmem:[%s1 + $0x3c] sm:$0xf]
  %v433 = vld [vmem:[%s1 + $0x40] sm:$0xf]
  %v434 = vld [vmem:[%s1 + $0x44] sm:$0xf]
  %v435 = vld [vmem:[%s1 + $0x48] sm:$0xf]
  %v436 = vld [vmem:[%s1 + $0x4c] sm:$0xf]
  %v437 = vld [vmem:[%s1 + $0x50] sm:$0xf]
  %v438 = vld [vmem:[%s1 + $0x54] sm:$0xf]
  %v439 = vld [vmem:[%s1 + $0x58] sm:$0xf]
  %v440 = vld [vmem:[%s1 + $0x5c] sm:$0xf]
  %v441 = vld [vmem:[%s1 + $0x60] sm:$0xf]
  %v442 = vld [vmem:[%s1 + $0x64] sm:$0xf]
  %v443 = vld [vmem:[%s1 + $0x68] sm:$0xf]
  %v444 = vld [vmem:[%s1 + $0x6c] sm:$0xf]
  %v445 = vld [vmem:[%s1 + $0x70] sm:$0xf]
  %v446 = vld [vmem:[%s1 + $0x74] sm:$0xf]
  %v447 = vld [vmem:[%s1 + $0x78] sm:$0xf]
  %v448 = vld [vmem:[%s1 + $0x7c] sm:$0xf]
  %v449 = vld [vmem:[%s1 + $0x80] sm:$0xf]
  %v450 = vld [vmem:[%s1 + $0x84] sm:$0xf]
  %v451 = vld [vmem:[%s1 + $0x88] sm:$0xf]
  %v452 = vld [vmem:[%s1 + $0x8c] sm:$0xf]
  %v453 = vld [vmem:[%s1 + $0x90] sm:$0xf]
  %v454 = vld [vmem:[%s1 + $0x94] sm:$0xf]
  %v455 = vld [vmem:[%s1 + $0x98] sm:$0xf]
  %v456 = vld [vmem:[%s1 + $0x9c] sm:$0xf]
  %v457 = vld [vmem:[%s1 + $0xa0] sm:$0xf]
  %v458 = vld [vmem:[%s1 + $0xa4] sm:$0xf]
  %v459 = vld [vmem:[%s1 + $0xa8] sm:$0xf]
  %v460 = vld [vmem:[%s1 + $0xac] sm:$0xf]
  %v461 = vld [vmem:[%s1 + $0xb0] sm:$0xf]
  %v462 = vld [vmem:[%s1 + $0xb4] sm:$0xf]
  %v463 = vld [vmem:[%s1 + $0xb8] sm:$0xf]
  %v464 = vld [vmem:[%s1 + $0xbc] sm:$0xf]
  %v465 = vld [vmem:[%s1 + $0xc0] sm:$0xf]
  %v515 = vunpack.c.l.b16 %v417
  %v516 = vunpack.c.l.b16 %v418
  %v517 = vunpack.c.l.b16 %v419
  %v518 = vunpack.c.l.b16 %v420
  %v519 = vunpack.c.l.b16 %v421
  %v520 = vunpack.c.l.b16 %v422
  %v521 = vunpack.c.l.b16 %v423
  %v522 = vunpack.c.l.b16 %v424
  %v523 = vunpack.c.l.b16 %v425
  %v524 = vunpack.c.l.b16 %v426
  %v525 = vunpack.c.l.b16 %v427
  %v526 = vunpack.c.l.b16 %v428
  %v527 = vunpack.c.l.b16 %v429
  %v528 = vunpack.c.l.b16 %v430
  %v529 = vunpack.c.l.b16 %v431
  %v530 = vunpack.c.l.b16 %v432
  %v531 = vunpack.c.l.b16 %v433
  %v532 = vunpack.c.l.b16 %v434
  %v533 = vunpack.c.l.b16 %v435
  %v534 = vunpack.c.l.b16 %v436
  %v535 = vunpack.c.l.b16 %v437
  %v536 = vunpack.c.l.b16 %v438
  %v537 = vunpack.c.l.b16 %v439
  %v538 = vunpack.c.l.b16 %v440
  %v539 = vunpack.c.l.b16 %v441
  %v540 = vunpack.c.l.b16 %v442
  %v541 = vunpack.c.l.b16 %v443
  %v542 = vunpack.c.l.b16 %v444
  %v543 = vunpack.c.l.b16 %v445
  %v544 = vunpack.c.l.b16 %v446
  %v545 = vunpack.c.l.b16 %v447
  %v546 = vunpack.c.l.b16 %v448
  %v547 = vunpack.c.l.b16 %v449
  %v548 = vunpack.c.l.b16 %v450
  %v549 = vunpack.c.l.b16 %v451
  %v550 = vunpack.c.l.b16 %v452
  %v551 = vunpack.c.l.b16 %v453
  %v552 = vunpack.c.l.b16 %v454
  %v553 = vunpack.c.l.b16 %v455
  %v554 = vunpack.c.l.b16 %v456
  %v555 = vunpack.c.l.b16 %v457
  %v556 = vunpack.c.l.b16 %v458
  %v557 = vunpack.c.l.b16 %v459
  %v558 = vunpack.c.l.b16 %v460
  %v559 = vunpack.c.l.b16 %v461
  %v560 = vunpack.c.l.b16 %v462
  %v561 = vunpack.c.l.b16 %v463
  %v562 = vunpack.c.l.b16 %v464
  %v563 = vunpack.c.l.b16 %v465
  %v564 = vpack.c.b16 %v516, %v515
  %v565 = vpack.c.b16 %v518, %v517
  %v566 = vpack.c.b16 %v520, %v519
  %v567 = vpack.c.b16 %v522, %v521
  %v568 = vpack.c.b16 %v524, %v523
  %v569 = vpack.c.b16 %v526, %v525
  %v570 = vpack.c.b16 %v528, %v527
  %v571 = vpack.c.b16 %v530, %v529
  %v572 = vpack.c.b16 %v532, %v531
  %v573 = vpack.c.b16 %v534, %v533
  %v574 = vpack.c.b16 %v536, %v535
  %v575 = vpack.c.b16 %v538, %v537
  %v576 = vpack.c.b16 %v540, %v539
  %v577 = vpack.c.b16 %v542, %v541
  %v578 = vpack.c.b16 %v544, %v543
  %v579 = vpack.c.b16 %v546, %v545
  %v580 = vpack.c.b16 %v548, %v547
  %v581 = vpack.c.b16 %v550, %v549
  %v582 = vpack.c.b16 %v552, %v551
  %v583 = vpack.c.b16 %v554, %v553
  %v584 = vpack.c.b16 %v556, %v555
  %v585 = vpack.c.b16 %v558, %v557
  %v586 = vpack.c.b16 %v560, %v559
  %v587 = vpack.c.b16 %v562, %v561
  %v588 = vpack.c.b16 %v563, %v563
  %614 = vmatpush.bf16.msra.mxu0 %v275
  %615 = vmatpush.bf16.msra.mxu0 %v274
  %616 = vmatpush.bf16.msra.mxu0 %v273
  %617 = vmatpush.bf16.msra.mxu0 %v272
  %618 = vmatpush.bf16.msra.mxu0 %v271
  %619 = vmatpush.bf16.msra.mxu0 %v270
  %620 = vmatpush.bf16.msra.mxu0 %v269
  %621 = vmatpush.bf16.msra.mxu0 %v268
  %622 = vmatmul.bf16.gmra.mxu0 %v564
  %v623 = vpop.f32.mrf.mxu0
  %v624 = vadd.f32 0.0, %v623
  %v625 = vpop.f32.mrf.mxu0
  %v626 = vadd.f32 0.0, %v625
  %627 = vmatmul.bf16.gmra.mxu0 %v565
  %v628 = vpop.f32.mrf.mxu0
  %v629 = vadd.f32 0.0, %v628
  %v630 = vpop.f32.mrf.mxu0
  %v631 = vadd.f32 0.0, %v630
  %632 = vmatmul.bf16.gmra.mxu0 %v566
  %v633 = vpop.f32.mrf.mxu0
  %v634 = vadd.f32 0.0, %v633
  %v635 = vpop.f32.mrf.mxu0
  %v636 = vadd.f32 0.0, %v635
  %637 = vmatmul.bf16.gmra.mxu0 %v567
  %v638 = vpop.f32.mrf.mxu0
  %v639 = vadd.f32 0.0, %v638
  %v640 = vpop.f32.mrf.mxu0
  %v641 = vadd.f32 0.0, %v640
  %642 = vmatmul.bf16.gmra.mxu0 %v568
  %v643 = vpop.f32.mrf.mxu0
  %v644 = vadd.f32 0.0, %v643
  %v645 = vpop.f32.mrf.mxu0
  %v646 = vadd.f32 0.0, %v645
  %647 = vmatmul.bf16.gmra.mxu0 %v569
  %v648 = vpop.f32.mrf.mxu0
  %v649 = vadd.f32 0.0, %v648
  %v650 = vpop.f32.mrf.mxu0
  %v651 = vadd.f32 0.0, %v650
  %652 = vmatmul.bf16.gmra.mxu0 %v570
  %v653 = vpop.f32.mrf.mxu0
  %v654 = vadd.f32 0.0, %v653
  %v655 = vpop.f32.mrf.mxu0
  %v656 = vadd.f32 0.0, %v655
  %657 = vmatmul.bf16.gmra.mxu0 %v571
  %v658 = vpop.f32.mrf.mxu0
  %v659 = vadd.f32 0.0, %v658
  %v660 = vpop.f32.mrf.mxu0
  %v661 = vadd.f32 0.0, %v660
  %662 = vmatmul.bf16.gmra.mxu0 %v572
  %v663 = vpop.f32.mrf.mxu0
  %v664 = vadd.f32 0.0, %v663
  %v665 = vpop.f32.mrf.mxu0
  %v666 = vadd.f32 0.0, %v665
  %667 = vmatmul.bf16.gmra.mxu0 %v573
  %v668 = vpop.f32.mrf.mxu0
  %v669 = vadd.f32 0.0, %v668
  %v670 = vpop.f32.mrf.mxu0
  %v671 = vadd.f32 0.0, %v670
  %672 = vmatmul.bf16.gmra.mxu0 %v574
  %v673 = vpop.f32.mrf.mxu0
  %v674 = vadd.f32 0.0, %v673
  %v675 = vpop.f32.mrf.mxu0
  %v676 = vadd.f32 0.0, %v675
  %677 = vmatmul.bf16.gmra.mxu0 %v575
  %v678 = vpop.f32.mrf.mxu0
  %v679 = vadd.f32 0.0, %v678
  %v680 = vpop.f32.mrf.mxu0
  %v681 = vadd.f32 0.0, %v680
  %682 = vmatmul.bf16.gmra.mxu0 %v576
  %v683 = vpop.f32.mrf.mxu0
  %v684 = vadd.f32 0.0, %v683
  %v685 = vpop.f32.mrf.mxu0
  %v686 = vadd.f32 0.0, %v685
  %687 = vmatmul.bf16.gmra.mxu0 %v577
  %v688 = vpop.f32.mrf.mxu0
  %v689 = vadd.f32 0.0, %v688
  %v690 = vpop.f32.mrf.mxu0
  %v691 = vadd.f32 0.0, %v690
  %692 = vmatmul.bf16.gmra.mxu0 %v578
  %v693 = vpop.f32.mrf.mxu0
  %v694 = vadd.f32 0.0, %v693
  %v695 = vpop.f32.mrf.mxu0
  %v696 = vadd.f32 0.0, %v695
  %697 = vmatmul.bf16.gmra.mxu0 %v579
  %v698 = vpop.f32.mrf.mxu0
  %v699 = vadd.f32 0.0, %v698
  %v700 = vpop.f32.mrf.mxu0
  %v701 = vadd.f32 0.0, %v700
  %702 = vmatmul.bf16.gmra.mxu0 %v580
  %v703 = vpop.f32.mrf.mxu0
  %v704 = vadd.f32 0.0, %v703
  %v705 = vpop.f32.mrf.mxu0
  %v706 = vadd.f32 0.0, %v705
  %707 = vmatmul.bf16.gmra.mxu0 %v581
  %v708 = vpop.f32.mrf.mxu0
  %v709 = vadd.f32 0.0, %v708
  %v710 = vpop.f32.mrf.mxu0
  %v711 = vadd.f32 0.0, %v710
  %712 = vmatmul.bf16.gmra.mxu0 %v582
  %v713 = vpop.f32.mrf.mxu0
  %v714 = vadd.f32 0.0, %v713
  %v715 = vpop.f32.mrf.mxu0
  %v716 = vadd.f32 0.0, %v715
  %717 = vmatmul.bf16.gmra.mxu0 %v583
  %v718 = vpop.f32.mrf.mxu0
  %v719 = vadd.f32 0.0, %v718
  %v720 = vpop.f32.mrf.mxu0
  %v721 = vadd.f32 0.0, %v720
  %722 = vmatmul.bf16.gmra.mxu0 %v584
  %v723 = vpop.f32.mrf.mxu0
  %v724 = vadd.f32 0.0, %v723
  %v725 = vpop.f32.mrf.mxu0
  %v726 = vadd.f32 0.0, %v725
  %727 = vmatmul.bf16.gmra.mxu0 %v585
  %v728 = vpop.f32.mrf.mxu0
  %v729 = vadd.f32 0.0, %v728
  %v730 = vpop.f32.mrf.mxu0
  %v731 = vadd.f32 0.0, %v730
  %732 = vmatmul.bf16.gmra.mxu0 %v586
  %v733 = vpop.f32.mrf.mxu0
  %v734 = vadd.f32 0.0, %v733
  %v735 = vpop.f32.mrf.mxu0
  %v736 = vadd.f32 0.0, %v735
  %737 = vmatmul.bf16.gmra.mxu0 %v587
  %v738 = vpop.f32.mrf.mxu0
  %v739 = vadd.f32 0.0, %v738
  %v740 = vpop.f32.mrf.mxu0
  %v741 = vadd.f32 0.0, %v740
  %742 = vmatmul.bf16.gmra.mxu0 %v588
  %v743 = vpop.f32.mrf.mxu0
  %v744 = vadd.f32 0.0, %v743
  %v745 = vpop.f32.mrf.mxu0
  %746 = vdwg.mxu0
  %v747 = vld [vmem:[%s2] sm:$0xf]
  %v748 = vld [vmem:[%s2 + $0x4] sm:$0xf]
  %v749 = vld [vmem:[%s2 + $0x8] sm:$0xf]
  %v750 = vld [vmem:[%s2 + $0xc] sm:$0xf]
  %v751 = vld [vmem:[%s2 + $0x10] sm:$0xf]
  %v752 = vld [vmem:[%s2 + $0x14] sm:$0xf]
  %v753 = vld [vmem:[%s2 + $0x18] sm:$0xf]
  %v754 = vld [vmem:[%s2 + $0x1c] sm:$0xf]
  %v755 = vld [vmem:[%s2 + $0x20] sm:$0xf]
  %v756 = vld [vmem:[%s2 + $0x24] sm:$0xf]
  %v757 = vld [vmem:[%s2 + $0x28] sm:$0xf]
  %v758 = vld [vmem:[%s2 + $0x2c] sm:$0xf]
  %v759 = vld [vmem:[%s2 + $0x30] sm:$0xf]
  %v760 = vld [vmem:[%s2 + $0x34] sm:$0xf]
  %v761 = vld [vmem:[%s2 + $0x38] sm:$0xf]
  %v762 = vld [vmem:[%s2 + $0x3c] sm:$0xf]
  %v763 = vld [vmem:[%s2 + $0x40] sm:$0xf]
  %v764 = vld [vmem:[%s2 + $0x44] sm:$0xf]
  %v765 = vld [vmem:[%s2 + $0x48] sm:$0xf]
  %v766 = vld [vmem:[%s2 + $0x4c] sm:$0xf]
  %v767 = vld [vmem:[%s2 + $0x50] sm:$0xf]
  %v768 = vld [vmem:[%s2 + $0x54] sm:$0xf]
  %v769 = vld [vmem:[%s2 + $0x58] sm:$0xf]
  %v770 = vld [vmem:[%s2 + $0x5c] sm:$0xf]
  %v771 = vld [vmem:[%s2 + $0x60] sm:$0xf]
  %v772 = vld [vmem:[%s2 + $0x64] sm:$0xf]
  %v773 = vld [vmem:[%s2 + $0x68] sm:$0xf]
  %v774 = vld [vmem:[%s2 + $0x6c] sm:$0xf]
  %v775 = vld [vmem:[%s2 + $0x70] sm:$0xf]
  %v776 = vld [vmem:[%s2 + $0x74] sm:$0xf]
  %v777 = vld [vmem:[%s2 + $0x78] sm:$0xf]
  %v778 = vld [vmem:[%s2 + $0x7c] sm:$0xf]
  %v779 = vld [vmem:[%s2 + $0x80] sm:$0xf]
  %v780 = vld [vmem:[%s2 + $0x84] sm:$0xf]
  %v781 = vld [vmem:[%s2 + $0x88] sm:$0xf]
  %v782 = vld [vmem:[%s2 + $0x8c] sm:$0xf]
  %v783 = vld [vmem:[%s2 + $0x90] sm:$0xf]
  %v784 = vld [vmem:[%s2 + $0x94] sm:$0xf]
  %v785 = vld [vmem:[%s2 + $0x98] sm:$0xf]
  %v786 = vld [vmem:[%s2 + $0x9c] sm:$0xf]
  %v787 = vld [vmem:[%s2 + $0xa0] sm:$0xf]
  %v788 = vld [vmem:[%s2 + $0xa4] sm:$0xf]
  %v789 = vld [vmem:[%s2 + $0xa8] sm:$0xf]
  %v790 = vld [vmem:[%s2 + $0xac] sm:$0xf]
  %v791 = vld [vmem:[%s2 + $0xb0] sm:$0xf]
  %v792 = vld [vmem:[%s2 + $0xb4] sm:$0xf]
  %v793 = vld [vmem:[%s2 + $0xb8] sm:$0xf]
  %v794 = vld [vmem:[%s2 + $0xbc] sm:$0xf]
  %v795 = vld [vmem:[%s2 + $0xc0] sm:$0xf]
  %v845 = vunpack.c.l.b16 %v747
  %v846 = vunpack.c.l.b16 %v748
  %v847 = vunpack.c.l.b16 %v749
  %v848 = vunpack.c.l.b16 %v750
  %v849 = vunpack.c.l.b16 %v751
  %v850 = vunpack.c.l.b16 %v752
  %v851 = vunpack.c.l.b16 %v753
  %v852 = vunpack.c.l.b16 %v754
  %v853 = vunpack.c.l.b16 %v755
  %v854 = vunpack.c.l.b16 %v756
  %v855 = vunpack.c.l.b16 %v757
  %v856 = vunpack.c.l.b16 %v758
  %v857 = vunpack.c.l.b16 %v759
  %v858 = vunpack.c.l.b16 %v760
  %v859 = vunpack.c.l.b16 %v761
  %v860 = vunpack.c.l.b16 %v762
  %v861 = vunpack.c.l.b16 %v763
  %v862 = vunpack.c.l.b16 %v764
  %v863 = vunpack.c.l.b16 %v765
  %v864 = vunpack.c.l.b16 %v766
  %v865 = vunpack.c.l.b16 %v767
  %v866 = vunpack.c.l.b16 %v768
  %v867 = vunpack.c.l.b16 %v769
  %v868 = vunpack.c.l.b16 %v770
  %v869 = vunpack.c.l.b16 %v771
  %v870 = vunpack.c.l.b16 %v772
  %v871 = vunpack.c.l.b16 %v773
  %v872 = vunpack.c.l.b16 %v774
  %v873 = vunpack.c.l.b16 %v775
  %v874 = vunpack.c.l.b16 %v776
  %v875 = vunpack.c.l.b16 %v777
  %v876 = vunpack.c.l.b16 %v778
  %v877 = vunpack.c.l.b16 %v779
  %v878 = vunpack.c.l.b16 %v780
  %v879 = vunpack.c.l.b16 %v781
  %v880 = vunpack.c.l.b16 %v782
  %v881 = vunpack.c.l.b16 %v783
  %v882 = vunpack.c.l.b16 %v784
  %v883 = vunpack.c.l.b16 %v785
  %v884 = vunpack.c.l.b16 %v786
  %v885 = vunpack.c.l.b16 %v787
  %v886 = vunpack.c.l.b16 %v788
  %v887 = vunpack.c.l.b16 %v789
  %v888 = vunpack.c.l.b16 %v790
  %v889 = vunpack.c.l.b16 %v791
  %v890 = vunpack.c.l.b16 %v792
  %v891 = vunpack.c.l.b16 %v793
  %v892 = vunpack.c.l.b16 %v794
  %v893 = vunpack.c.l.b16 %v795
  %v894 = vpack.c.b16 %v846, %v845
  %v895 = vpack.c.b16 %v848, %v847
  %v896 = vpack.c.b16 %v850, %v849
  %v897 = vpack.c.b16 %v852, %v851
  %v898 = vpack.c.b16 %v854, %v853
  %v899 = vpack.c.b16 %v856, %v855
  %v900 = vpack.c.b16 %v858, %v857
  %v901 = vpack.c.b16 %v860, %v859
  %v902 = vpack.c.b16 %v862, %v861
  %v903 = vpack.c.b16 %v864, %v863
  %v904 = vpack.c.b16 %v866, %v865
  %v905 = vpack.c.b16 %v868, %v867
  %v906 = vpack.c.b16 %v870, %v869
  %v907 = vpack.c.b16 %v872, %v871
  %v908 = vpack.c.b16 %v874, %v873
  %v909 = vpack.c.b16 %v876, %v875
  %v910 = vpack.c.b16 %v878, %v877
  %v911 = vpack.c.b16 %v880, %v879
  %v912 = vpack.c.b16 %v882, %v881
  %v913 = vpack.c.b16 %v884, %v883
  %v914 = vpack.c.b16 %v886, %v885
  %v915 = vpack.c.b16 %v888, %v887
  %v916 = vpack.c.b16 %v890, %v889
  %v917 = vpack.c.b16 %v892, %v891
  %v918 = vpack.c.b16 %v893, %v893
  %944 = vmatpush.bf16.msra.mxu0 %v275
  %945 = vmatpush.bf16.msra.mxu0 %v274
  %946 = vmatpush.bf16.msra.mxu0 %v273
  %947 = vmatpush.bf16.msra.mxu0 %v272
  %948 = vmatpush.bf16.msra.mxu0 %v271
  %949 = vmatpush.bf16.msra.mxu0 %v270
  %950 = vmatpush.bf16.msra.mxu0 %v269
  %951 = vmatpush.bf16.msra.mxu0 %v268
  %952 = vmatmul.bf16.gmra.mxu0 %v894
  %v953 = vpop.f32.mrf.mxu0
  %v954 = vadd.f32 0.0, %v953
  %v955 = vpop.f32.mrf.mxu0
  %v956 = vadd.f32 0.0, %v955
  %957 = vmatmul.bf16.gmra.mxu0 %v895
  %v958 = vpop.f32.mrf.mxu0
  %v959 = vadd.f32 0.0, %v958
  %v960 = vpop.f32.mrf.mxu0
  %v961 = vadd.f32 0.0, %v960
  %962 = vmatmul.bf16.gmra.mxu0 %v896
  %v963 = vpop.f32.mrf.mxu0
  %v964 = vadd.f32 0.0, %v963
  %v965 = vpop.f32.mrf.mxu0
  %v966 = vadd.f32 0.0, %v965
  %967 = vmatmul.bf16.gmra.mxu0 %v897
  %v968 = vpop.f32.mrf.mxu0
  %v969 = vadd.f32 0.0, %v968
  %v970 = vpop.f32.mrf.mxu0
  %v971 = vadd.f32 0.0, %v970
  %972 = vmatmul.bf16.gmra.mxu0 %v898
  %v973 = vpop.f32.mrf.mxu0
  %v974 = vadd.f32 0.0, %v973
  %v975 = vpop.f32.mrf.mxu0
  %v976 = vadd.f32 0.0, %v975
  %977 = vmatmul.bf16.gmra.mxu0 %v899
  %v978 = vpop.f32.mrf.mxu0
  %v979 = vadd.f32 0.0, %v978
  %v980 = vpop.f32.mrf.mxu0
  %v981 = vadd.f32 0.0, %v980
  %982 = vmatmul.bf16.gmra.mxu0 %v900
  %v983 = vpop.f32.mrf.mxu0
  %v984 = vadd.f32 0.0, %v983
  %v985 = vpop.f32.mrf.mxu0
  %v986 = vadd.f32 0.0, %v985
  %987 = vmatmul.bf16.gmra.mxu0 %v901
  %v988 = vpop.f32.mrf.mxu0
  %v989 = vadd.f32 0.0, %v988
  %v990 = vpop.f32.mrf.mxu0
  %v991 = vadd.f32 0.0, %v990
  %992 = vmatmul.bf16.gmra.mxu0 %v902
  %v993 = vpop.f32.mrf.mxu0
  %v994 = vadd.f32 0.0, %v993
  %v995 = vpop.f32.mrf.mxu0
  %v996 = vadd.f32 0.0, %v995
  %997 = vmatmul.bf16.gmra.mxu0 %v903
  %v998 = vpop.f32.mrf.mxu0
  %v999 = vadd.f32 0.0, %v998
  %v1000 = vpop.f32.mrf.mxu0
  %v1001 = vadd.f32 0.0, %v1000
  %1002 = vmatmul.bf16.gmra.mxu0 %v904
  %v1003 = vpop.f32.mrf.mxu0
  %v1004 = vadd.f32 0.0, %v1003
  %v1005 = vpop.f32.mrf.mxu0
  %v1006 = vadd.f32 0.0, %v1005
  %1007 = vmatmul.bf16.gmra.mxu0 %v905
  %v1008 = vpop.f32.mrf.mxu0
  %v1009 = vadd.f32 0.0, %v1008
  %v1010 = vpop.f32.mrf.mxu0
  %v1011 = vadd.f32 0.0, %v1010
  %1012 = vmatmul.bf16.gmra.mxu0 %v906
  %v1013 = vpop.f32.mrf.mxu0
  %v1014 = vadd.f32 0.0, %v1013
  %v1015 = vpop.f32.mrf.mxu0
  %v1016 = vadd.f32 0.0, %v1015
  %1017 = vmatmul.bf16.gmra.mxu0 %v907
  %v1018 = vpop.f32.mrf.mxu0
  %v1019 = vadd.f32 0.0, %v1018
  %v1020 = vpop.f32.mrf.mxu0
  %v1021 = vadd.f32 0.0, %v1020
  %1022 = vmatmul.bf16.gmra.mxu0 %v908
  %v1023 = vpop.f32.mrf.mxu0
  %v1024 = vadd.f32 0.0, %v1023
  %v1025 = vpop.f32.mrf.mxu0
  %v1026 = vadd.f32 0.0, %v1025
  %1027 = vmatmul.bf16.gmra.mxu0 %v909
  %v1028 = vpop.f32.mrf.mxu0
  %v1029 = vadd.f32 0.0, %v1028
  %v1030 = vpop.f32.mrf.mxu0
  %v1031 = vadd.f32 0.0, %v1030
  %1032 = vmatmul.bf16.gmra.mxu0 %v910
  %v1033 = vpop.f32.mrf.mxu0
  %v1034 = vadd.f32 0.0, %v1033
  %v1035 = vpop.f32.mrf.mxu0
  %v1036 = vadd.f32 0.0, %v1035
  %1037 = vmatmul.bf16.gmra.mxu0 %v911
  %v1038 = vpop.f32.mrf.mxu0
  %v1039 = vadd.f32 0.0, %v1038
  %v1040 = vpop.f32.mrf.mxu0
  %v1041 = vadd.f32 0.0, %v1040
  %1042 = vmatmul.bf16.gmra.mxu0 %v912
  %v1043 = vpop.f32.mrf.mxu0
  %v1044 = vadd.f32 0.0, %v1043
  %v1045 = vpop.f32.mrf.mxu0
  %v1046 = vadd.f32 0.0, %v1045
  %1047 = vmatmul.bf16.gmra.mxu0 %v913
  %v1048 = vpop.f32.mrf.mxu0
  %v1049 = vadd.f32 0.0, %v1048
  %v1050 = vpop.f32.mrf.mxu0
  %v1051 = vadd.f32 0.0, %v1050
  %1052 = vmatmul.bf16.gmra.mxu0 %v914
  %v1053 = vpop.f32.mrf.mxu0
  %v1054 = vadd.f32 0.0, %v1053
  %v1055 = vpop.f32.mrf.mxu0
  %v1056 = vadd.f32 0.0, %v1055
  %1057 = vmatmul.bf16.gmra.mxu0 %v915
  %v1058 = vpop.f32.mrf.mxu0
  %v1059 = vadd.f32 0.0, %v1058
  %v1060 = vpop.f32.mrf.mxu0
  %v1061 = vadd.f32 0.0, %v1060
  %1062 = vmatmul.bf16.gmra.mxu0 %v916
  %v1063 = vpop.f32.mrf.mxu0
  %v1064 = vadd.f32 0.0, %v1063
  %v1065 = vpop.f32.mrf.mxu0
  %v1066 = vadd.f32 0.0, %v1065
  %1067 = vmatmul.bf16.gmra.mxu0 %v917
  %v1068 = vpop.f32.mrf.mxu0
  %v1069 = vadd.f32 0.0, %v1068
  %v1070 = vpop.f32.mrf.mxu0
  %v1071 = vadd.f32 0.0, %v1070
  %1072 = vmatmul.bf16.gmra.mxu0 %v918
  %v1073 = vpop.f32.mrf.mxu0
  %v1074 = vadd.f32 0.0, %v1073
  %v1075 = vpop.f32.mrf.mxu0
  %1076 = vdwg.mxu0
  %v1077 = vld [vmem:[%s3] sm:$0xf]
  %v1078 = vld [vmem:[%s3 + $0x4] sm:$0xf]
  %v1079 = vld [vmem:[%s3 + $0x8] sm:$0xf]
  %v1080 = vld [vmem:[%s3 + $0xc] sm:$0xf]
  %v1081 = vld [vmem:[%s3 + $0x10] sm:$0xf]
  %v1082 = vld [vmem:[%s3 + $0x14] sm:$0xf]
  %v1083 = vld [vmem:[%s3 + $0x18] sm:$0xf]
  %v1084 = vld [vmem:[%s3 + $0x1c] sm:$0xf]
  %v1085 = vld [vmem:[%s3 + $0x20] sm:$0xf]
  %v1086 = vld [vmem:[%s3 + $0x24] sm:$0xf]
  %v1087 = vld [vmem:[%s3 + $0x28] sm:$0xf]
  %v1088 = vld [vmem:[%s3 + $0x2c] sm:$0xf]
  %v1089 = vld [vmem:[%s3 + $0x30] sm:$0xf]
  %v1090 = vld [vmem:[%s3 + $0x34] sm:$0xf]
  %v1091 = vld [vmem:[%s3 + $0x38] sm:$0xf]
  %v1092 = vld [vmem:[%s3 + $0x3c] sm:$0xf]
  %v1093 = vld [vmem:[%s3 + $0x40] sm:$0xf]
  %v1094 = vld [vmem:[%s3 + $0x44] sm:$0xf]
  %v1095 = vld [vmem:[%s3 + $0x48] sm:$0xf]
  %v1096 = vld [vmem:[%s3 + $0x4c] sm:$0xf]
  %v1097 = vld [vmem:[%s3 + $0x50] sm:$0xf]
  %v1098 = vld [vmem:[%s3 + $0x54] sm:$0xf]
  %v1099 = vld [vmem:[%s3 + $0x58] sm:$0xf]
  %v1100 = vld [vmem:[%s3 + $0x5c] sm:$0xf]
  %v1101 = vld [vmem:[%s3 + $0x60] sm:$0xf]
  %v1102 = vld [vmem:[%s3 + $0x64] sm:$0xf]
  %v1103 = vld [vmem:[%s3 + $0x68] sm:$0xf]
  %v1104 = vld [vmem:[%s3 + $0x6c] sm:$0xf]
  %v1105 = vld [vmem:[%s3 + $0x70] sm:$0xf]
  %v1106 = vld [vmem:[%s3 + $0x74] sm:$0xf]
  %v1107 = vld [vmem:[%s3 + $0x78] sm:$0xf]
  %v1108 = vld [vmem:[%s3 + $0x7c] sm:$0xf]
  %v1109 = vld [vmem:[%s3 + $0x80] sm:$0xf]
  %v1110 = vld [vmem:[%s3 + $0x84] sm:$0xf]
  %v1111 = vld [vmem:[%s3 + $0x88] sm:$0xf]
  %v1112 = vld [vmem:[%s3 + $0x8c] sm:$0xf]
  %v1113 = vld [vmem:[%s3 + $0x90] sm:$0xf]
  %v1114 = vld [vmem:[%s3 + $0x94] sm:$0xf]
  %v1115 = vld [vmem:[%s3 + $0x98] sm:$0xf]
  %v1116 = vld [vmem:[%s3 + $0x9c] sm:$0xf]
  %v1117 = vld [vmem:[%s3 + $0xa0] sm:$0xf]
  %v1118 = vld [vmem:[%s3 + $0xa4] sm:$0xf]
  %v1119 = vld [vmem:[%s3 + $0xa8] sm:$0xf]
  %v1120 = vld [vmem:[%s3 + $0xac] sm:$0xf]
  %v1121 = vld [vmem:[%s3 + $0xb0] sm:$0xf]
  %v1122 = vld [vmem:[%s3 + $0xb4] sm:$0xf]
  %v1123 = vld [vmem:[%s3 + $0xb8] sm:$0xf]
  %v1124 = vld [vmem:[%s3 + $0xbc] sm:$0xf]
  %v1125 = vld [vmem:[%s3 + $0xc0] sm:$0xf]
  %v1175 = vunpack.c.l.b16 %v1077
  %v1176 = vunpack.c.l.b16 %v1078
  %v1177 = vunpack.c.l.b16 %v1079
  %v1178 = vunpack.c.l.b16 %v1080
  %v1179 = vunpack.c.l.b16 %v1081
  %v1180 = vunpack.c.l.b16 %v1082
  %v1181 = vunpack.c.l.b16 %v1083
  %v1182 = vunpack.c.l.b16 %v1084
  %v1183 = vunpack.c.l.b16 %v1085
  %v1184 = vunpack.c.l.b16 %v1086
  %v1185 = vunpack.c.l.b16 %v1087
  %v1186 = vunpack.c.l.b16 %v1088
  %v1187 = vunpack.c.l.b16 %v1089
  %v1188 = vunpack.c.l.b16 %v1090
  %v1189 = vunpack.c.l.b16 %v1091
  %v1190 = vunpack.c.l.b16 %v1092
  %v1191 = vunpack.c.l.b16 %v1093
  %v1192 = vunpack.c.l.b16 %v1094
  %v1193 = vunpack.c.l.b16 %v1095
  %v1194 = vunpack.c.l.b16 %v1096
  %v1195 = vunpack.c.l.b16 %v1097
  %v1196 = vunpack.c.l.b16 %v1098
  %v1197 = vunpack.c.l.b16 %v1099
  %v1198 = vunpack.c.l.b16 %v1100
  %v1199 = vunpack.c.l.b16 %v1101
  %v1200 = vunpack.c.l.b16 %v1102
  %v1201 = vunpack.c.l.b16 %v1103
  %v1202 = vunpack.c.l.b16 %v1104
  %v1203 = vunpack.c.l.b16 %v1105
  %v1204 = vunpack.c.l.b16 %v1106
  %v1205 = vunpack.c.l.b16 %v1107
  %v1206 = vunpack.c.l.b16 %v1108
  %v1207 = vunpack.c.l.b16 %v1109
  %v1208 = vunpack.c.l.b16 %v1110
  %v1209 = vunpack.c.l.b16 %v1111
  %v1210 = vunpack.c.l.b16 %v1112
  %v1211 = vunpack.c.l.b16 %v1113
  %v1212 = vunpack.c.l.b16 %v1114
  %v1213 = vunpack.c.l.b16 %v1115
  %v1214 = vunpack.c.l.b16 %v1116
  %v1215 = vunpack.c.l.b16 %v1117
  %v1216 = vunpack.c.l.b16 %v1118
  %v1217 = vunpack.c.l.b16 %v1119
  %v1218 = vunpack.c.l.b16 %v1120
  %v1219 = vunpack.c.l.b16 %v1121
  %v1220 = vunpack.c.l.b16 %v1122
  %v1221 = vunpack.c.l.b16 %v1123
  %v1222 = vunpack.c.l.b16 %v1124
  %v1223 = vunpack.c.l.b16 %v1125
  %v1224 = vpack.c.b16 %v1176, %v1175
  %v1225 = vpack.c.b16 %v1178, %v1177
  %v1226 = vpack.c.b16 %v1180, %v1179
  %v1227 = vpack.c.b16 %v1182, %v1181
  %v1228 = vpack.c.b16 %v1184, %v1183
  %v1229 = vpack.c.b16 %v1186, %v1185
  %v1230 = vpack.c.b16 %v1188, %v1187
  %v1231 = vpack.c.b16 %v1190, %v1189
  %v1232 = vpack.c.b16 %v1192, %v1191
  %v1233 = vpack.c.b16 %v1194, %v1193
  %v1234 = vpack.c.b16 %v1196, %v1195
  %v1235 = vpack.c.b16 %v1198, %v1197
  %v1236 = vpack.c.b16 %v1200, %v1199
  %v1237 = vpack.c.b16 %v1202, %v1201
  %v1238 = vpack.c.b16 %v1204, %v1203
  %v1239 = vpack.c.b16 %v1206, %v1205
  %v1240 = vpack.c.b16 %v1208, %v1207
  %v1241 = vpack.c.b16 %v1210, %v1209
  %v1242 = vpack.c.b16 %v1212, %v1211
  %v1243 = vpack.c.b16 %v1214, %v1213
  %v1244 = vpack.c.b16 %v1216, %v1215
  %v1245 = vpack.c.b16 %v1218, %v1217
  %v1246 = vpack.c.b16 %v1220, %v1219
  %v1247 = vpack.c.b16 %v1222, %v1221
  %v1248 = vpack.c.b16 %v1223, %v1223
  %1274 = vmatpush.bf16.msra.mxu0 %v275
  %1275 = vmatpush.bf16.msra.mxu0 %v274
  %1276 = vmatpush.bf16.msra.mxu0 %v273
  %1277 = vmatpush.bf16.msra.mxu0 %v272
  %1278 = vmatpush.bf16.msra.mxu0 %v271
  %1279 = vmatpush.bf16.msra.mxu0 %v270
  %1280 = vmatpush.bf16.msra.mxu0 %v269
  %1281 = vmatpush.bf16.msra.mxu0 %v268
  %1282 = vmatmul.bf16.gmra.mxu0 %v1224
  %v1283 = vpop.f32.mrf.mxu0
  %v1284 = vadd.f32 0.0, %v1283
  %v1285 = vpop.f32.mrf.mxu0
  %v1286 = vadd.f32 0.0, %v1285
  %1287 = vmatmul.bf16.gmra.mxu0 %v1225
  %v1288 = vpop.f32.mrf.mxu0
  %v1289 = vadd.f32 0.0, %v1288
  %v1290 = vpop.f32.mrf.mxu0
  %v1291 = vadd.f32 0.0, %v1290
  %1292 = vmatmul.bf16.gmra.mxu0 %v1226
  %v1293 = vpop.f32.mrf.mxu0
  %v1294 = vadd.f32 0.0, %v1293
  %v1295 = vpop.f32.mrf.mxu0
  %v1296 = vadd.f32 0.0, %v1295
  %1297 = vmatmul.bf16.gmra.mxu0 %v1227
  %v1298 = vpop.f32.mrf.mxu0
  %v1299 = vadd.f32 0.0, %v1298
  %v1300 = vpop.f32.mrf.mxu0
  %v1301 = vadd.f32 0.0, %v1300
  %1302 = vmatmul.bf16.gmra.mxu0 %v1228
  %v1303 = vpop.f32.mrf.mxu0
  %v1304 = vadd.f32 0.0, %v1303
  %v1305 = vpop.f32.mrf.mxu0
  %v1306 = vadd.f32 0.0, %v1305
  %1307 = vmatmul.bf16.gmra.mxu0 %v1229
  %v1308 = vpop.f32.mrf.mxu0
  %v1309 = vadd.f32 0.0, %v1308
  %v1310 = vpop.f32.mrf.mxu0
  %v1311 = vadd.f32 0.0, %v1310
  %1312 = vmatmul.bf16.gmra.mxu0 %v1230
  %v1313 = vpop.f32.mrf.mxu0
  %v1314 = vadd.f32 0.0, %v1313
  %v1315 = vpop.f32.mrf.mxu0
  %v1316 = vadd.f32 0.0, %v1315
  %1317 = vmatmul.bf16.gmra.mxu0 %v1231
  %v1318 = vpop.f32.mrf.mxu0
  %v1319 = vadd.f32 0.0, %v1318
  %v1320 = vpop.f32.mrf.mxu0
  %v1321 = vadd.f32 0.0, %v1320
  %1322 = vmatmul.bf16.gmra.mxu0 %v1232
  %v1323 = vpop.f32.mrf.mxu0
  %v1324 = vadd.f32 0.0, %v1323
  %v1325 = vpop.f32.mrf.mxu0
  %v1326 = vadd.f32 0.0, %v1325
  %1327 = vmatmul.bf16.gmra.mxu0 %v1233
  %v1328 = vpop.f32.mrf.mxu0
  %v1329 = vadd.f32 0.0, %v1328
  %v1330 = vpop.f32.mrf.mxu0
  %v1331 = vadd.f32 0.0, %v1330
  %1332 = vmatmul.bf16.gmra.mxu0 %v1234
  %v1333 = vpop.f32.mrf.mxu0
  %v1334 = vadd.f32 0.0, %v1333
  %v1335 = vpop.f32.mrf.mxu0
  %v1336 = vadd.f32 0.0, %v1335
  %1337 = vmatmul.bf16.gmra.mxu0 %v1235
  %v1338 = vpop.f32.mrf.mxu0
  %v1339 = vadd.f32 0.0, %v1338
  %v1340 = vpop.f32.mrf.mxu0
  %v1341 = vadd.f32 0.0, %v1340
  %1342 = vmatmul.bf16.gmra.mxu0 %v1236
  %v1343 = vpop.f32.mrf.mxu0
  %v1344 = vadd.f32 0.0, %v1343
  %v1345 = vpop.f32.mrf.mxu0
  %v1346 = vadd.f32 0.0, %v1345
  %1347 = vmatmul.bf16.gmra.mxu0 %v1237
  %v1348 = vpop.f32.mrf.mxu0
  %v1349 = vadd.f32 0.0, %v1348
  %v1350 = vpop.f32.mrf.mxu0
  %v1351 = vadd.f32 0.0, %v1350
  %1352 = vmatmul.bf16.gmra.mxu0 %v1238
  %v1353 = vpop.f32.mrf.mxu0
  %v1354 = vadd.f32 0.0, %v1353
  %v1355 = vpop.f32.mrf.mxu0
  %v1356 = vadd.f32 0.0, %v1355
  %1357 = vmatmul.bf16.gmra.mxu0 %v1239
  %v1358 = vpop.f32.mrf.mxu0
  %v1359 = vadd.f32 0.0, %v1358
  %v1360 = vpop.f32.mrf.mxu0
  %v1361 = vadd.f32 0.0, %v1360
  %1362 = vmatmul.bf16.gmra.mxu0 %v1240
  %v1363 = vpop.f32.mrf.mxu0
  %v1364 = vadd.f32 0.0, %v1363
  %v1365 = vpop.f32.mrf.mxu0
  %v1366 = vadd.f32 0.0, %v1365
  %1367 = vmatmul.bf16.gmra.mxu0 %v1241
  %v1368 = vpop.f32.mrf.mxu0
  %v1369 = vadd.f32 0.0, %v1368
  %v1370 = vpop.f32.mrf.mxu0
  %v1371 = vadd.f32 0.0, %v1370
  %1372 = vmatmul.bf16.gmra.mxu0 %v1242
  %v1373 = vpop.f32.mrf.mxu0
  %v1374 = vadd.f32 0.0, %v1373
  %v1375 = vpop.f32.mrf.mxu0
  %v1376 = vadd.f32 0.0, %v1375
  %1377 = vmatmul.bf16.gmra.mxu0 %v1243
  %v1378 = vpop.f32.mrf.mxu0
  %v1379 = vadd.f32 0.0, %v1378
  %v1380 = vpop.f32.mrf.mxu0
  %v1381 = vadd.f32 0.0, %v1380
  %1382 = vmatmul.bf16.gmra.mxu0 %v1244
  %v1383 = vpop.f32.mrf.mxu0
  %v1384 = vadd.f32 0.0, %v1383
  %v1385 = vpop.f32.mrf.mxu0
  %v1386 = vadd.f32 0.0, %v1385
  %1387 = vmatmul.bf16.gmra.mxu0 %v1245
  %v1388 = vpop.f32.mrf.mxu0
  %v1389 = vadd.f32 0.0, %v1388
  %v1390 = vpop.f32.mrf.mxu0
  %v1391 = vadd.f32 0.0, %v1390
  %1392 = vmatmul.bf16.gmra.mxu0 %v1246
  %v1393 = vpop.f32.mrf.mxu0
  %v1394 = vadd.f32 0.0, %v1393
  %v1395 = vpop.f32.mrf.mxu0
  %v1396 = vadd.f32 0.0, %v1395
  %1397 = vmatmul.bf16.gmra.mxu0 %v1247
  %v1398 = vpop.f32.mrf.mxu0
  %v1399 = vadd.f32 0.0, %v1398
  %v1400 = vpop.f32.mrf.mxu0
  %v1401 = vadd.f32 0.0, %v1400
  %1402 = vmatmul.bf16.gmra.mxu0 %v1248
  %v1403 = vpop.f32.mrf.mxu0
  %v1404 = vadd.f32 0.0, %v1403
  %v1405 = vpop.f32.mrf.mxu0
  %1406 = vdwg.mxu0
  %v1407 = vmax.f32 %v294, %v624
  %v1408 = vmax.f32 %v296, %v626
  %v1409 = vmax.f32 %v299, %v629
  %v1410 = vmax.f32 %v301, %v631
  %v1411 = vmax.f32 %v304, %v634
  %v1412 = vmax.f32 %v306, %v636
  %v1413 = vmax.f32 %v309, %v639
  %v1414 = vmax.f32 %v311, %v641
  %v1415 = vmax.f32 %v314, %v644
  %v1416 = vmax.f32 %v316, %v646
  %v1417 = vmax.f32 %v319, %v649
  %v1418 = vmax.f32 %v321, %v651
  %v1419 = vmax.f32 %v324, %v654
  %v1420 = vmax.f32 %v326, %v656
  %v1421 = vmax.f32 %v329, %v659
  %v1422 = vmax.f32 %v331, %v661
  %v1423 = vmax.f32 %v334, %v664
  %v1424 = vmax.f32 %v336, %v666
  %v1425 = vmax.f32 %v339, %v669
  %v1426 = vmax.f32 %v341, %v671
  %v1427 = vmax.f32 %v344, %v674
  %v1428 = vmax.f32 %v346, %v676
  %v1429 = vmax.f32 %v349, %v679
  %v1430 = vmax.f32 %v351, %v681
  %v1431 = vmax.f32 %v354, %v684
  %v1432 = vmax.f32 %v356, %v686
  %v1433 = vmax.f32 %v359, %v689
  %v1434 = vmax.f32 %v361, %v691
  %v1435 = vmax.f32 %v364, %v694
  %v1436 = vmax.f32 %v366, %v696
  %v1437 = vmax.f32 %v369, %v699
  %v1438 = vmax.f32 %v371, %v701
  %v1439 = vmax.f32 %v374, %v704
  %v1440 = vmax.f32 %v376, %v706
  %v1441 = vmax.f32 %v379, %v709
  %v1442 = vmax.f32 %v381, %v711
  %v1443 = vmax.f32 %v384, %v714
  %v1444 = vmax.f32 %v386, %v716
  %v1445 = vmax.f32 %v389, %v719
  %v1446 = vmax.f32 %v391, %v721
  %v1447 = vmax.f32 %v394, %v724
  %v1448 = vmax.f32 %v396, %v726
  %v1449 = vmax.f32 %v399, %v729
  %v1450 = vmax.f32 %v401, %v731
  %v1451 = vmax.f32 %v404, %v734
  %v1452 = vmax.f32 %v406, %v736
  %v1453 = vmax.f32 %v409, %v739
  %v1454 = vmax.f32 %v411, %v741
  %v1455 = vmax.f32 %v414, %v744
  %v1456 = vmax.f32 %v954, %v1284
  %v1457 = vmax.f32 %v956, %v1286
  %v1458 = vmax.f32 %v959, %v1289
  %v1459 = vmax.f32 %v961, %v1291
  %v1460 = vmax.f32 %v964, %v1294
  %v1461 = vmax.f32 %v966, %v1296
  %v1462 = vmax.f32 %v969, %v1299
  %v1463 = vmax.f32 %v971, %v1301
  %v1464 = vmax.f32 %v974, %v1304
  %v1465 = vmax.f32 %v976, %v1306
  %v1466 = vmax.f32 %v979, %v1309
  %v1467 = vmax.f32 %v981, %v1311
  %v1468 = vmax.f32 %v984, %v1314
  %v1469 = vmax.f32 %v986, %v1316
  %v1470 = vmax.f32 %v989, %v1319
  %v1471 = vmax.f32 %v991, %v1321
  %v1472 = vmax.f32 %v994, %v1324
  %v1473 = vmax.f32 %v996, %v1326
  %v1474 = vmax.f32 %v999, %v1329
  %v1475 = vmax.f32 %v1001, %v1331
  %v1476 = vmax.f32 %v1004, %v1334
  %v1477 = vmax.f32 %v1006, %v1336
  %v1478 = vmax.f32 %v1009, %v1339
  %v1479 = vmax.f32 %v1011, %v1341
  %v1480 = vmax.f32 %v1014, %v1344
  %v1481 = vmax.f32 %v1016, %v1346
  %v1482 = vmax.f32 %v1019, %v1349
  %v1483 = vmax.f32 %v1021, %v1351
  %v1484 = vmax.f32 %v1024, %v1354
  %v1485 = vmax.f32 %v1026, %v1356
  %v1486 = vmax.f32 %v1029, %v1359
  %v1487 = vmax.f32 %v1031, %v1361
  %v1488 = vmax.f32 %v1034, %v1364
  %v1489 = vmax.f32 %v1036, %v1366
  %v1490 = vmax.f32 %v1039, %v1369
  %v1491 = vmax.f32 %v1041, %v1371
  %v1492 = vmax.f32 %v1044, %v1374
  %v1493 = vmax.f32 %v1046, %v1376
  %v1494 = vmax.f32 %v1049, %v1379
  %v1495 = vmax.f32 %v1051, %v1381
  %v1496 = vmax.f32 %v1054, %v1384
  %v1497 = vmax.f32 %v1056, %v1386
  %v1498 = vmax.f32 %v1059, %v1389
  %v1499 = vmax.f32 %v1061, %v1391
  %v1500 = vmax.f32 %v1064, %v1394
  %v1501 = vmax.f32 %v1066, %v1396
  %v1502 = vmax.f32 %v1069, %v1399
  %v1503 = vmax.f32 %v1071, %v1401
  %v1504 = vmax.f32 %v1074, %v1404
  %v1505 = vmax.f32 %v1407, %v1456
  %v1506 = vmax.f32 %v1408, %v1457
  %v1507 = vmax.f32 %v1409, %v1458
  %v1508 = vmax.f32 %v1410, %v1459
  %v1509 = vmax.f32 %v1411, %v1460
  %v1510 = vmax.f32 %v1412, %v1461
  %v1511 = vmax.f32 %v1413, %v1462
  %v1512 = vmax.f32 %v1414, %v1463
  %v1513 = vmax.f32 %v1415, %v1464
  %v1514 = vmax.f32 %v1416, %v1465
  %v1515 = vmax.f32 %v1417, %v1466
  %v1516 = vmax.f32 %v1418, %v1467
  %v1517 = vmax.f32 %v1419, %v1468
  %v1518 = vmax.f32 %v1420, %v1469
  %v1519 = vmax.f32 %v1421, %v1470
  %v1520 = vmax.f32 %v1422, %v1471
  %v1521 = vmax.f32 %v1423, %v1472
  %v1522 = vmax.f32 %v1424, %v1473
  %v1523 = vmax.f32 %v1425, %v1474
  %v1524 = vmax.f32 %v1426, %v1475
  %v1525 = vmax.f32 %v1427, %v1476
  %v1526 = vmax.f32 %v1428, %v1477
  %v1527 = vmax.f32 %v1429, %v1478
  %v1528 = vmax.f32 %v1430, %v1479
  %v1529 = vmax.f32 %v1431, %v1480
  %v1530 = vmax.f32 %v1432, %v1481
  %v1531 = vmax.f32 %v1433, %v1482
  %v1532 = vmax.f32 %v1434, %v1483
  %v1533 = vmax.f32 %v1435, %v1484
  %v1534 = vmax.f32 %v1436, %v1485
  %v1535 = vmax.f32 %v1437, %v1486
  %v1536 = vmax.f32 %v1438, %v1487
  %v1537 = vmax.f32 %v1439, %v1488
  %v1538 = vmax.f32 %v1440, %v1489
  %v1539 = vmax.f32 %v1441, %v1490
  %v1540 = vmax.f32 %v1442, %v1491
  %v1541 = vmax.f32 %v1443, %v1492
  %v1542 = vmax.f32 %v1444, %v1493
  %v1543 = vmax.f32 %v1445, %v1494
  %v1544 = vmax.f32 %v1446, %v1495
  %v1545 = vmax.f32 %v1447, %v1496
  %v1546 = vmax.f32 %v1448, %v1497
  %v1547 = vmax.f32 %v1449, %v1498
  %v1548 = vmax.f32 %v1450, %v1499
  %v1549 = vmax.f32 %v1451, %v1500
  %v1550 = vmax.f32 %v1452, %v1501
  %v1551 = vmax.f32 %v1453, %v1502
  %v1552 = vmax.f32 %v1454, %v1503
  %v1553 = vmax.f32 %v1455, %v1504
  %v1554 = vld [vmem:[%s5] sm:$0x1]
  %v1556 = vperm.slane %v1554, 0
  %v1558 = vadd.f32 %v1505, %v1556
  %v1559 = vadd.f32 %v1506, %v1556
  %v1560 = vadd.f32 %v1507, %v1556
  %v1561 = vadd.f32 %v1508, %v1556
  %v1562 = vadd.f32 %v1509, %v1556
  %v1563 = vadd.f32 %v1510, %v1556
  %v1564 = vadd.f32 %v1511, %v1556
  %v1565 = vadd.f32 %v1512, %v1556
  %v1566 = vadd.f32 %v1513, %v1556
  %v1567 = vadd.f32 %v1514, %v1556
  %v1568 = vadd.f32 %v1515, %v1556
  %v1569 = vadd.f32 %v1516, %v1556
  %v1570 = vadd.f32 %v1517, %v1556
  %v1571 = vadd.f32 %v1518, %v1556
  %v1572 = vadd.f32 %v1519, %v1556
  %v1573 = vadd.f32 %v1520, %v1556
  %v1574 = vadd.f32 %v1521, %v1556
  %v1575 = vadd.f32 %v1522, %v1556
  %v1576 = vadd.f32 %v1523, %v1556
  %v1577 = vadd.f32 %v1524, %v1556
  %v1578 = vadd.f32 %v1525, %v1556
  %v1579 = vadd.f32 %v1526, %v1556
  %v1580 = vadd.f32 %v1527, %v1556
  %v1581 = vadd.f32 %v1528, %v1556
  %v1582 = vadd.f32 %v1529, %v1556
  %v1583 = vadd.f32 %v1530, %v1556
  %v1584 = vadd.f32 %v1531, %v1556
  %v1585 = vadd.f32 %v1532, %v1556
  %v1586 = vadd.f32 %v1533, %v1556
  %v1587 = vadd.f32 %v1534, %v1556
  %v1588 = vadd.f32 %v1535, %v1556
  %v1589 = vadd.f32 %v1536, %v1556
  %v1590 = vadd.f32 %v1537, %v1556
  %v1591 = vadd.f32 %v1538, %v1556
  %v1592 = vadd.f32 %v1539, %v1556
  %v1593 = vadd.f32 %v1540, %v1556
  %v1594 = vadd.f32 %v1541, %v1556
  %v1595 = vadd.f32 %v1542, %v1556
  %v1596 = vadd.f32 %v1543, %v1556
  %v1597 = vadd.f32 %v1544, %v1556
  %v1598 = vadd.f32 %v1545, %v1556
  %v1599 = vadd.f32 %v1546, %v1556
  %v1600 = vadd.f32 %v1547, %v1556
  %v1601 = vadd.f32 %v1548, %v1556
  %v1602 = vadd.f32 %v1549, %v1556
  %v1603 = vadd.f32 %v1550, %v1556
  %v1604 = vadd.f32 %v1551, %v1556
  %v1605 = vadd.f32 %v1552, %v1556
  %v1606 = vadd.f32 %v1553, %v1556
  %v1607 = vmax.f32 %v1558, 0.0
  %v1608 = vmax.f32 %v1559, 0.0
  %v1609 = vmax.f32 %v1560, 0.0
  %v1610 = vmax.f32 %v1561, 0.0
  %v1611 = vmax.f32 %v1562, 0.0
  %v1612 = vmax.f32 %v1563, 0.0
  %v1613 = vmax.f32 %v1564, 0.0
  %v1614 = vmax.f32 %v1565, 0.0
  %v1615 = vmax.f32 %v1566, 0.0
  %v1616 = vmax.f32 %v1567, 0.0
  %v1617 = vmax.f32 %v1568, 0.0
  %v1618 = vmax.f32 %v1569, 0.0
  %v1619 = vmax.f32 %v1570, 0.0
  %v1620 = vmax.f32 %v1571, 0.0
  %v1621 = vmax.f32 %v1572, 0.0
  %v1622 = vmax.f32 %v1573, 0.0
  %v1623 = vmax.f32 %v1574, 0.0
  %v1624 = vmax.f32 %v1575, 0.0
  %v1625 = vmax.f32 %v1576, 0.0
  %v1626 = vmax.f32 %v1577, 0.0
  %v1627 = vmax.f32 %v1578, 0.0
  %v1628 = vmax.f32 %v1579, 0.0
  %v1629 = vmax.f32 %v1580, 0.0
  %v1630 = vmax.f32 %v1581, 0.0
  %v1631 = vmax.f32 %v1582, 0.0
  %v1632 = vmax.f32 %v1583, 0.0
  %v1633 = vmax.f32 %v1584, 0.0
  %v1634 = vmax.f32 %v1585, 0.0
  %v1635 = vmax.f32 %v1586, 0.0
  %v1636 = vmax.f32 %v1587, 0.0
  %v1637 = vmax.f32 %v1588, 0.0
  %v1638 = vmax.f32 %v1589, 0.0
  %v1639 = vmax.f32 %v1590, 0.0
  %v1640 = vmax.f32 %v1591, 0.0
  %v1641 = vmax.f32 %v1592, 0.0
  %v1642 = vmax.f32 %v1593, 0.0
  %v1643 = vmax.f32 %v1594, 0.0
  %v1644 = vmax.f32 %v1595, 0.0
  %v1645 = vmax.f32 %v1596, 0.0
  %v1646 = vmax.f32 %v1597, 0.0
  %v1647 = vmax.f32 %v1598, 0.0
  %v1648 = vmax.f32 %v1599, 0.0
  %v1649 = vmax.f32 %v1600, 0.0
  %v1650 = vmax.f32 %v1601, 0.0
  %v1651 = vmax.f32 %v1602, 0.0
  %v1652 = vmax.f32 %v1603, 0.0
  %v1653 = vmax.f32 %v1604, 0.0
  %v1654 = vmax.f32 %v1605, 0.0
  %v1655 = vmax.f32 %v1606, 0.0
  %v1656 = vpack.c.bf16 %v1607, %v1607
  %v1657 = vpack.c.bf16 %v1608, %v1608
  %v1658 = vpack.c.bf16 %v1609, %v1609
  %v1659 = vpack.c.bf16 %v1610, %v1610
  %v1660 = vpack.c.bf16 %v1611, %v1611
  %v1661 = vpack.c.bf16 %v1612, %v1612
  %v1662 = vpack.c.bf16 %v1613, %v1613
  %v1663 = vpack.c.bf16 %v1614, %v1614
  %v1664 = vpack.c.bf16 %v1615, %v1615
  %v1665 = vpack.c.bf16 %v1616, %v1616
  %v1666 = vpack.c.bf16 %v1617, %v1617
  %v1667 = vpack.c.bf16 %v1618, %v1618
  %v1668 = vpack.c.bf16 %v1619, %v1619
  %v1669 = vpack.c.bf16 %v1620, %v1620
  %v1670 = vpack.c.bf16 %v1621, %v1621
  %v1671 = vpack.c.bf16 %v1622, %v1622
  %v1672 = vpack.c.bf16 %v1623, %v1623
  %v1673 = vpack.c.bf16 %v1624, %v1624
  %v1674 = vpack.c.bf16 %v1625, %v1625
  %v1675 = vpack.c.bf16 %v1626, %v1626
  %v1676 = vpack.c.bf16 %v1627, %v1627
  %v1677 = vpack.c.bf16 %v1628, %v1628
  %v1678 = vpack.c.bf16 %v1629, %v1629
  %v1679 = vpack.c.bf16 %v1630, %v1630
  %v1680 = vpack.c.bf16 %v1631, %v1631
  %v1681 = vpack.c.bf16 %v1632, %v1632
  %v1682 = vpack.c.bf16 %v1633, %v1633
  %v1683 = vpack.c.bf16 %v1634, %v1634
  %v1684 = vpack.c.bf16 %v1635, %v1635
  %v1685 = vpack.c.bf16 %v1636, %v1636
  %v1686 = vpack.c.bf16 %v1637, %v1637
  %v1687 = vpack.c.bf16 %v1638, %v1638
  %v1688 = vpack.c.bf16 %v1639, %v1639
  %v1689 = vpack.c.bf16 %v1640, %v1640
  %v1690 = vpack.c.bf16 %v1641, %v1641
  %v1691 = vpack.c.bf16 %v1642, %v1642
  %v1692 = vpack.c.bf16 %v1643, %v1643
  %v1693 = vpack.c.bf16 %v1644, %v1644
  %v1694 = vpack.c.bf16 %v1645, %v1645
  %v1695 = vpack.c.bf16 %v1646, %v1646
  %v1696 = vpack.c.bf16 %v1647, %v1647
  %v1697 = vpack.c.bf16 %v1648, %v1648
  %v1698 = vpack.c.bf16 %v1649, %v1649
  %v1699 = vpack.c.bf16 %v1650, %v1650
  %v1700 = vpack.c.bf16 %v1651, %v1651
  %v1701 = vpack.c.bf16 %v1652, %v1652
  %v1702 = vpack.c.bf16 %v1653, %v1653
  %v1703 = vpack.c.bf16 %v1654, %v1654
  %v1704 = vpack.c.bf16 %v1655, %v1655
  %vm1705 = vcmask 257024
  %1706 = vst.msk [vmem:[%s6] sm:$0xf] %vm1705, %v1656
  %1707 = vst.msk [vmem:[%s6 + $0x4] sm:$0xf] %vm1705, %v1657
  %1708 = vst.msk [vmem:[%s6 + $0x8] sm:$0xf] %vm1705, %v1658
  %1709 = vst.msk [vmem:[%s6 + $0xc] sm:$0xf] %vm1705, %v1659
  %1710 = vst.msk [vmem:[%s6 + $0x10] sm:$0xf] %vm1705, %v1660
  %1711 = vst.msk [vmem:[%s6 + $0x14] sm:$0xf] %vm1705, %v1661
  %1712 = vst.msk [vmem:[%s6 + $0x18] sm:$0xf] %vm1705, %v1662
  %1713 = vst.msk [vmem:[%s6 + $0x1c] sm:$0xf] %vm1705, %v1663
  %1714 = vst.msk [vmem:[%s6 + $0x20] sm:$0xf] %vm1705, %v1664
  %1715 = vst.msk [vmem:[%s6 + $0x24] sm:$0xf] %vm1705, %v1665
  %1716 = vst.msk [vmem:[%s6 + $0x28] sm:$0xf] %vm1705, %v1666
  %1717 = vst.msk [vmem:[%s6 + $0x2c] sm:$0xf] %vm1705, %v1667
  %1718 = vst.msk [vmem:[%s6 + $0x30] sm:$0xf] %vm1705, %v1668
  %1719 = vst.msk [vmem:[%s6 + $0x34] sm:$0xf] %vm1705, %v1669
  %1720 = vst.msk [vmem:[%s6 + $0x38] sm:$0xf] %vm1705, %v1670
  %1721 = vst.msk [vmem:[%s6 + $0x3c] sm:$0xf] %vm1705, %v1671
  %1722 = vst.msk [vmem:[%s6 + $0x40] sm:$0xf] %vm1705, %v1672
  %1723 = vst.msk [vmem:[%s6 + $0x44] sm:$0xf] %vm1705, %v1673
  %1724 = vst.msk [vmem:[%s6 + $0x48] sm:$0xf] %vm1705, %v1674
  %1725 = vst.msk [vmem:[%s6 + $0x4c] sm:$0xf] %vm1705, %v1675
  %1726 = vst.msk [vmem:[%s6 + $0x50] sm:$0xf] %vm1705, %v1676
  %1727 = vst.msk [vmem:[%s6 + $0x54] sm:$0xf] %vm1705, %v1677
  %1728 = vst.msk [vmem:[%s6 + $0x58] sm:$0xf] %vm1705, %v1678
  %1729 = vst.msk [vmem:[%s6 + $0x5c] sm:$0xf] %vm1705, %v1679
  %1730 = vst.msk [vmem:[%s6 + $0x60] sm:$0xf] %vm1705, %v1680
  %1731 = vst.msk [vmem:[%s6 + $0x64] sm:$0xf] %vm1705, %v1681
  %1732 = vst.msk [vmem:[%s6 + $0x68] sm:$0xf] %vm1705, %v1682
  %1733 = vst.msk [vmem:[%s6 + $0x6c] sm:$0xf] %vm1705, %v1683
  %1734 = vst.msk [vmem:[%s6 + $0x70] sm:$0xf] %vm1705, %v1684
  %1735 = vst.msk [vmem:[%s6 + $0x74] sm:$0xf] %vm1705, %v1685
  %1736 = vst.msk [vmem:[%s6 + $0x78] sm:$0xf] %vm1705, %v1686
  %1737 = vst.msk [vmem:[%s6 + $0x7c] sm:$0xf] %vm1705, %v1687
  %1738 = vst.msk [vmem:[%s6 + $0x80] sm:$0xf] %vm1705, %v1688
  %1739 = vst.msk [vmem:[%s6 + $0x84] sm:$0xf] %vm1705, %v1689
  %1740 = vst.msk [vmem:[%s6 + $0x88] sm:$0xf] %vm1705, %v1690
  %1741 = vst.msk [vmem:[%s6 + $0x8c] sm:$0xf] %vm1705, %v1691
  %1742 = vst.msk [vmem:[%s6 + $0x90] sm:$0xf] %vm1705, %v1692
  %1743 = vst.msk [vmem:[%s6 + $0x94] sm:$0xf] %vm1705, %v1693
  %1744 = vst.msk [vmem:[%s6 + $0x98] sm:$0xf] %vm1705, %v1694
  %1745 = vst.msk [vmem:[%s6 + $0x9c] sm:$0xf] %vm1705, %v1695
  %1746 = vst.msk [vmem:[%s6 + $0xa0] sm:$0xf] %vm1705, %v1696
  %1747 = vst.msk [vmem:[%s6 + $0xa4] sm:$0xf] %vm1705, %v1697
  %1748 = vst.msk [vmem:[%s6 + $0xa8] sm:$0xf] %vm1705, %v1698
  %1749 = vst.msk [vmem:[%s6 + $0xac] sm:$0xf] %vm1705, %v1699
  %1750 = vst.msk [vmem:[%s6 + $0xb0] sm:$0xf] %vm1705, %v1700
  %1751 = vst.msk [vmem:[%s6 + $0xb4] sm:$0xf] %vm1705, %v1701
  %1752 = vst.msk [vmem:[%s6 + $0xb8] sm:$0xf] %vm1705, %v1702
  %1753 = vst.msk [vmem:[%s6 + $0xbc] sm:$0xf] %vm1705, %v1703
  %1754 = vst.msk [vmem:[%s6 + $0xc0] sm:$0xf] %vm1705, %v1704
  // Predicated region
  $region26: #{net_forward.3} parent=0 // pred_check
    _
  $region27: #{net_forward.3} parent=0 // pred_check_branch
    %1756 = sbr.rel (0) target = $region29
  $region28: #{net_forward.3} parent=0 // pred_region
    _
  $region29: #{net_forward.3} parent=0 // pred_fallthru
    _
  // Predicated region
  $region30: #{net_forward.3} parent=0 // pred_check
    _
  $region31: #{net_forward.3} parent=0 // pred_check_branch
    %1758 = sbr.rel (0) target = $region33
  $region32: #{net_forward.3} parent=0 // pred_region
    _
  $region33: #{net_forward.3} parent=0 // pred_fallthru
    _

// kernel: net_forward.5
$region0: #{net_forward.5}
  #allocation0 [shape = 'u32[]', space=smem, size = 0x4, offset = 0x4, fixed_abs, tag = 'smem constant byte address 0x4 - core index']
  #allocation1 [shape = 'u32[72,128]{1,0:T(1,128)}', space=vmem, size = 0x9000, scoped, tag = 'internal scratch']
  %s0 = inlined_call_operand.vmem [shape: bf16[8,1600], index: 0, kind: input, shape index: {}]
  %s1 = inlined_call_operand.vmem [shape: bf16[1600,128], index: 1, kind: input, shape index: {}]
  %s2 = inlined_call_operand.vmem [shape: f32[1,128], index: 2, kind: input, shape index: {}]
  %s3 = inlined_call_operand.vmem [shape: bf16[128,128], index: 3, kind: input, shape index: {}]
  %s4 = inlined_call_operand.vmem [shape: f32[1,128], index: 4, kind: input, shape index: {}]
  %s5 = inlined_call_operand.vmem [shape: f32[8,128], index: 5, kind: output, shape index: {}]
  %s6 = sld [smem:[#allocation0]]
  $region30: #{net_forward.5} parent=0
    _
  %s8 = ssub.s32 1, %s6
  %s9 = scalar_select 0, %s8, %s6
  // Predicated region
  $region2: #{net_forward.5} parent=0 // pred_check
    _
  $region3: #{net_forward.5} parent=0 // pred_check_branch
    %11 = sbr.rel (0) target = $region5
  $region4: #{net_forward.5} parent=0 // pred_region
    _
  $region5: #{net_forward.5} parent=0 // pred_fallthru
    _
  // Predicated region
  $region6: #{net_forward.5} parent=0 // pred_check
    _
  $region7: #{net_forward.5} parent=0 // pred_check_branch
    %13 = sbr.rel (0) target = $region9
  $region8: #{net_forward.5} parent=0 // pred_region
    _
  $region9: #{net_forward.5} parent=0 // pred_fallthru
    _
  // Predicated region
  $region10: #{net_forward.5} parent=0 // pred_check
    _
  $region11: #{net_forward.5} parent=0 // pred_check_branch
    %15 = sbr.rel (0) target = $region13
  $region12: #{net_forward.5} parent=0 // pred_region
    _
  $region13: #{net_forward.5} parent=0 // pred_fallthru
    _
  // Predicated region
  $region14: #{net_forward.5} parent=0 // pred_check
    _
  $region15: #{net_forward.5} parent=0 // pred_check_branch
    %17 = sbr.rel (0) target = $region17
  $region16: #{net_forward.5} parent=0 // pred_region
    _
  $region17: #{net_forward.5} parent=0 // pred_fallthru
    _
  // Predicated region
  $region18: #{net_forward.5} parent=0 // pred_check
    _
  $region19: #{net_forward.5} parent=0 // pred_check_branch
    %19 = sbr.rel (0) target = $region21
  $region20: #{net_forward.5} parent=0 // pred_region
    _
  $region21: #{net_forward.5} parent=0 // pred_fallthru
    _
  %v21 = vld [vmem:[%s0] sm:$0xff]
  %v22 = vld [vmem:[%s0 + $0x8] sm:$0xff]
  %v23 = vld [vmem:[%s0 + $0x10] sm:$0xff]
  %v24 = vld [vmem:[%s0 + $0x18] sm:$0xff]
  %v25 = vld [vmem:[%s0 + $0x20] sm:$0xff]
  %v26 = vld [vmem:[%s0 + $0x28] sm:$0xff]
  %v27 = vld [vmem:[%s0 + $0x30] sm:$0xf]
  %v28 = vld [vmem:[%s1] sm:$0xf]
  %v29 = vld [vmem:[%s1 + $0x4] sm:$0xf]
  %v30 = vld [vmem:[%s1 + $0x8] sm:$0xf]
  %v31 = vld [vmem:[%s1 + $0xc] sm:$0xf]
  %v32 = vld [vmem:[%s1 + $0x10] sm:$0xf]
  %v33 = vld [vmem:[%s1 + $0x14] sm:$0xf]
  %v34 = vld [vmem:[%s1 + $0x18] sm:$0xf]
  %v35 = vld [vmem:[%s1 + $0x1c] sm:$0xf]
  %v36 = vld [vmem:[%s1 + $0x20] sm:$0xf]
  %v37 = vld [vmem:[%s1 + $0x24] sm:$0xf]
  %v38 = vld [vmem:[%s1 + $0x28] sm:$0xf]
  %v39 = vld [vmem:[%s1 + $0x2c] sm:$0xf]
  %v40 = vld [vmem:[%s1 + $0x30] sm:$0xf]
  %v41 = vld [vmem:[%s1 + $0x34] sm:$0xf]
  %v42 = vld [vmem:[%s1 + $0x38] sm:$0xf]
  %v43 = vld [vmem:[%s1 + $0x3c] sm:$0xf]
  %v44 = vld [vmem:[%s1 + $0x40] sm:$0xf]
  %v45 = vld [vmem:[%s1 + $0x44] sm:$0xf]
  %v46 = vld [vmem:[%s1 + $0x48] sm:$0xf]
  %v47 = vld [vmem:[%s1 + $0x4c] sm:$0xf]
  %v48 = vld [vmem:[%s1 + $0x50] sm:$0xf]
  %v49 = vld [vmem:[%s1 + $0x54] sm:$0xf]
  %v50 = vld [vmem:[%s1 + $0x58] sm:$0xf]
  %v51 = vld [vmem:[%s1 + $0x5c] sm:$0xf]
  %v52 = vld [vmem:[%s1 + $0x60] sm:$0xf]
  %v53 = vld [vmem:[%s1 + $0x64] sm:$0xf]
  %v54 = vld [vmem:[%s1 + $0x68] sm:$0xf]
  %v55 = vld [vmem:[%s1 + $0x6c] sm:$0xf]
  %v56 = vld [vmem:[%s1 + $0x70] sm:$0xf]
  %v57 = vld [vmem:[%s1 + $0x74] sm:$0xf]
  %v58 = vld [vmem:[%s1 + $0x78] sm:$0xf]
  %v59 = vld [vmem:[%s1 + $0x7c] sm:$0xf]
  %v60 = vld [vmem:[%s1 + $0x80] sm:$0xf]
  %v61 = vld [vmem:[%s1 + $0x84] sm:$0xf]
  %v62 = vld [vmem:[%s1 + $0x88] sm:$0xf]
  %v63 = vld [vmem:[%s1 + $0x8c] sm:$0xf]
  %v64 = vld [vmem:[%s1 + $0x90] sm:$0xf]
  %v65 = vld [vmem:[%s1 + $0x94] sm:$0xf]
  %v66 = vld [vmem:[%s1 + $0x98] sm:$0xf]
  %v67 = vld [vmem:[%s1 + $0x9c] sm:$0xf]
  %v68 = vld [vmem:[%s1 + $0xa0] sm:$0xf]
  %v69 = vld [vmem:[%s1 + $0xa4] sm:$0xf]
  %v70 = vld [vmem:[%s1 + $0xa8] sm:$0xf]
  %v71 = vld [vmem:[%s1 + $0xac] sm:$0xf]
  %v72 = vld [vmem:[%s1 + $0xb0] sm:$0xf]
  %v73 = vld [vmem:[%s1 + $0xb4] sm:$0xf]
  %v74 = vld [vmem:[%s1 + $0xb8] sm:$0xf]
  %v75 = vld [vmem:[%s1 + $0xbc] sm:$0xf]
  %v76 = vld [vmem:[%s1 + $0xc0] sm:$0xf]
  %v77 = vld [vmem:[%s1 + $0xc4] sm:$0xf]
  %v78 = vld [vmem:[%s1 + $0xc8] sm:$0xf]
  %v79 = vld [vmem:[%s1 + $0xcc] sm:$0xf]
  %v80 = vld [vmem:[%s1 + $0xd0] sm:$0xf]
  %v81 = vld [vmem:[%s1 + $0xd4] sm:$0xf]
  %v82 = vld [vmem:[%s1 + $0xd8] sm:$0xf]
  %v83 = vld [vmem:[%s1 + $0xdc] sm:$0xf]
  %v84 = vld [vmem:[%s1 + $0xe0] sm:$0xf]
  %v85 = vld [vmem:[%s1 + $0xe4] sm:$0xf]
  %v86 = vld [vmem:[%s1 + $0xe8] sm:$0xf]
  %v87 = vld [vmem:[%s1 + $0xec] sm:$0xf]
  %v88 = vld [vmem:[%s1 + $0xf0] sm:$0xf]
  %v89 = vld [vmem:[%s1 + $0xf4] sm:$0xf]
  %v90 = vld [vmem:[%s1 + $0xf8] sm:$0xf]
  %v91 = vld [vmem:[%s1 + $0xfc] sm:$0xf]
  %v92 = vld [vmem:[%s1 + $0x100] sm:$0xf]
  %v93 = vld [vmem:[%s1 + $0x104] sm:$0xf]
  %v94 = vld [vmem:[%s1 + $0x108] sm:$0xf]
  %v95 = vld [vmem:[%s1 + $0x10c] sm:$0xf]
  %v96 = vld [vmem:[%s1 + $0x110] sm:$0xf]
  %v97 = vld [vmem:[%s1 + $0x114] sm:$0xf]
  %v98 = vld [vmem:[%s1 + $0x118] sm:$0xf]
  %v99 = vld [vmem:[%s1 + $0x11c] sm:$0xf]
  %v100 = vld [vmem:[%s1 + $0x120] sm:$0xf]
  %v101 = vld [vmem:[%s1 + $0x124] sm:$0xf]
  %v102 = vld [vmem:[%s1 + $0x128] sm:$0xf]
  %v103 = vld [vmem:[%s1 + $0x12c] sm:$0xf]
  %v104 = vld [vmem:[%s1 + $0x130] sm:$0xf]
  %v105 = vld [vmem:[%s1 + $0x134] sm:$0xf]
  %v106 = vld [vmem:[%s1 + $0x138] sm:$0xf]
  %v107 = vld [vmem:[%s1 + $0x13c] sm:$0xf]
  %v108 = vld [vmem:[%s1 + $0x140] sm:$0xf]
  %v109 = vld [vmem:[%s1 + $0x144] sm:$0xf]
  %v110 = vld [vmem:[%s1 + $0x148] sm:$0xf]
  %v111 = vld [vmem:[%s1 + $0x14c] sm:$0xf]
  %v112 = vld [vmem:[%s1 + $0x150] sm:$0xf]
  %v113 = vld [vmem:[%s1 + $0x154] sm:$0xf]
  %v114 = vld [vmem:[%s1 + $0x158] sm:$0xf]
  %v115 = vld [vmem:[%s1 + $0x15c] sm:$0xf]
  %v116 = vld [vmem:[%s1 + $0x160] sm:$0xf]
  %v117 = vld [vmem:[%s1 + $0x164] sm:$0xf]
  %v118 = vld [vmem:[%s1 + $0x168] sm:$0xf]
  %v119 = vld [vmem:[%s1 + $0x16c] sm:$0xf]
  %v120 = vld [vmem:[%s1 + $0x170] sm:$0xf]
  %v121 = vld [vmem:[%s1 + $0x174] sm:$0xf]
  %v122 = vld [vmem:[%s1 + $0x178] sm:$0xf]
  %v123 = vld [vmem:[%s1 + $0x17c] sm:$0xf]
  %v124 = vld [vmem:[%s1 + $0x180] sm:$0xf]
  %v125 = vld [vmem:[%s1 + $0x184] sm:$0xf]
  %v126 = vld [vmem:[%s1 + $0x188] sm:$0xf]
  %v127 = vld [vmem:[%s1 + $0x18c] sm:$0xf]
  %v128 = vld [vmem:[%s1 + $0x190] sm:$0xf]
  %v129 = vld [vmem:[%s1 + $0x194] sm:$0xf]
  %v130 = vld [vmem:[%s1 + $0x198] sm:$0xf]
  %v131 = vld [vmem:[%s1 + $0x19c] sm:$0xf]
  %v132 = vld [vmem:[%s1 + $0x1a0] sm:$0xf]
  %v133 = vld [vmem:[%s1 + $0x1a4] sm:$0xf]
  %v134 = vld [vmem:[%s1 + $0x1a8] sm:$0xf]
  %v135 = vld [vmem:[%s1 + $0x1ac] sm:$0xf]
  %v136 = vld [vmem:[%s1 + $0x1b0] sm:$0xf]
  %v137 = vld [vmem:[%s1 + $0x1b4] sm:$0xf]
  %v138 = vld [vmem:[%s1 + $0x1b8] sm:$0xf]
  %v139 = vld [vmem:[%s1 + $0x1bc] sm:$0xf]
  %v140 = vld [vmem:[%s1 + $0x1c0] sm:$0xf]
  %v141 = vld [vmem:[%s1 + $0x1c4] sm:$0xf]
  %v142 = vld [vmem:[%s1 + $0x1c8] sm:$0xf]
  %v143 = vld [vmem:[%s1 + $0x1cc] sm:$0xf]
  %v144 = vld [vmem:[%s1 + $0x1d0] sm:$0xf]
  %v145 = vld [vmem:[%s1 + $0x1d4] sm:$0xf]
  %v146 = vld [vmem:[%s1 + $0x1d8] sm:$0xf]
  %v147 = vld [vmem:[%s1 + $0x1dc] sm:$0xf]
  %v148 = vld [vmem:[%s1 + $0x1e0] sm:$0xf]
  %v149 = vld [vmem:[%s1 + $0x1e4] sm:$0xf]
  %v150 = vld [vmem:[%s1 + $0x1e8] sm:$0xf]
  %v151 = vld [vmem:[%s1 + $0x1ec] sm:$0xf]
  %v152 = vld [vmem:[%s1 + $0x1f0] sm:$0xf]
  %v153 = vld [vmem:[%s1 + $0x1f4] sm:$0xf]
  %v154 = vld [vmem:[%s1 + $0x1f8] sm:$0xf]
  %v155 = vld [vmem:[%s1 + $0x1fc] sm:$0xf]
  %v156 = vld [vmem:[%s1 + $0x200] sm:$0xf]
  %v157 = vld [vmem:[%s1 + $0x204] sm:$0xf]
  %v158 = vld [vmem:[%s1 + $0x208] sm:$0xf]
  %v159 = vld [vmem:[%s1 + $0x20c] sm:$0xf]
  %v160 = vld [vmem:[%s1 + $0x210] sm:$0xf]
  %v161 = vld [vmem:[%s1 + $0x214] sm:$0xf]
  %v162 = vld [vmem:[%s1 + $0x218] sm:$0xf]
  %v163 = vld [vmem:[%s1 + $0x21c] sm:$0xf]
  %v164 = vld [vmem:[%s1 + $0x220] sm:$0xf]
  %v165 = vld [vmem:[%s1 + $0x224] sm:$0xf]
  %v166 = vld [vmem:[%s1 + $0x228] sm:$0xf]
  %v167 = vld [vmem:[%s1 + $0x22c] sm:$0xf]
  %v168 = vld [vmem:[%s1 + $0x230] sm:$0xf]
  %v169 = vld [vmem:[%s1 + $0x234] sm:$0xf]
  %v170 = vld [vmem:[%s1 + $0x238] sm:$0xf]
  %v171 = vld [vmem:[%s1 + $0x23c] sm:$0xf]
  %v172 = vld [vmem:[%s1 + $0x240] sm:$0xf]
  %v173 = vld [vmem:[%s1 + $0x244] sm:$0xf]
  %v174 = vld [vmem:[%s1 + $0x248] sm:$0xf]
  %v175 = vld [vmem:[%s1 + $0x24c] sm:$0xf]
  %v176 = vld [vmem:[%s1 + $0x250] sm:$0xf]
  %v177 = vld [vmem:[%s1 + $0x254] sm:$0xf]
  %v178 = vld [vmem:[%s1 + $0x258] sm:$0xf]
  %v179 = vld [vmem:[%s1 + $0x25c] sm:$0xf]
  %v180 = vld [vmem:[%s1 + $0x260] sm:$0xf]
  %v181 = vld [vmem:[%s1 + $0x264] sm:$0xf]
  %v182 = vld [vmem:[%s1 + $0x268] sm:$0xf]
  %v183 = vld [vmem:[%s1 + $0x26c] sm:$0xf]
  %v184 = vld [vmem:[%s1 + $0x270] sm:$0xf]
  %v185 = vld [vmem:[%s1 + $0x274] sm:$0xf]
  %v186 = vld [vmem:[%s1 + $0x278] sm:$0xf]
  %v187 = vld [vmem:[%s1 + $0x27c] sm:$0xf]
  %v188 = vld [vmem:[%s1 + $0x280] sm:$0xf]
  %v189 = vld [vmem:[%s1 + $0x284] sm:$0xf]
  %v190 = vld [vmem:[%s1 + $0x288] sm:$0xf]
  %v191 = vld [vmem:[%s1 + $0x28c] sm:$0xf]
  %v192 = vld [vmem:[%s1 + $0x290] sm:$0xf]
  %v193 = vld [vmem:[%s1 + $0x294] sm:$0xf]
  %v194 = vld [vmem:[%s1 + $0x298] sm:$0xf]
  %v195 = vld [vmem:[%s1 + $0x29c] sm:$0xf]
  %v196 = vld [vmem:[%s1 + $0x2a0] sm:$0xf]
  %v197 = vld [vmem:[%s1 + $0x2a4] sm:$0xf]
  %v198 = vld [vmem:[%s1 + $0x2a8] sm:$0xf]
  %v199 = vld [vmem:[%s1 + $0x2ac] sm:$0xf]
  %v200 = vld [vmem:[%s1 + $0x2b0] sm:$0xf]
  %v201 = vld [vmem:[%s1 + $0x2b4] sm:$0xf]
  %v202 = vld [vmem:[%s1 + $0x2b8] sm:$0xf]
  %v203 = vld [vmem:[%s1 + $0x2bc] sm:$0xf]
  %v204 = vld [vmem:[%s1 + $0x2c0] sm:$0xf]
  %v205 = vld [vmem:[%s1 + $0x2c4] sm:$0xf]
  %v206 = vld [vmem:[%s1 + $0x2c8] sm:$0xf]
  %v207 = vld [vmem:[%s1 + $0x2cc] sm:$0xf]
  %v208 = vld [vmem:[%s1 + $0x2d0] sm:$0xf]
  %v209 = vld [vmem:[%s1 + $0x2d4] sm:$0xf]
  %v210 = vld [vmem:[%s1 + $0x2d8] sm:$0xf]
  %v211 = vld [vmem:[%s1 + $0x2dc] sm:$0xf]
  %v212 = vld [vmem:[%s1 + $0x2e0] sm:$0xf]
  %v213 = vld [vmem:[%s1 + $0x2e4] sm:$0xf]
  %v214 = vld [vmem:[%s1 + $0x2e8] sm:$0xf]
  %v215 = vld [vmem:[%s1 + $0x2ec] sm:$0xf]
  %v216 = vld [vmem:[%s1 + $0x2f0] sm:$0xf]
  %v217 = vld [vmem:[%s1 + $0x2f4] sm:$0xf]
  %v218 = vld [vmem:[%s1 + $0x2f8] sm:$0xf]
  %v219 = vld [vmem:[%s1 + $0x2fc] sm:$0xf]
  %v220 = vld [vmem:[%s1 + $0x300] sm:$0xf]
  %v221 = vld [vmem:[%s1 + $0x304] sm:$0xf]
  %v222 = vld [vmem:[%s1 + $0x308] sm:$0xf]
  %v223 = vld [vmem:[%s1 + $0x30c] sm:$0xf]
  %v224 = vld [vmem:[%s1 + $0x310] sm:$0xf]
  %v225 = vld [vmem:[%s1 + $0x314] sm:$0xf]
  %v226 = vld [vmem:[%s1 + $0x318] sm:$0xf]
  %v227 = vld [vmem:[%s1 + $0x31c] sm:$0xf]
  %v228 = vld [vmem:[%s2] sm:$0x1]
  %v230 = vperm.slane %v228, 0
  %v239 = vunpack.c.l.b16 %v21
  %v240 = vunpack.c.h.b16 %v21
  %v241 = vunpack.c.l.b16 %v22
  %v242 = vunpack.c.h.b16 %v22
  %v243 = vunpack.c.l.b16 %v23
  %v244 = vunpack.c.h.b16 %v23
  %v245 = vunpack.c.l.b16 %v24
  %v246 = vunpack.c.h.b16 %v24
  %v247 = vunpack.c.l.b16 %v25
  %v248 = vunpack.c.h.b16 %v25
  %v249 = vunpack.c.l.b16 %v26
  %v250 = vunpack.c.h.b16 %v26
  %v251 = vunpack.c.l.b16 %v27
  %v252 = vpack.c.b16 %v239, %v239
  %v253 = vpack.c.b16 %v240, %v240
  %v254 = vpack.c.b16 %v241, %v241
  %v255 = vpack.c.b16 %v242, %v242
  %v256 = vpack.c.b16 %v243, %v243
  %v257 = vpack.c.b16 %v244, %v244
  %v258 = vpack.c.b16 %v245, %v245
  %v259 = vpack.c.b16 %v246, %v246
  %v260 = vpack.c.b16 %v247, %v247
  %v261 = vpack.c.b16 %v248, %v248
  %v262 = vpack.c.b16 %v249, %v249
  %v263 = vpack.c.b16 %v250, %v250
  %v264 = vpack.c.b16 %v251, %v251
  %v477 = vunpack.c.l.b16 %v28
  %v478 = vunpack.c.l.b16 %v29
  %v479 = vunpack.c.l.b16 %v30
  %v480 = vunpack.c.l.b16 %v31
  %v481 = vunpack.c.l.b16 %v32
  %v482 = vunpack.c.l.b16 %v33
  %v483 = vunpack.c.l.b16 %v34
  %v484 = vunpack.c.l.b16 %v35
  %v485 = vunpack.c.l.b16 %v36
  %v486 = vunpack.c.l.b16 %v37
  %v487 = vunpack.c.l.b16 %v38
  %v488 = vunpack.c.l.b16 %v39
  %v489 = vunpack.c.l.b16 %v40
  %v490 = vunpack.c.l.b16 %v41
  %v491 = vunpack.c.l.b16 %v42
  %v492 = vunpack.c.l.b16 %v43
  %v493 = vunpack.c.l.b16 %v44
  %v494 = vunpack.c.l.b16 %v45
  %v495 = vunpack.c.l.b16 %v46
  %v496 = vunpack.c.l.b16 %v47
  %v497 = vunpack.c.l.b16 %v48
  %v498 = vunpack.c.l.b16 %v49
  %v499 = vunpack.c.l.b16 %v50
  %v500 = vunpack.c.l.b16 %v51
  %v501 = vunpack.c.l.b16 %v52
  %v502 = vunpack.c.l.b16 %v53
  %v503 = vunpack.c.l.b16 %v54
  %v504 = vunpack.c.l.b16 %v55
  %v505 = vunpack.c.l.b16 %v56
  %v506 = vunpack.c.l.b16 %v57
  %v507 = vunpack.c.l.b16 %v58
  %v508 = vunpack.c.l.b16 %v59
  %v509 = vunpack.c.l.b16 %v60
  %v510 = vunpack.c.l.b16 %v61
  %v511 = vunpack.c.l.b16 %v62
  %v512 = vunpack.c.l.b16 %v63
  %v513 = vunpack.c.l.b16 %v64
  %v514 = vunpack.c.l.b16 %v65
  %v515 = vunpack.c.l.b16 %v66
  %v516 = vunpack.c.l.b16 %v67
  %v517 = vunpack.c.l.b16 %v68
  %v518 = vunpack.c.l.b16 %v69
  %v519 = vunpack.c.l.b16 %v70
  %v520 = vunpack.c.l.b16 %v71
  %v521 = vunpack.c.l.b16 %v72
  %v522 = vunpack.c.l.b16 %v73
  %v523 = vunpack.c.l.b16 %v74
  %v524 = vunpack.c.l.b16 %v75
  %v525 = vunpack.c.l.b16 %v76
  %v526 = vunpack.c.l.b16 %v77
  %v527 = vunpack.c.l.b16 %v78
  %v528 = vunpack.c.l.b16 %v79
  %v529 = vunpack.c.l.b16 %v80
  %v530 = vunpack.c.l.b16 %v81
  %v531 = vunpack.c.l.b16 %v82
  %v532 = vunpack.c.l.b16 %v83
  %v533 = vunpack.c.l.b16 %v84
  %v534 = vunpack.c.l.b16 %v85
  %v535 = vunpack.c.l.b16 %v86
  %v536 = vunpack.c.l.b16 %v87
  %v537 = vunpack.c.l.b16 %v88
  %v538 = vunpack.c.l.b16 %v89
  %v539 = vunpack.c.l.b16 %v90
  %v540 = vunpack.c.l.b16 %v91
  %v541 = vunpack.c.l.b16 %v92
  %v542 = vunpack.c.l.b16 %v93
  %v543 = vunpack.c.l.b16 %v94
  %v544 = vunpack.c.l.b16 %v95
  %v545 = vunpack.c.l.b16 %v96
  %v546 = vunpack.c.l.b16 %v97
  %v547 = vunpack.c.l.b16 %v98
  %v548 = vunpack.c.l.b16 %v99
  %v549 = vunpack.c.l.b16 %v100
  %v550 = vunpack.c.l.b16 %v101
  %v551 = vunpack.c.l.b16 %v102
  %v552 = vunpack.c.l.b16 %v103
  %v553 = vunpack.c.l.b16 %v104
  %v554 = vunpack.c.l.b16 %v105
  %v555 = vunpack.c.l.b16 %v106
  %v556 = vunpack.c.l.b16 %v107
  %v557 = vunpack.c.l.b16 %v108
  %v558 = vunpack.c.l.b16 %v109
  %v559 = vunpack.c.l.b16 %v110
  %v560 = vunpack.c.l.b16 %v111
  %v561 = vunpack.c.l.b16 %v112
  %v562 = vunpack.c.l.b16 %v113
  %v563 = vunpack.c.l.b16 %v114
  %v564 = vunpack.c.l.b16 %v115
  %v565 = vunpack.c.l.b16 %v116
  %v566 = vunpack.c.l.b16 %v117
  %v567 = vunpack.c.l.b16 %v118
  %v568 = vunpack.c.l.b16 %v119
  %v569 = vunpack.c.l.b16 %v120
  %v570 = vunpack.c.l.b16 %v121
  %v571 = vunpack.c.l.b16 %v122
  %v572 = vunpack.c.l.b16 %v123
  %v573 = vunpack.c.l.b16 %v124
  %v574 = vunpack.c.l.b16 %v125
  %v575 = vunpack.c.l.b16 %v126
  %v576 = vunpack.c.l.b16 %v127
  %v577 = vunpack.c.l.b16 %v128
  %v578 = vunpack.c.l.b16 %v129
  %v579 = vunpack.c.l.b16 %v130
  %v580 = vunpack.c.l.b16 %v131
  %v581 = vunpack.c.l.b16 %v132
  %v582 = vunpack.c.l.b16 %v133
  %v583 = vunpack.c.l.b16 %v134
  %v584 = vunpack.c.l.b16 %v135
  %v585 = vunpack.c.l.b16 %v136
  %v586 = vunpack.c.l.b16 %v137
  %v587 = vunpack.c.l.b16 %v138
  %v588 = vunpack.c.l.b16 %v139
  %v589 = vunpack.c.l.b16 %v140
  %v590 = vunpack.c.l.b16 %v141
  %v591 = vunpack.c.l.b16 %v142
  %v592 = vunpack.c.l.b16 %v143
  %v593 = vunpack.c.l.b16 %v144
  %v594 = vunpack.c.l.b16 %v145
  %v595 = vunpack.c.l.b16 %v146
  %v596 = vunpack.c.l.b16 %v147
  %v597 = vunpack.c.l.b16 %v148
  %v598 = vunpack.c.l.b16 %v149
  %v599 = vunpack.c.l.b16 %v150
  %v600 = vunpack.c.l.b16 %v151
  %v601 = vunpack.c.l.b16 %v152
  %v602 = vunpack.c.l.b16 %v153
  %v603 = vunpack.c.l.b16 %v154
  %v604 = vunpack.c.l.b16 %v155
  %v605 = vunpack.c.l.b16 %v156
  %v606 = vunpack.c.l.b16 %v157
  %v607 = vunpack.c.l.b16 %v158
  %v608 = vunpack.c.l.b16 %v159
  %v609 = vunpack.c.l.b16 %v160
  %v610 = vunpack.c.l.b16 %v161
  %v611 = vunpack.c.l.b16 %v162
  %v612 = vunpack.c.l.b16 %v163
  %v613 = vunpack.c.l.b16 %v164
  %v614 = vunpack.c.l.b16 %v165
  %v615 = vunpack.c.l.b16 %v166
  %v616 = vunpack.c.l.b16 %v167
  %v617 = vunpack.c.l.b16 %v168
  %v618 = vunpack.c.l.b16 %v169
  %v619 = vunpack.c.l.b16 %v170
  %v620 = vunpack.c.l.b16 %v171
  %v621 = vunpack.c.l.b16 %v172
  %v622 = vunpack.c.l.b16 %v173
  %v623 = vunpack.c.l.b16 %v174
  %v624 = vunpack.c.l.b16 %v175
  %v625 = vunpack.c.l.b16 %v176
  %v626 = vunpack.c.l.b16 %v177
  %v627 = vunpack.c.l.b16 %v178
  %v628 = vunpack.c.l.b16 %v179
  %v629 = vunpack.c.l.b16 %v180
  %v630 = vunpack.c.l.b16 %v181
  %v631 = vunpack.c.l.b16 %v182
  %v632 = vunpack.c.l.b16 %v183
  %v633 = vunpack.c.l.b16 %v184
  %v634 = vunpack.c.l.b16 %v185
  %v635 = vunpack.c.l.b16 %v186
  %v636 = vunpack.c.l.b16 %v187
  %v637 = vunpack.c.l.b16 %v188
  %v638 = vunpack.c.l.b16 %v189
  %v639 = vunpack.c.l.b16 %v190
  %v640 = vunpack.c.l.b16 %v191
  %v641 = vunpack.c.l.b16 %v192
  %v642 = vunpack.c.l.b16 %v193
  %v643 = vunpack.c.l.b16 %v194
  %v644 = vunpack.c.l.b16 %v195
  %v645 = vunpack.c.l.b16 %v196
  %v646 = vunpack.c.l.b16 %v197
  %v647 = vunpack.c.l.b16 %v198
  %v648 = vunpack.c.l.b16 %v199
  %v649 = vunpack.c.l.b16 %v200
  %v650 = vunpack.c.l.b16 %v201
  %v651 = vunpack.c.l.b16 %v202
  %v652 = vunpack.c.l.b16 %v203
  %v653 = vunpack.c.l.b16 %v204
  %v654 = vunpack.c.l.b16 %v205
  %v655 = vunpack.c.l.b16 %v206
  %v656 = vunpack.c.l.b16 %v207
  %v657 = vunpack.c.l.b16 %v208
  %v658 = vunpack.c.l.b16 %v209
  %v659 = vunpack.c.l.b16 %v210
  %v660 = vunpack.c.l.b16 %v211
  %v661 = vunpack.c.l.b16 %v212
  %v662 = vunpack.c.l.b16 %v213
  %v663 = vunpack.c.l.b16 %v214
  %v664 = vunpack.c.l.b16 %v215
  %v665 = vunpack.c.l.b16 %v216
  %v666 = vunpack.c.l.b16 %v217
  %v667 = vunpack.c.l.b16 %v218
  %v668 = vunpack.c.l.b16 %v219
  %v669 = vunpack.c.l.b16 %v220
  %v670 = vunpack.c.l.b16 %v221
  %v671 = vunpack.c.l.b16 %v222
  %v672 = vunpack.c.l.b16 %v223
  %v673 = vunpack.c.l.b16 %v224
  %v674 = vunpack.c.l.b16 %v225
  %v675 = vunpack.c.l.b16 %v226
  %v676 = vunpack.c.l.b16 %v227
  %v677 = vpack.c.b16 %v478, %v477
  %v678 = vpack.c.b16 %v480, %v479
  %v679 = vpack.c.b16 %v482, %v481
  %v680 = vpack.c.b16 %v484, %v483
  %v681 = vpack.c.b16 %v486, %v485
  %v682 = vpack.c.b16 %v488, %v487
  %v683 = vpack.c.b16 %v490, %v489
  %v684 = vpack.c.b16 %v492, %v491
  %v685 = vpack.c.b16 %v494, %v493
  %v686 = vpack.c.b16 %v496, %v495
  %v687 = vpack.c.b16 %v498, %v497
  %v688 = vpack.c.b16 %v500, %v499
  %v689 = vpack.c.b16 %v502, %v501
  %v690 = vpack.c.b16 %v504, %v503
  %v691 = vpack.c.b16 %v506, %v505
  %v692 = vpack.c.b16 %v508, %v507
  %v693 = vpack.c.b16 %v510, %v509
  %v694 = vpack.c.b16 %v512, %v511
  %v695 = vpack.c.b16 %v514, %v513
  %v696 = vpack.c.b16 %v516, %v515
  %v697 = vpack.c.b16 %v518, %v517
  %v698 = vpack.c.b16 %v520, %v519
  %v699 = vpack.c.b16 %v522, %v521
  %v700 = vpack.c.b16 %v524, %v523
  %v701 = vpack.c.b16 %v526, %v525
  %v702 = vpack.c.b16 %v528, %v527
  %v703 = vpack.c.b16 %v530, %v529
  %v704 = vpack.c.b16 %v532, %v531
  %v705 = vpack.c.b16 %v534, %v533
  %v706 = vpack.c.b16 %v536, %v535
  %v707 = vpack.c.b16 %v538, %v537
  %v708 = vpack.c.b16 %v540, %v539
  %v709 = vpack.c.b16 %v542, %v541
  %v710 = vpack.c.b16 %v544, %v543
  %v711 = vpack.c.b16 %v546, %v545
  %v712 = vpack.c.b16 %v548, %v547
  %v713 = vpack.c.b16 %v550, %v549
  %v714 = vpack.c.b16 %v552, %v551
  %v715 = vpack.c.b16 %v554, %v553
  %v716 = vpack.c.b16 %v556, %v555
  %v717 = vpack.c.b16 %v558, %v557
  %v718 = vpack.c.b16 %v560, %v559
  %v719 = vpack.c.b16 %v562, %v561
  %v720 = vpack.c.b16 %v564, %v563
  %v721 = vpack.c.b16 %v566, %v565
  %v722 = vpack.c.b16 %v568, %v567
  %v723 = vpack.c.b16 %v570, %v569
  %v724 = vpack.c.b16 %v572, %v571
  %v725 = vpack.c.b16 %v574, %v573
  %v726 = vpack.c.b16 %v576, %v575
  %v727 = vpack.c.b16 %v578, %v577
  %v728 = vpack.c.b16 %v580, %v579
  %v729 = vpack.c.b16 %v582, %v581
  %v730 = vpack.c.b16 %v584, %v583
  %v731 = vpack.c.b16 %v586, %v585
  %v732 = vpack.c.b16 %v588, %v587
  %v733 = vpack.c.b16 %v590, %v589
  %v734 = vpack.c.b16 %v592, %v591
  %v735 = vpack.c.b16 %v594, %v593
  %v736 = vpack.c.b16 %v596, %v595
  %v737 = vpack.c.b16 %v598, %v597
  %v738 = vpack.c.b16 %v600, %v599
  %v739 = vpack.c.b16 %v602, %v601
  %v740 = vpack.c.b16 %v604, %v603
  %v741 = vpack.c.b16 %v606, %v605
  %v742 = vpack.c.b16 %v608, %v607
  %v743 = vpack.c.b16 %v610, %v609
  %v744 = vpack.c.b16 %v612, %v611
  %v745 = vpack.c.b16 %v614, %v613
  %v746 = vpack.c.b16 %v616, %v615
  %v747 = vpack.c.b16 %v618, %v617
  %v748 = vpack.c.b16 %v620, %v619
  %v749 = vpack.c.b16 %v622, %v621
  %v750 = vpack.c.b16 %v624, %v623
  %v751 = vpack.c.b16 %v626, %v625
  %v752 = vpack.c.b16 %v628, %v627
  %v753 = vpack.c.b16 %v630, %v629
  %v754 = vpack.c.b16 %v632, %v631
  %v755 = vpack.c.b16 %v634, %v633
  %v756 = vpack.c.b16 %v636, %v635
  %v757 = vpack.c.b16 %v638, %v637
  %v758 = vpack.c.b16 %v640, %v639
  %v759 = vpack.c.b16 %v642, %v641
  %v760 = vpack.c.b16 %v644, %v643
  %v761 = vpack.c.b16 %v646, %v645
  %v762 = vpack.c.b16 %v648, %v647
  %v763 = vpack.c.b16 %v650, %v649
  %v764 = vpack.c.b16 %v652, %v651
  %v765 = vpack.c.b16 %v654, %v653
  %v766 = vpack.c.b16 %v656, %v655
  %v767 = vpack.c.b16 %v658, %v657
  %v768 = vpack.c.b16 %v660, %v659
  %v769 = vpack.c.b16 %v662, %v661
  %v770 = vpack.c.b16 %v664, %v663
  %v771 = vpack.c.b16 %v666, %v665
  %v772 = vpack.c.b16 %v668, %v667
  %v773 = vpack.c.b16 %v670, %v669
  %v774 = vpack.c.b16 %v672, %v671
  %v775 = vpack.c.b16 %v674, %v673
  %v776 = vpack.c.b16 %v676, %v675
  %vm877 = vcmask 523264
  %v879 = vsel %vm877, %v264, 0
  %881 = vmatpush.bf16.msra.mxu0 %v684
  %882 = vmatpush.bf16.msra.mxu0 %v683
  %883 = vmatpush.bf16.msra.mxu0 %v682
  %884 = vmatpush.bf16.msra.mxu0 %v681
  %885 = vmatpush.bf16.msra.mxu0 %v680
  %886 = vmatpush.bf16.msra.mxu0 %v679
  %887 = vmatpush.bf16.msra.mxu0 %v678
  %888 = vmatpush.bf16.msra.mxu0 %v677
  %889 = vmatmul.bf16.gmra.mxu0 %v252
  %v890 = vpop.f32.mrf.mxu0
  %v891 = vadd.f32 %v230, %v890
  %v892 = vpop.f32.mrf.mxu0
  %893 = vdwg.mxu0
  %894 = vmatpush.bf16.msra.mxu0 %v692
  %895 = vmatpush.bf16.msra.mxu0 %v691
  %896 = vmatpush.bf16.msra.mxu0 %v690
  %897 = vmatpush.bf16.msra.mxu0 %v689
  %898 = vmatpush.bf16.msra.mxu0 %v688
  %899 = vmatpush.bf16.msra.mxu0 %v687
  %900 = vmatpush.bf16.msra.mxu0 %v686
  %901 = vmatpush.bf16.msra.mxu0 %v685
  %902 = vmatmul.bf16.gmra.mxu0 %v253
  %v903 = vpop.f32.mrf.mxu0
  %v904 = vadd.f32 %v891, %v903
  %v905 = vpop.f32.mrf.mxu0
  %906 = vdwg.mxu0
  %907 = vmatpush.bf16.msra.mxu0 %v700
  %908 = vmatpush.bf16.msra.mxu0 %v699
  %909 = vmatpush.bf16.msra.mxu0 %v698
  %910 = vmatpush.bf16.msra.mxu0 %v697
  %911 = vmatpush.bf16.msra.mxu0 %v696
  %912 = vmatpush.bf16.msra.mxu0 %v695
  %913 = vmatpush.bf16.msra.mxu0 %v694
  %914 = vmatpush.bf16.msra.mxu0 %v693
  %915 = vmatmul.bf16.gmra.mxu0 %v254
  %v916 = vpop.f32.mrf.mxu0
  %v917 = vadd.f32 %v904, %v916
  %v918 = vpop.f32.mrf.mxu0
  %919 = vdwg.mxu0
  %920 = vmatpush.bf16.msra.mxu0 %v708
  %921 = vmatpush.bf16.msra.mxu0 %v707
  %922 = vmatpush.bf16.msra.mxu0 %v706
  %923 = vmatpush.bf16.msra.mxu0 %v705
  %924 = vmatpush.bf16.msra.mxu0 %v704
  %925 = vmatpush.bf16.msra.mxu0 %v703
  %926 = vmatpush.bf16.msra.mxu0 %v702
  %927 = vmatpush.bf16.msra.mxu0 %v701
  %928 = vmatmul.bf16.gmra.mxu0 %v255
  %v929 = vpop.f32.mrf.mxu0
  %v930 = vadd.f32 %v917, %v929
  %v931 = vpop.f32.mrf.mxu0
  %932 = vdwg.mxu0
  %933 = vmatpush.bf16.msra.mxu0 %v716
  %934 = vmatpush.bf16.msra.mxu0 %v715
  %935 = vmatpush.bf16.msra.mxu0 %v714
  %936 = vmatpush.bf16.msra.mxu0 %v713
  %937 = vmatpush.bf16.msra.mxu0 %v712
  %938 = vmatpush.bf16.msra.mxu0 %v711
  %939 = vmatpush.bf16.msra.mxu0 %v710
  %940 = vmatpush.bf16.msra.mxu0 %v709
  %941 = vmatmul.bf16.gmra.mxu0 %v256
  %v942 = vpop.f32.mrf.mxu0
  %v943 = vadd.f32 %v930, %v942
  %v944 = vpop.f32.mrf.mxu0
  %945 = vdwg.mxu0
  %946 = vmatpush.bf16.msra.mxu0 %v724
  %947 = vmatpush.bf16.msra.mxu0 %v723
  %948 = vmatpush.bf16.msra.mxu0 %v722
  %949 = vmatpush.bf16.msra.mxu0 %v721
  %950 = vmatpush.bf16.msra.mxu0 %v720
  %951 = vmatpush.bf16.msra.mxu0 %v719
  %952 = vmatpush.bf16.msra.mxu0 %v718
  %953 = vmatpush.bf16.msra.mxu0 %v717
  %954 = vmatmul.bf16.gmra.mxu0 %v257
  %v955 = vpop.f32.mrf.mxu0
  %v956 = vadd.f32 %v943, %v955
  %v957 = vpop.f32.mrf.mxu0
  %958 = vdwg.mxu0
  %959 = vmatpush.bf16.msra.mxu0 %v732
  %960 = vmatpush.bf16.msra.mxu0 %v731
  %961 = vmatpush.bf16.msra.mxu0 %v730
  %962 = vmatpush.bf16.msra.mxu0 %v729
  %963 = vmatpush.bf16.msra.mxu0 %v728
  %964 = vmatpush.bf16.msra.mxu0 %v727
  %965 = vmatpush.bf16.msra.mxu0 %v726
  %966 = vmatpush.bf16.msra.mxu0 %v725
  %967 = vmatmul.bf16.gmra.mxu0 %v258
  %v968 = vpop.f32.mrf.mxu0
  %v969 = vadd.f32 %v956, %v968
  %v970 = vpop.f32.mrf.mxu0
  %971 = vdwg.mxu0
  %972 = vmatpush.bf16.msra.mxu0 %v740
  %973 = vmatpush.bf16.msra.mxu0 %v739
  %974 = vmatpush.bf16.msra.mxu0 %v738
  %975 = vmatpush.bf16.msra.mxu0 %v737
  %976 = vmatpush.bf16.msra.mxu0 %v736
  %977 = vmatpush.bf16.msra.mxu0 %v735
  %978 = vmatpush.bf16.msra.mxu0 %v734
  %979 = vmatpush.bf16.msra.mxu0 %v733
  %980 = vmatmul.bf16.gmra.mxu0 %v259
  %v981 = vpop.f32.mrf.mxu0
  %v982 = vadd.f32 %v969, %v981
  %v983 = vpop.f32.mrf.mxu0
  %984 = vdwg.mxu0
  %985 = vmatpush.bf16.msra.mxu0 %v748
  %986 = vmatpush.bf16.msra.mxu0 %v747
  %987 = vmatpush.bf16.msra.mxu0 %v746
  %988 = vmatpush.bf16.msra.mxu0 %v745
  %989 = vmatpush.bf16.msra.mxu0 %v744
  %990 = vmatpush.bf16.msra.mxu0 %v743
  %991 = vmatpush.bf16.msra.mxu0 %v742
  %992 = vmatpush.bf16.msra.mxu0 %v741
  %993 = vmatmul.bf16.gmra.mxu0 %v260
  %v994 = vpop.f32.mrf.mxu0
  %v995 = vadd.f32 %v982, %v994
  %v996 = vpop.f32.mrf.mxu0
  %997 = vdwg.mxu0
  %998 = vmatpush.bf16.msra.mxu0 %v756
  %999 = vmatpush.bf16.msra.mxu0 %v755
  %1000 = vmatpush.bf16.msra.mxu0 %v754
  %1001 = vmatpush.bf16.msra.mxu0 %v753
  %1002 = vmatpush.bf16.msra.mxu0 %v752
  %1003 = vmatpush.bf16.msra.mxu0 %v751
  %1004 = vmatpush.bf16.msra.mxu0 %v750
  %1005 = vmatpush.bf16.msra.mxu0 %v749
  %1006 = vmatmul.bf16.gmra.mxu0 %v261
  %v1007 = vpop.f32.mrf.mxu0
  %v1008 = vadd.f32 %v995, %v1007
  %v1009 = vpop.f32.mrf.mxu0
  %1010 = vdwg.mxu0
  %1011 = vmatpush.bf16.msra.mxu0 %v764
  %1012 = vmatpush.bf16.msra.mxu0 %v763
  %1013 = vmatpush.bf16.msra.mxu0 %v762
  %1014 = vmatpush.bf16.msra.mxu0 %v761
  %1015 = vmatpush.bf16.msra.mxu0 %v760
  %1016 = vmatpush.bf16.msra.mxu0 %v759
  %1017 = vmatpush.bf16.msra.mxu0 %v758
  %1018 = vmatpush.bf16.msra.mxu0 %v757
  %1019 = vmatmul.bf16.gmra.mxu0 %v262
  %v1020 = vpop.f32.mrf.mxu0
  %v1021 = vadd.f32 %v1008, %v1020
  %v1022 = vpop.f32.mrf.mxu0
  %1023 = vdwg.mxu0
  %1024 = vmatpush.bf16.msra.mxu0 %v772
  %1025 = vmatpush.bf16.msra.mxu0 %v771
  %1026 = vmatpush.bf16.msra.mxu0 %v770
  %1027 = vmatpush.bf16.msra.mxu0 %v769
  %1028 = vmatpush.bf16.msra.mxu0 %v768
  %1029 = vmatpush.bf16.msra.mxu0 %v767
  %1030 = vmatpush.bf16.msra.mxu0 %v766
  %1031 = vmatpush.bf16.msra.mxu0 %v765
  %1032 = vmatmul.bf16.gmra.mxu0 %v263
  %v1033 = vpop.f32.mrf.mxu0
  %v1034 = vadd.f32 %v1021, %v1033
  %v1035 = vpop.f32.mrf.mxu0
  %1036 = vdwg.mxu0
  %1037 = vmatpush.bf16.msra.mxu0 0
  %1038 = vmatpush.bf16.msra.mxu0 0
  %1039 = vmatpush.bf16.msra.mxu0 0
  %1040 = vmatpush.bf16.msra.mxu0 0
  %1041 = vmatpush.bf16.msra.mxu0 %v776
  %1042 = vmatpush.bf16.msra.mxu0 %v775
  %1043 = vmatpush.bf16.msra.mxu0 %v774
  %1044 = vmatpush.bf16.msra.mxu0 %v773
  %1045 = vmatmul.bf16.gmra.mxu0 %v879
  %v1046 = vpop.f32.mrf.mxu0
  %v1047 = vadd.f32 %v1034, %v1046
  %v1048 = vpop.f32.mrf.mxu0
  %1049 = vdwg.mxu0
  %v1050 = vmax.f32 %v1047, 0.0
  %v1051 = vpack.c.bf16 %v1050, %v1050
  %v1052 = vld [vmem:[%s3] sm:$0xf]
  %v1053 = vld [vmem:[%s3 + $0x4] sm:$0xf]
  %v1054 = vld [vmem:[%s3 + $0x8] sm:$0xf]
  %v1055 = vld [vmem:[%s3 + $0xc] sm:$0xf]
  %v1056 = vld [vmem:[%s3 + $0x10] sm:$0xf]
  %v1057 = vld [vmem:[%s3 + $0x14] sm:$0xf]
  %v1058 = vld [vmem:[%s3 + $0x18] sm:$0xf]
  %v1059 = vld [vmem:[%s3 + $0x1c] sm:$0xf]
  %v1060 = vld [vmem:[%s3 + $0x20] sm:$0xf]
  %v1061 = vld [vmem:[%s3 + $0x24] sm:$0xf]
  %v1062 = vld [vmem:[%s3 + $0x28] sm:$0xf]
  %v1063 = vld [vmem:[%s3 + $0x2c] sm:$0xf]
  %v1064 = vld [vmem:[%s3 + $0x30] sm:$0xf]
  %v1065 = vld [vmem:[%s3 + $0x34] sm:$0xf]
  %v1066 = vld [vmem:[%s3 + $0x38] sm:$0xf]
  %v1067 = vld [vmem:[%s3 + $0x3c] sm:$0xf]
  %v1068 = vld [vmem:[%s4] sm:$0x1]
  %v1070 = vperm.slane %v1068, 0
  %v1088 = vunpack.c.l.b16 %v1052
  %v1089 = vunpack.c.l.b16 %v1053
  %v1090 = vunpack.c.l.b16 %v1054
  %v1091 = vunpack.c.l.b16 %v1055
  %v1092 = vunpack.c.l.b16 %v1056
  %v1093 = vunpack.c.l.b16 %v1057
  %v1094 = vunpack.c.l.b16 %v1058
  %v1095 = vunpack.c.l.b16 %v1059
  %v1096 = vunpack.c.l.b16 %v1060
  %v1097 = vunpack.c.l.b16 %v1061
  %v1098 = vunpack.c.l.b16 %v1062
  %v1099 = vunpack.c.l.b16 %v1063
  %v1100 = vunpack.c.l.b16 %v1064
  %v1101 = vunpack.c.l.b16 %v1065
  %v1102 = vunpack.c.l.b16 %v1066
  %v1103 = vunpack.c.l.b16 %v1067
  %v1104 = vpack.c.b16 %v1089, %v1088
  %v1105 = vpack.c.b16 %v1091, %v1090
  %v1106 = vpack.c.b16 %v1093, %v1092
  %v1107 = vpack.c.b16 %v1095, %v1094
  %v1108 = vpack.c.b16 %v1097, %v1096
  %v1109 = vpack.c.b16 %v1099, %v1098
  %v1110 = vpack.c.b16 %v1101, %v1100
  %v1111 = vpack.c.b16 %v1103, %v1102
  %1120 = vmatpush.bf16.msra.mxu0 %v1111
  %1121 = vmatpush.bf16.msra.mxu0 %v1110
  %1122 = vmatpush.bf16.msra.mxu0 %v1109
  %1123 = vmatpush.bf16.msra.mxu0 %v1108
  %1124 = vmatpush.bf16.msra.mxu0 %v1107
  %1125 = vmatpush.bf16.msra.mxu0 %v1106
  %1126 = vmatpush.bf16.msra.mxu0 %v1105
  %1127 = vmatpush.bf16.msra.mxu0 %v1104
  %1128 = vmatmul.bf16.gmra.mxu0 %v1051
  %v1129 = vpop.f32.mrf.mxu0
  %v1130 = vadd.f32 %v1070, %v1129
  %v1131 = vpop.f32.mrf.mxu0
  %1132 = vdwg.mxu0
  %1133 = vmax.xlane.f32.xlu0 %v1130
  %v1134 = vpop.xlane.xlu0 %1133
  %v1135 = vsub.f32 %v1130, %v1134
  %v1136 = vmul.f32 %v1135, 1.442695
  %v1137 = vpow.pop %v1136
  %1138 = vadd.xlane.f32.xlu0 %v1137
  %v1139 = vpop.xlane.xlu0 %1138
  %v1140 = vlog2.pop %v1139
  %v1141 = vmul.f32 %v1140, 0.6931472
  %v1142 = vsub.f32 %v1135, %v1141
  %1143 = vst [vmem:[%s5] sm:$0xff] %v1142
  // Predicated region
  $region22: #{net_forward.5} parent=0 // pred_check
    _
  $region23: #{net_forward.5} parent=0 // pred_check_branch
    %1145 = sbr.rel (0) target = $region25
  $region24: #{net_forward.5} parent=0 // pred_region
    _
  $region25: #{net_forward.5} parent=0 // pred_fallthru
    _
  // Predicated region
  $region26: #{net_forward.5} parent=0 // pred_check
    _
  $region27: #{net_forward.5} parent=0 // pred_check_branch
    %1147 = sbr.rel (0) target = $region29
  $region28: #{net_forward.5} parent=0 // pred_region
    _
  $region29: #{net_forward.5} parent=0 // pred_fallthru
    _

// kernel: net_forward.4
$region0: #{net_forward.4}
  #allocation0 [shape = 'u32[]', space=smem, size = 0x4, offset = 0x4, fixed_abs, tag = 'smem constant byte address 0x4 - core index']
  #allocation1 [shape = 'u32[72,128]{1,0:T(1,128)}', space=vmem, size = 0x9000, scoped, tag = 'internal scratch']
  %s0 = inlined_call_operand.vmem [shape: bf16[56,800], index: 0, kind: input, shape index: {}]
  %s1 = inlined_call_operand.vmem [shape: bf16[56,800], index: 1, kind: input, shape index: {}]
  %s2 = inlined_call_operand.vmem [shape: bf16[56,800], index: 2, kind: input, shape index: {}]
  %s3 = inlined_call_operand.vmem [shape: bf16[56,800], index: 3, kind: input, shape index: {}]
  %s4 = inlined_call_operand.vmem [shape: bf16[800,64], index: 4, kind: input, shape index: {}]
  %s5 = inlined_call_operand.vmem [shape: f32[1,64], index: 5, kind: input, shape index: {}]
  %s6 = inlined_call_operand.vmem [shape: bf16[56,64], index: 6, kind: output, shape index: {}]
  %s7 = sld [smem:[#allocation0]]
  $region34: #{net_forward.4} parent=0
    _
  %s9 = ssub.s32 1, %s7
  %s10 = scalar_select 0, %s9, %s7
  // Predicated region
  $region2: #{net_forward.4} parent=0 // pred_check
    _
  $region3: #{net_forward.4} parent=0 // pred_check_branch
    %12 = sbr.rel (0) target = $region5
  $region4: #{net_forward.4} parent=0 // pred_region
    _
  $region5: #{net_forward.4} parent=0 // pred_fallthru
    _
  // Predicated region
  $region6: #{net_forward.4} parent=0 // pred_check
    _
  $region7: #{net_forward.4} parent=0 // pred_check_branch
    %14 = sbr.rel (0) target = $region9
  $region8: #{net_forward.4} parent=0 // pred_region
    _
  $region9: #{net_forward.4} parent=0 // pred_fallthru
    _
  // Predicated region
  $region10: #{net_forward.4} parent=0 // pred_check
    _
  $region11: #{net_forward.4} parent=0 // pred_check_branch
    %16 = sbr.rel (0) target = $region13
  $region12: #{net_forward.4} parent=0 // pred_region
    _
  $region13: #{net_forward.4} parent=0 // pred_fallthru
    _
  // Predicated region
  $region14: #{net_forward.4} parent=0 // pred_check
    _
  $region15: #{net_forward.4} parent=0 // pred_check_branch
    %18 = sbr.rel (0) target = $region17
  $region16: #{net_forward.4} parent=0 // pred_region
    _
  $region17: #{net_forward.4} parent=0 // pred_fallthru
    _
  // Predicated region
  $region18: #{net_forward.4} parent=0 // pred_check
    _
  $region19: #{net_forward.4} parent=0 // pred_check_branch
    %20 = sbr.rel (0) target = $region21
  $region20: #{net_forward.4} parent=0 // pred_region
    _
  $region21: #{net_forward.4} parent=0 // pred_fallthru
    _
  // Predicated region
  $region22: #{net_forward.4} parent=0 // pred_check
    _
  $region23: #{net_forward.4} parent=0 // pred_check_branch
    %22 = sbr.rel (0) target = $region25
  $region24: #{net_forward.4} parent=0 // pred_region
    _
  $region25: #{net_forward.4} parent=0 // pred_fallthru
    _
  %v24 = vld [vmem:[%s4] sm:$0xf]
  %v25 = vld [vmem:[%s4 + $0x4] sm:$0xf]
  %v26 = vld [vmem:[%s4 + $0x8] sm:$0xf]
  %v27 = vld [vmem:[%s4 + $0xc] sm:$0xf]
  %v28 = vld [vmem:[%s4 + $0x10] sm:$0xf]
  %v29 = vld [vmem:[%s4 + $0x14] sm:$0xf]
  %v30 = vld [vmem:[%s4 + $0x18] sm:$0xf]
  %v31 = vld [vmem:[%s4 + $0x1c] sm:$0xf]
  %v32 = vld [vmem:[%s4 + $0x20] sm:$0xf]
  %v33 = vld [vmem:[%s4 + $0x24] sm:$0xf]
  %v34 = vld [vmem:[%s4 + $0x28] sm:$0xf]
  %v35 = vld [vmem:[%s4 + $0x2c] sm:$0xf]
  %v36 = vld [vmem:[%s4 + $0x30] sm:$0xf]
  %v37 = vld [vmem:[%s4 + $0x34] sm:$0xf]
  %v38 = vld [vmem:[%s4 + $0x38] sm:$0xf]
  %v39 = vld [vmem:[%s4 + $0x3c] sm:$0xf]
  %v40 = vld [vmem:[%s4 + $0x40] sm:$0xf]
  %v41 = vld [vmem:[%s4 + $0x44] sm:$0xf]
  %v42 = vld [vmem:[%s4 + $0x48] sm:$0xf]
  %v43 = vld [vmem:[%s4 + $0x4c] sm:$0xf]
  %v44 = vld [vmem:[%s4 + $0x50] sm:$0xf]
  %v45 = vld [vmem:[%s4 + $0x54] sm:$0xf]
  %v46 = vld [vmem:[%s4 + $0x58] sm:$0xf]
  %v47 = vld [vmem:[%s4 + $0x5c] sm:$0xf]
  %v48 = vld [vmem:[%s4 + $0x60] sm:$0xf]
  %v49 = vld [vmem:[%s4 + $0x64] sm:$0xf]
  %v50 = vld [vmem:[%s4 + $0x68] sm:$0xf]
  %v51 = vld [vmem:[%s4 + $0x6c] sm:$0xf]
  %v52 = vld [vmem:[%s4 + $0x70] sm:$0xf]
  %v53 = vld [vmem:[%s4 + $0x74] sm:$0xf]
  %v54 = vld [vmem:[%s4 + $0x78] sm:$0xf]
  %v55 = vld [vmem:[%s4 + $0x7c] sm:$0xf]
  %v56 = vld [vmem:[%s4 + $0x80] sm:$0xf]
  %v57 = vld [vmem:[%s4 + $0x84] sm:$0xf]
  %v58 = vld [vmem:[%s4 + $0x88] sm:$0xf]
  %v59 = vld [vmem:[%s4 + $0x8c] sm:$0xf]
  %v60 = vld [vmem:[%s4 + $0x90] sm:$0xf]
  %v61 = vld [vmem:[%s4 + $0x94] sm:$0xf]
  %v62 = vld [vmem:[%s4 + $0x98] sm:$0xf]
  %v63 = vld [vmem:[%s4 + $0x9c] sm:$0xf]
  %v64 = vld [vmem:[%s4 + $0xa0] sm:$0xf]
  %v65 = vld [vmem:[%s4 + $0xa4] sm:$0xf]
  %v66 = vld [vmem:[%s4 + $0xa8] sm:$0xf]
  %v67 = vld [vmem:[%s4 + $0xac] sm:$0xf]
  %v68 = vld [vmem:[%s4 + $0xb0] sm:$0xf]
  %v69 = vld [vmem:[%s4 + $0xb4] sm:$0xf]
  %v70 = vld [vmem:[%s4 + $0xb8] sm:$0xf]
  %v71 = vld [vmem:[%s4 + $0xbc] sm:$0xf]
  %v72 = vld [vmem:[%s4 + $0xc0] sm:$0xf]
  %v73 = vld [vmem:[%s4 + $0xc4] sm:$0xf]
  %v74 = vld [vmem:[%s4 + $0xc8] sm:$0xf]
  %v75 = vld [vmem:[%s4 + $0xcc] sm:$0xf]
  %v76 = vld [vmem:[%s4 + $0xd0] sm:$0xf]
  %v77 = vld [vmem:[%s4 + $0xd4] sm:$0xf]
  %v78 = vld [vmem:[%s4 + $0xd8] sm:$0xf]
  %v79 = vld [vmem:[%s4 + $0xdc] sm:$0xf]
  %v80 = vld [vmem:[%s4 + $0xe0] sm:$0xf]
  %v81 = vld [vmem:[%s4 + $0xe4] sm:$0xf]
  %v82 = vld [vmem:[%s4 + $0xe8] sm:$0xf]
  %v83 = vld [vmem:[%s4 + $0xec] sm:$0xf]
  %v84 = vld [vmem:[%s4 + $0xf0] sm:$0xf]
  %v85 = vld [vmem:[%s4 + $0xf4] sm:$0xf]
  %v86 = vld [vmem:[%s4 + $0xf8] sm:$0xf]
  %v87 = vld [vmem:[%s4 + $0xfc] sm:$0xf]
  %v88 = vld [vmem:[%s4 + $0x100] sm:$0xf]
  %v89 = vld [vmem:[%s4 + $0x104] sm:$0xf]
  %v90 = vld [vmem:[%s4 + $0x108] sm:$0xf]
  %v91 = vld [vmem:[%s4 + $0x10c] sm:$0xf]
  %v92 = vld [vmem:[%s4 + $0x110] sm:$0xf]
  %v93 = vld [vmem:[%s4 + $0x114] sm:$0xf]
  %v94 = vld [vmem:[%s4 + $0x118] sm:$0xf]
  %v95 = vld [vmem:[%s4 + $0x11c] sm:$0xf]
  %v96 = vld [vmem:[%s4 + $0x120] sm:$0xf]
  %v97 = vld [vmem:[%s4 + $0x124] sm:$0xf]
  %v98 = vld [vmem:[%s4 + $0x128] sm:$0xf]
  %v99 = vld [vmem:[%s4 + $0x12c] sm:$0xf]
  %v100 = vld [vmem:[%s4 + $0x130] sm:$0xf]
  %v101 = vld [vmem:[%s4 + $0x134] sm:$0xf]
  %v102 = vld [vmem:[%s4 + $0x138] sm:$0xf]
  %v103 = vld [vmem:[%s4 + $0x13c] sm:$0xf]
  %v104 = vld [vmem:[%s4 + $0x140] sm:$0xf]
  %v105 = vld [vmem:[%s4 + $0x144] sm:$0xf]
  %v106 = vld [vmem:[%s4 + $0x148] sm:$0xf]
  %v107 = vld [vmem:[%s4 + $0x14c] sm:$0xf]
  %v108 = vld [vmem:[%s4 + $0x150] sm:$0xf]
  %v109 = vld [vmem:[%s4 + $0x154] sm:$0xf]
  %v110 = vld [vmem:[%s4 + $0x158] sm:$0xf]
  %v111 = vld [vmem:[%s4 + $0x15c] sm:$0xf]
  %v112 = vld [vmem:[%s4 + $0x160] sm:$0xf]
  %v113 = vld [vmem:[%s4 + $0x164] sm:$0xf]
  %v114 = vld [vmem:[%s4 + $0x168] sm:$0xf]
  %v115 = vld [vmem:[%s4 + $0x16c] sm:$0xf]
  %v116 = vld [vmem:[%s4 + $0x170] sm:$0xf]
  %v117 = vld [vmem:[%s4 + $0x174] sm:$0xf]
  %v118 = vld [vmem:[%s4 + $0x178] sm:$0xf]
  %v119 = vld [vmem:[%s4 + $0x17c] sm:$0xf]
  %v120 = vld [vmem:[%s4 + $0x180] sm:$0xf]
  %v121 = vld [vmem:[%s4 + $0x184] sm:$0xf]
  %v122 = vld [vmem:[%s4 + $0x188] sm:$0xf]
  %v123 = vld [vmem:[%s4 + $0x18c] sm:$0xf]
  %v124 = vld [vmem:[%s0] sm:$0xff]
  %v125 = vld [vmem:[%s0 + $0x8] sm:$0xff]
  %v126 = vld [vmem:[%s0 + $0x10] sm:$0xff]
  %v127 = vld [vmem:[%s0 + $0x18] sm:$0xf]
  %v128 = vld [vmem:[%s0 + $0x1c] sm:$0xff]
  %v129 = vld [vmem:[%s0 + $0x24] sm:$0xff]
  %v130 = vld [vmem:[%s0 + $0x2c] sm:$0xff]
  %v131 = vld [vmem:[%s0 + $0x34] sm:$0xf]
  %v132 = vld [vmem:[%s0 + $0x38] sm:$0xff]
  %v133 = vld [vmem:[%s0 + $0x40] sm:$0xff]
  %v134 = vld [vmem:[%s0 + $0x48] sm:$0xff]
  %v135 = vld [vmem:[%s0 + $0x50] sm:$0xf]
  %v136 = vld [vmem:[%s0 + $0x54] sm:$0xff]
  %v137 = vld [vmem:[%s0 + $0x5c] sm:$0xff]
  %v138 = vld [vmem:[%s0 + $0x64] sm:$0xff]
  %v139 = vld [vmem:[%s0 + $0x6c] sm:$0xf]
  %v140 = vld [vmem:[%s0 + $0x70] sm:$0xff]
  %v141 = vld [vmem:[%s0 + $0x78] sm:$0xff]
  %v142 = vld [vmem:[%s0 + $0x80] sm:$0xff]
  %v143 = vld [vmem:[%s0 + $0x88] sm:$0xf]
  %v144 = vld [vmem:[%s0 + $0x8c] sm:$0xff]
  %v145 = vld [vmem:[%s0 + $0x94] sm:$0xff]
  %v146 = vld [vmem:[%s0 + $0x9c] sm:$0xff]
  %v147 = vld [vmem:[%s0 + $0xa4] sm:$0xf]
  %v148 = vld [vmem:[%s0 + $0xa8] sm:$0xff]
  %v149 = vld [vmem:[%s0 + $0xb0] sm:$0xff]
  %v150 = vld [vmem:[%s0 + $0xb8] sm:$0xff]
  %v151 = vld [vmem:[%s0 + $0xc0] sm:$0xf]
  %v180 = vunpack.c.l.b16 %v124
  %v181 = vunpack.c.h.b16 %v124
  %v182 = vunpack.c.l.b16 %v125
  %v183 = vunpack.c.h.b16 %v125
  %v184 = vunpack.c.l.b16 %v126
  %v185 = vunpack.c.h.b16 %v126
  %v186 = vunpack.c.l.b16 %v127
  %v187 = vunpack.c.l.b16 %v128
  %v188 = vunpack.c.h.b16 %v128
  %v189 = vunpack.c.l.b16 %v129
  %v190 = vunpack.c.h.b16 %v129
  %v191 = vunpack.c.l.b16 %v130
  %v192 = vunpack.c.h.b16 %v130
  %v193 = vunpack.c.l.b16 %v131
  %v194 = vunpack.c.l.b16 %v132
  %v195 = vunpack.c.h.b16 %v132
  %v196 = vunpack.c.l.b16 %v133
  %v197 = vunpack.c.h.b16 %v133
  %v198 = vunpack.c.l.b16 %v134
  %v199 = vunpack.c.h.b16 %v134
  %v200 = vunpack.c.l.b16 %v135
  %v201 = vunpack.c.l.b16 %v136
  %v202 = vunpack.c.h.b16 %v136
  %v203 = vunpack.c.l.b16 %v137
  %v204 = vunpack.c.h.b16 %v137
  %v205 = vunpack.c.l.b16 %v138
  %v206 = vunpack.c.h.b16 %v138
  %v207 = vunpack.c.l.b16 %v139
  %v208 = vunpack.c.l.b16 %v140
  %v209 = vunpack.c.h.b16 %v140
  %v210 = vunpack.c.l.b16 %v141
  %v211 = vunpack.c.h.b16 %v141
  %v212 = vunpack.c.l.b16 %v142
  %v213 = vunpack.c.h.b16 %v142
  %v214 = vunpack.c.l.b16 %v143
  %v215 = vunpack.c.l.b16 %v144
  %v216 = vunpack.c.h.b16 %v144
  %v217 = vunpack.c.l.b16 %v145
  %v218 = vunpack.c.h.b16 %v145
  %v219 = vunpack.c.l.b16 %v146
  %v220 = vunpack.c.h.b16 %v146
  %v221 = vunpack.c.l.b16 %v147
  %v222 = vunpack.c.l.b16 %v148
  %v223 = vunpack.c.h.b16 %v148
  %v224 = vunpack.c.l.b16 %v149
  %v225 = vunpack.c.h.b16 %v149
  %v226 = vunpack.c.l.b16 %v150
  %v227 = vunpack.c.h.b16 %v150
  %v228 = vunpack.c.l.b16 %v151
  %v229 = vpack.c.b16 %v187, %v180
  %v230 = vpack.c.b16 %v188, %v181
  %v231 = vpack.c.b16 %v189, %v182
  %v232 = vpack.c.b16 %v190, %v183
  %v233 = vpack.c.b16 %v191, %v184
  %v234 = vpack.c.b16 %v192, %v185
  %v235 = vpack.c.b16 %v193, %v186
  %v236 = vpack.c.b16 %v201, %v194
  %v237 = vpack.c.b16 %v202, %v195
  %v238 = vpack.c.b16 %v203, %v196
  %v239 = vpack.c.b16 %v204, %v197
  %v240 = vpack.c.b16 %v205, %v198
  %v241 = vpack.c.b16 %v206, %v199
  %v242 = vpack.c.b16 %v207, %v200
  %v243 = vpack.c.b16 %v215, %v208
  %v244 = vpack.c.b16 %v216, %v209
  %v245 = vpack.c.b16 %v217, %v210
  %v246 = vpack.c.b16 %v218, %v211
  %v247 = vpack.c.b16 %v219, %v212
  %v248 = vpack.c.b16 %v220, %v213
  %v249 = vpack.c.b16 %v221, %v214
  %v250 = vpack.c.b16 %v222, %v222
  %v251 = vpack.c.b16 %v223, %v223
  %v252 = vpack.c.b16 %v224, %v224
  %v253 = vpack.c.b16 %v225, %v225
  %v254 = vpack.c.b16 %v226, %v226
  %v255 = vpack.c.b16 %v227, %v227
  %v256 = vpack.c.b16 %v228, %v228
  %v381 = vunpack.c.l.b16 %v24
  %v382 = vunpack.c.l.b16 %v25
  %v383 = vunpack.c.l.b16 %v26
  %v384 = vunpack.c.l.b16 %v27
  %v385 = vunpack.c.l.b16 %v28
  %v386 = vunpack.c.l.b16 %v29
  %v387 = vunpack.c.l.b16 %v30
  %v388 = vunpack.c.l.b16 %v31
  %v389 = vunpack.c.l.b16 %v32
  %v390 = vunpack.c.l.b16 %v33
  %v391 = vunpack.c.l.b16 %v34
  %v392 = vunpack.c.l.b16 %v35
  %v393 = vunpack.c.l.b16 %v36
  %v394 = vunpack.c.l.b16 %v37
  %v395 = vunpack.c.l.b16 %v38
  %v396 = vunpack.c.l.b16 %v39
  %v397 = vunpack.c.l.b16 %v40
  %v398 = vunpack.c.l.b16 %v41
  %v399 = vunpack.c.l.b16 %v42
  %v400 = vunpack.c.l.b16 %v43
  %v401 = vunpack.c.l.b16 %v44
  %v402 = vunpack.c.l.b16 %v45
  %v403 = vunpack.c.l.b16 %v46
  %v404 = vunpack.c.l.b16 %v47
  %v405 = vunpack.c.l.b16 %v48
  %v406 = vunpack.c.l.b16 %v49
  %v407 = vunpack.c.l.b16 %v50
  %v408 = vunpack.c.l.b16 %v51
  %v409 = vunpack.c.l.b16 %v52
  %v410 = vunpack.c.l.b16 %v53
  %v411 = vunpack.c.l.b16 %v54
  %v412 = vunpack.c.l.b16 %v55
  %v413 = vunpack.c.l.b16 %v56
  %v414 = vunpack.c.l.b16 %v57
  %v415 = vunpack.c.l.b16 %v58
  %v416 = vunpack.c.l.b16 %v59
  %v417 = vunpack.c.l.b16 %v60
  %v418 = vunpack.c.l.b16 %v61
  %v419 = vunpack.c.l.b16 %v62
  %v420 = vunpack.c.l.b16 %v63
  %v421 = vunpack.c.l.b16 %v64
  %v422 = vunpack.c.l.b16 %v65
  %v423 = vunpack.c.l.b16 %v66
  %v424 = vunpack.c.l.b16 %v67
  %v425 = vunpack.c.l.b16 %v68
  %v426 = vunpack.c.l.b16 %v69
  %v427 = vunpack.c.l.b16 %v70
  %v428 = vunpack.c.l.b16 %v71
  %v429 = vunpack.c.l.b16 %v72
  %v430 = vunpack.c.l.b16 %v73
  %v431 = vunpack.c.l.b16 %v74
  %v432 = vunpack.c.l.b16 %v75
  %v433 = vunpack.c.l.b16 %v76
  %v434 = vunpack.c.l.b16 %v77
  %v435 = vunpack.c.l.b16 %v78
  %v436 = vunpack.c.l.b16 %v79
  %v437 = vunpack.c.l.b16 %v80
  %v438 = vunpack.c.l.b16 %v81
  %v439 = vunpack.c.l.b16 %v82
  %v440 = vunpack.c.l.b16 %v83
  %v441 = vunpack.c.l.b16 %v84
  %v442 = vunpack.c.l.b16 %v85
  %v443 = vunpack.c.l.b16 %v86
  %v444 = vunpack.c.l.b16 %v87
  %v445 = vunpack.c.l.b16 %v88
  %v446 = vunpack.c.l.b16 %v89
  %v447 = vunpack.c.l.b16 %v90
  %v448 = vunpack.c.l.b16 %v91
  %v449 = vunpack.c.l.b16 %v92
  %v450 = vunpack.c.l.b16 %v93
  %v451 = vunpack.c.l.b16 %v94
  %v452 = vunpack.c.l.b16 %v95
  %v453 = vunpack.c.l.b16 %v96
  %v454 = vunpack.c.l.b16 %v97
  %v455 = vunpack.c.l.b16 %v98
  %v456 = vunpack.c.l.b16 %v99
  %v457 = vunpack.c.l.b16 %v100
  %v458 = vunpack.c.l.b16 %v101
  %v459 = vunpack.c.l.b16 %v102
  %v460 = vunpack.c.l.b16 %v103
  %v461 = vunpack.c.l.b16 %v104
  %v462 = vunpack.c.l.b16 %v105
  %v463 = vunpack.c.l.b16 %v106
  %v464 = vunpack.c.l.b16 %v107
  %v465 = vunpack.c.l.b16 %v108
  %v466 = vunpack.c.l.b16 %v109
  %v467 = vunpack.c.l.b16 %v110
  %v468 = vunpack.c.l.b16 %v111
  %v469 = vunpack.c.l.b16 %v112
  %v470 = vunpack.c.l.b16 %v113
  %v471 = vunpack.c.l.b16 %v114
  %v472 = vunpack.c.l.b16 %v115
  %v473 = vunpack.c.l.b16 %v116
  %v474 = vunpack.c.l.b16 %v117
  %v475 = vunpack.c.l.b16 %v118
  %v476 = vunpack.c.l.b16 %v119
  %v477 = vunpack.c.l.b16 %v120
  %v478 = vunpack.c.l.b16 %v121
  %v479 = vunpack.c.l.b16 %v122
  %v480 = vunpack.c.l.b16 %v123
  %v481 = vpack.c.b16 %v382, %v381
  %v482 = vpack.c.b16 %v384, %v383
  %v483 = vpack.c.b16 %v386, %v385
  %v484 = vpack.c.b16 %v388, %v387
  %v485 = vpack.c.b16 %v390, %v389
  %v486 = vpack.c.b16 %v392, %v391
  %v487 = vpack.c.b16 %v394, %v393
  %v488 = vpack.c.b16 %v396, %v395
  %v489 = vpack.c.b16 %v398, %v397
  %v490 = vpack.c.b16 %v400, %v399
  %v491 = vpack.c.b16 %v402, %v401
  %v492 = vpack.c.b16 %v404, %v403
  %v493 = vpack.c.b16 %v406, %v405
  %v494 = vpack.c.b16 %v408, %v407
  %v495 = vpack.c.b16 %v410, %v409
  %v496 = vpack.c.b16 %v412, %v411
  %v497 = vpack.c.b16 %v414, %v413
  %v498 = vpack.c.b16 %v416, %v415
  %v499 = vpack.c.b16 %v418, %v417
  %v500 = vpack.c.b16 %v420, %v419
  %v501 = vpack.c.b16 %v422, %v421
  %v502 = vpack.c.b16 %v424, %v423
  %v503 = vpack.c.b16 %v426, %v425
  %v504 = vpack.c.b16 %v428, %v427
  %v505 = vpack.c.b16 %v430, %v429
  %v506 = vpack.c.b16 %v432, %v431
  %v507 = vpack.c.b16 %v434, %v433
  %v508 = vpack.c.b16 %v436, %v435
  %v509 = vpack.c.b16 %v438, %v437
  %v510 = vpack.c.b16 %v440, %v439
  %v511 = vpack.c.b16 %v442, %v441
  %v512 = vpack.c.b16 %v444, %v443
  %v513 = vpack.c.b16 %v446, %v445
  %v514 = vpack.c.b16 %v448, %v447
  %v515 = vpack.c.b16 %v450, %v449
  %v516 = vpack.c.b16 %v452, %v451
  %v517 = vpack.c.b16 %v454, %v453
  %v518 = vpack.c.b16 %v456, %v455
  %v519 = vpack.c.b16 %v458, %v457
  %v520 = vpack.c.b16 %v460, %v459
  %v521 = vpack.c.b16 %v462, %v461
  %v522 = vpack.c.b16 %v464, %v463
  %v523 = vpack.c.b16 %v466, %v465
  %v524 = vpack.c.b16 %v468, %v467
  %v525 = vpack.c.b16 %v470, %v469
  %v526 = vpack.c.b16 %v472, %v471
  %v527 = vpack.c.b16 %v474, %v473
  %v528 = vpack.c.b16 %v476, %v475
  %v529 = vpack.c.b16 %v478, %v477
  %v530 = vpack.c.b16 %v480, %v479
  %vm581 = vcmask 261120
  %v583 = vsel %vm581, %v235, 0
  %v586 = vsel %vm581, %v242, 0
  %v589 = vsel %vm581, %v249, 0
  %v592 = vsel %vm581, %v256, 0
  %594 = vmatpush.bf16.msra.mxu0 %v488
  %595 = vmatpush.bf16.msra.mxu0 %v487
  %596 = vmatpush.bf16.msra.mxu0 %v486
  %597 = vmatpush.bf16.msra.mxu0 %v485
  %598 = vmatpush.bf16.msra.mxu0 %v484
  %599 = vmatpush.bf16.msra.mxu0 %v483
  %600 = vmatpush.bf16.msra.mxu0 %v482
  %601 = vmatpush.bf16.msra.mxu0 %v481
  %602 = vmatmul.bf16.gmra.mxu0 %v229
  %v603 = vpop.f32.mrf.mxu0
  %v604 = vadd.f32 0.0, %v603
  %v605 = vpop.f32.mrf.mxu0
  %v606 = vadd.f32 0.0, %v605
  %607 = vmatmul.bf16.gmra.mxu0 %v236
  %v608 = vpop.f32.mrf.mxu0
  %v609 = vadd.f32 0.0, %v608
  %v610 = vpop.f32.mrf.mxu0
  %v611 = vadd.f32 0.0, %v610
  %612 = vmatmul.bf16.gmra.mxu0 %v243
  %v613 = vpop.f32.mrf.mxu0
  %v614 = vadd.f32 0.0, %v613
  %v615 = vpop.f32.mrf.mxu0
  %v616 = vadd.f32 0.0, %v615
  %617 = vmatmul.bf16.gmra.mxu0 %v250
  %v618 = vpop.f32.mrf.mxu0
  %v619 = vadd.f32 0.0, %v618
  %v620 = vpop.f32.mrf.mxu0
  %621 = vdwg.mxu0
  %622 = vmatpush.bf16.msra.mxu0 %v496
  %623 = vmatpush.bf16.msra.mxu0 %v495
  %624 = vmatpush.bf16.msra.mxu0 %v494
  %625 = vmatpush.bf16.msra.mxu0 %v493
  %626 = vmatpush.bf16.msra.mxu0 %v492
  %627 = vmatpush.bf16.msra.mxu0 %v491
  %628 = vmatpush.bf16.msra.mxu0 %v490
  %629 = vmatpush.bf16.msra.mxu0 %v489
  %630 = vmatmul.bf16.gmra.mxu0 %v230
  %v631 = vpop.f32.mrf.mxu0
  %v632 = vadd.f32 %v604, %v631
  %v633 = vpop.f32.mrf.mxu0
  %v634 = vadd.f32 %v606, %v633
  %635 = vmatmul.bf16.gmra.mxu0 %v237
  %v636 = vpop.f32.mrf.mxu0
  %v637 = vadd.f32 %v609, %v636
  %v638 = vpop.f32.mrf.mxu0
  %v639 = vadd.f32 %v611, %v638
  %640 = vmatmul.bf16.gmra.mxu0 %v244
  %v641 = vpop.f32.mrf.mxu0
  %v642 = vadd.f32 %v614, %v641
  %v643 = vpop.f32.mrf.mxu0
  %v644 = vadd.f32 %v616, %v643
  %645 = vmatmul.bf16.gmra.mxu0 %v251
  %v646 = vpop.f32.mrf.mxu0
  %v647 = vadd.f32 %v619, %v646
  %v648 = vpop.f32.mrf.mxu0
  %649 = vdwg.mxu0
  %650 = vmatpush.bf16.msra.mxu0 %v504
  %651 = vmatpush.bf16.msra.mxu0 %v503
  %652 = vmatpush.bf16.msra.mxu0 %v502
  %653 = vmatpush.bf16.msra.mxu0 %v501
  %654 = vmatpush.bf16.msra.mxu0 %v500
  %655 = vmatpush.bf16.msra.mxu0 %v499
  %656 = vmatpush.bf16.msra.mxu0 %v498
  %657 = vmatpush.bf16.msra.mxu0 %v497
  %658 = vmatmul.bf16.gmra.mxu0 %v231
  %v659 = vpop.f32.mrf.mxu0
  %v660 = vadd.f32 %v632, %v659
  %v661 = vpop.f32.mrf.mxu0
  %v662 = vadd.f32 %v634, %v661
  %663 = vmatmul.bf16.gmra.mxu0 %v238
  %v664 = vpop.f32.mrf.mxu0
  %v665 = vadd.f32 %v637, %v664
  %v666 = vpop.f32.mrf.mxu0
  %v667 = vadd.f32 %v639, %v666
  %668 = vmatmul.bf16.gmra.mxu0 %v245
  %v669 = vpop.f32.mrf.mxu0
  %v670 = vadd.f32 %v642, %v669
  %v671 = vpop.f32.mrf.mxu0
  %v672 = vadd.f32 %v644, %v671
  %673 = vmatmul.bf16.gmra.mxu0 %v252
  %v674 = vpop.f32.mrf.mxu0
  %v675 = vadd.f32 %v647, %v674
  %v676 = vpop.f32.mrf.mxu0
  %677 = vdwg.mxu0
  %678 = vmatpush.bf16.msra.mxu0 %v512
  %679 = vmatpush.bf16.msra.mxu0 %v511
  %680 = vmatpush.bf16.msra.mxu0 %v510
  %681 = vmatpush.bf16.msra.mxu0 %v509
  %682 = vmatpush.bf16.msra.mxu0 %v508
  %683 = vmatpush.bf16.msra.mxu0 %v507
  %684 = vmatpush.bf16.msra.mxu0 %v506
  %685 = vmatpush.bf16.msra.mxu0 %v505
  %686 = vmatmul.bf16.gmra.mxu0 %v232
  %v687 = vpop.f32.mrf.mxu0
  %v688 = vadd.f32 %v660, %v687
  %v689 = vpop.f32.mrf.mxu0
  %v690 = vadd.f32 %v662, %v689
  %691 = vmatmul.bf16.gmra.mxu0 %v239
  %v692 = vpop.f32.mrf.mxu0
  %v693 = vadd.f32 %v665, %v692
  %v694 = vpop.f32.mrf.mxu0
  %v695 = vadd.f32 %v667, %v694
  %696 = vmatmul.bf16.gmra.mxu0 %v246
  %v697 = vpop.f32.mrf.mxu0
  %v698 = vadd.f32 %v670, %v697
  %v699 = vpop.f32.mrf.mxu0
  %v700 = vadd.f32 %v672, %v699
  %701 = vmatmul.bf16.gmra.mxu0 %v253
  %v702 = vpop.f32.mrf.mxu0
  %v703 = vadd.f32 %v675, %v702
  %v704 = vpop.f32.mrf.mxu0
  %705 = vdwg.mxu0
  %706 = vmatpush.bf16.msra.mxu0 %v520
  %707 = vmatpush.bf16.msra.mxu0 %v519
  %708 = vmatpush.bf16.msra.mxu0 %v518
  %709 = vmatpush.bf16.msra.mxu0 %v517
  %710 = vmatpush.bf16.msra.mxu0 %v516
  %711 = vmatpush.bf16.msra.mxu0 %v515
  %712 = vmatpush.bf16.msra.mxu0 %v514
  %713 = vmatpush.bf16.msra.mxu0 %v513
  %714 = vmatmul.bf16.gmra.mxu0 %v233
  %v715 = vpop.f32.mrf.mxu0
  %v716 = vadd.f32 %v688, %v715
  %v717 = vpop.f32.mrf.mxu0
  %v718 = vadd.f32 %v690, %v717
  %719 = vmatmul.bf16.gmra.mxu0 %v240
  %v720 = vpop.f32.mrf.mxu0
  %v721 = vadd.f32 %v693, %v720
  %v722 = vpop.f32.mrf.mxu0
  %v723 = vadd.f32 %v695, %v722
  %724 = vmatmul.bf16.gmra.mxu0 %v247
  %v725 = vpop.f32.mrf.mxu0
  %v726 = vadd.f32 %v698, %v725
  %v727 = vpop.f32.mrf.mxu0
  %v728 = vadd.f32 %v700, %v727
  %729 = vmatmul.bf16.gmra.mxu0 %v254
  %v730 = vpop.f32.mrf.mxu0
  %v731 = vadd.f32 %v703, %v730
  %v732 = vpop.f32.mrf.mxu0
  %733 = vdwg.mxu0
  %734 = vmatpush.bf16.msra.mxu0 %v528
  %735 = vmatpush.bf16.msra.mxu0 %v527
  %736 = vmatpush.bf16.msra.mxu0 %v526
  %737 = vmatpush.bf16.msra.mxu0 %v525
  %738 = vmatpush.bf16.msra.mxu0 %v524
  %739 = vmatpush.bf16.msra.mxu0 %v523
  %740 = vmatpush.bf16.msra.mxu0 %v522
  %741 = vmatpush.bf16.msra.mxu0 %v521
  %742 = vmatmul.bf16.gmra.mxu0 %v234
  %v743 = vpop.f32.mrf.mxu0
  %v744 = vadd.f32 %v716, %v743
  %v745 = vpop.f32.mrf.mxu0
  %v746 = vadd.f32 %v718, %v745
  %747 = vmatmul.bf16.gmra.mxu0 %v241
  %v748 = vpop.f32.mrf.mxu0
  %v749 = vadd.f32 %v721, %v748
  %v750 = vpop.f32.mrf.mxu0
  %v751 = vadd.f32 %v723, %v750
  %752 = vmatmul.bf16.gmra.mxu0 %v248
  %v753 = vpop.f32.mrf.mxu0
  %v754 = vadd.f32 %v726, %v753
  %v755 = vpop.f32.mrf.mxu0
  %v756 = vadd.f32 %v728, %v755
  %757 = vmatmul.bf16.gmra.mxu0 %v255
  %v758 = vpop.f32.mrf.mxu0
  %v759 = vadd.f32 %v731, %v758
  %v760 = vpop.f32.mrf.mxu0
  %761 = vdwg.mxu0
  %762 = vmatpush.bf16.msra.mxu0 0
  %763 = vmatpush.bf16.msra.mxu0 0
  %764 = vmatpush.bf16.msra.mxu0 0
  %765 = vmatpush.bf16.msra.mxu0 0
  %766 = vmatpush.bf16.msra.mxu0 0
  %767 = vmatpush.bf16.msra.mxu0 0
  %768 = vmatpush.bf16.msra.mxu0 %v530
  %769 = vmatpush.bf16.msra.mxu0 %v529
  %770 = vmatmul.bf16.gmra.mxu0 %v583
  %v771 = vpop.f32.mrf.mxu0
  %v772 = vadd.f32 %v744, %v771
  %v773 = vpop.f32.mrf.mxu0
  %v774 = vadd.f32 %v746, %v773
  %775 = vmatmul.bf16.gmra.mxu0 %v586
  %v776 = vpop.f32.mrf.mxu0
  %v777 = vadd.f32 %v749, %v776
  %v778 = vpop.f32.mrf.mxu0
  %v779 = vadd.f32 %v751, %v778
  %780 = vmatmul.bf16.gmra.mxu0 %v589
  %v781 = vpop.f32.mrf.mxu0
  %v782 = vadd.f32 %v754, %v781
  %v783 = vpop.f32.mrf.mxu0
  %v784 = vadd.f32 %v756, %v783
  %785 = vmatmul.bf16.gmra.mxu0 %v592
  %v786 = vpop.f32.mrf.mxu0
  %v787 = vadd.f32 %v759, %v786
  %v788 = vpop.f32.mrf.mxu0
  %789 = vdwg.mxu0
  %v790 = vld [vmem:[%s1] sm:$0xff]
  %v791 = vld [vmem:[%s1 + $0x8] sm:$0xff]
  %v792 = vld [vmem:[%s1 + $0x10] sm:$0xff]
  %v793 = vld [vmem:[%s1 + $0x18] sm:$0xf]
  %v794 = vld [vmem:[%s1 + $0x1c] sm:$0xff]
  %v795 = vld [vmem:[%s1 + $0x24] sm:$0xff]
  %v796 = vld [vmem:[%s1 + $0x2c] sm:$0xff]
  %v797 = vld [vmem:[%s1 + $0x34] sm:$0xf]
  %v798 = vld [vmem:[%s1 + $0x38] sm:$0xff]
  %v799 = vld [vmem:[%s1 + $0x40] sm:$0xff]
  %v800 = vld [vmem:[%s1 + $0x48] sm:$0xff]
  %v801 = vld [vmem:[%s1 + $0x50] sm:$0xf]
  %v802 = vld [vmem:[%s1 + $0x54] sm:$0xff]
  %v803 = vld [vmem:[%s1 + $0x5c] sm:$0xff]
  %v804 = vld [vmem:[%s1 + $0x64] sm:$0xff]
  %v805 = vld [vmem:[%s1 + $0x6c] sm:$0xf]
  %v806 = vld [vmem:[%s1 + $0x70] sm:$0xff]
  %v807 = vld [vmem:[%s1 + $0x78] sm:$0xff]
  %v808 = vld [vmem:[%s1 + $0x80] sm:$0xff]
  %v809 = vld [vmem:[%s1 + $0x88] sm:$0xf]
  %v810 = vld [vmem:[%s1 + $0x8c] sm:$0xff]
  %v811 = vld [vmem:[%s1 + $0x94] sm:$0xff]
  %v812 = vld [vmem:[%s1 + $0x9c] sm:$0xff]
  %v813 = vld [vmem:[%s1 + $0xa4] sm:$0xf]
  %v814 = vld [vmem:[%s1 + $0xa8] sm:$0xff]
  %v815 = vld [vmem:[%s1 + $0xb0] sm:$0xff]
  %v816 = vld [vmem:[%s1 + $0xb8] sm:$0xff]
  %v817 = vld [vmem:[%s1 + $0xc0] sm:$0xf]
  %v846 = vunpack.c.l.b16 %v790
  %v847 = vunpack.c.h.b16 %v790
  %v848 = vunpack.c.l.b16 %v791
  %v849 = vunpack.c.h.b16 %v791
  %v850 = vunpack.c.l.b16 %v792
  %v851 = vunpack.c.h.b16 %v792
  %v852 = vunpack.c.l.b16 %v793
  %v853 = vunpack.c.l.b16 %v794
  %v854 = vunpack.c.h.b16 %v794
  %v855 = vunpack.c.l.b16 %v795
  %v856 = vunpack.c.h.b16 %v795
  %v857 = vunpack.c.l.b16 %v796
  %v858 = vunpack.c.h.b16 %v796
  %v859 = vunpack.c.l.b16 %v797
  %v860 = vunpack.c.l.b16 %v798
  %v861 = vunpack.c.h.b16 %v798
  %v862 = vunpack.c.l.b16 %v799
  %v863 = vunpack.c.h.b16 %v799
  %v864 = vunpack.c.l.b16 %v800
  %v865 = vunpack.c.h.b16 %v800
  %v866 = vunpack.c.l.b16 %v801
  %v867 = vunpack.c.l.b16 %v802
  %v868 = vunpack.c.h.b16 %v802
  %v869 = vunpack.c.l.b16 %v803
  %v870 = vunpack.c.h.b16 %v803
  %v871 = vunpack.c.l.b16 %v804
  %v872 = vunpack.c.h.b16 %v804
  %v873 = vunpack.c.l.b16 %v805
  %v874 = vunpack.c.l.b16 %v806
  %v875 = vunpack.c.h.b16 %v806
  %v876 = vunpack.c.l.b16 %v807
  %v877 = vunpack.c.h.b16 %v807
  %v878 = vunpack.c.l.b16 %v808
  %v879 = vunpack.c.h.b16 %v808
  %v880 = vunpack.c.l.b16 %v809
  %v881 = vunpack.c.l.b16 %v810
  %v882 = vunpack.c.h.b16 %v810
  %v883 = vunpack.c.l.b16 %v811
  %v884 = vunpack.c.h.b16 %v811
  %v885 = vunpack.c.l.b16 %v812
  %v886 = vunpack.c.h.b16 %v812
  %v887 = vunpack.c.l.b16 %v813
  %v888 = vunpack.c.l.b16 %v814
  %v889 = vunpack.c.h.b16 %v814
  %v890 = vunpack.c.l.b16 %v815
  %v891 = vunpack.c.h.b16 %v815
  %v892 = vunpack.c.l.b16 %v816
  %v893 = vunpack.c.h.b16 %v816
  %v894 = vunpack.c.l.b16 %v817
  %v895 = vpack.c.b16 %v853, %v846
  %v896 = vpack.c.b16 %v854, %v847
  %v897 = vpack.c.b16 %v855, %v848
  %v898 = vpack.c.b16 %v856, %v849
  %v899 = vpack.c.b16 %v857, %v850
  %v900 = vpack.c.b16 %v858, %v851
  %v901 = vpack.c.b16 %v859, %v852
  %v902 = vpack.c.b16 %v867, %v860
  %v903 = vpack.c.b16 %v868, %v861
  %v904 = vpack.c.b16 %v869, %v862
  %v905 = vpack.c.b16 %v870, %v863
  %v906 = vpack.c.b16 %v871, %v864
  %v907 = vpack.c.b16 %v872, %v865
  %v908 = vpack.c.b16 %v873, %v866
  %v909 = vpack.c.b16 %v881, %v874
  %v910 = vpack.c.b16 %v882, %v875
  %v911 = vpack.c.b16 %v883, %v876
  %v912 = vpack.c.b16 %v884, %v877
  %v913 = vpack.c.b16 %v885, %v878
  %v914 = vpack.c.b16 %v886, %v879
  %v915 = vpack.c.b16 %v887, %v880
  %v916 = vpack.c.b16 %v888, %v888
  %v917 = vpack.c.b16 %v889, %v889
  %v918 = vpack.c.b16 %v890, %v890
  %v919 = vpack.c.b16 %v891, %v891
  %v920 = vpack.c.b16 %v892, %v892
  %v921 = vpack.c.b16 %v893, %v893
  %v922 = vpack.c.b16 %v894, %v894
  %v948 = vsel %vm581, %v901, 0
  %v951 = vsel %vm581, %v908, 0
  %v954 = vsel %vm581, %v915, 0
  %v957 = vsel %vm581, %v922, 0
  %959 = vmatpush.bf16.msra.mxu0 %v488
  %960 = vmatpush.bf16.msra.mxu0 %v487
  %961 = vmatpush.bf16.msra.mxu0 %v486
  %962 = vmatpush.bf16.msra.mxu0 %v485
  %963 = vmatpush.bf16.msra.mxu0 %v484
  %964 = vmatpush.bf16.msra.mxu0 %v483
  %965 = vmatpush.bf16.msra.mxu0 %v482
  %966 = vmatpush.bf16.msra.mxu0 %v481
  %967 = vmatmul.bf16.gmra.mxu0 %v895
  %v968 = vpop.f32.mrf.mxu0
  %v969 = vadd.f32 0.0, %v968
  %v970 = vpop.f32.mrf.mxu0
  %v971 = vadd.f32 0.0, %v970
  %972 = vmatmul.bf16.gmra.mxu0 %v902
  %v973 = vpop.f32.mrf.mxu0
  %v974 = vadd.f32 0.0, %v973
  %v975 = vpop.f32.mrf.mxu0
  %v976 = vadd.f32 0.0, %v975
  %977 = vmatmul.bf16.gmra.mxu0 %v909
  %v978 = vpop.f32.mrf.mxu0
  %v979 = vadd.f32 0.0, %v978
  %v980 = vpop.f32.mrf.mxu0
  %v981 = vadd.f32 0.0, %v980
  %982 = vmatmul.bf16.gmra.mxu0 %v916
  %v983 = vpop.f32.mrf.mxu0
  %v984 = vadd.f32 0.0, %v983
  %v985 = vpop.f32.mrf.mxu0
  %986 = vdwg.mxu0
  %987 = vmatpush.bf16.msra.mxu0 %v496
  %988 = vmatpush.bf16.msra.mxu0 %v495
  %989 = vmatpush.bf16.msra.mxu0 %v494
  %990 = vmatpush.bf16.msra.mxu0 %v493
  %991 = vmatpush.bf16.msra.mxu0 %v492
  %992 = vmatpush.bf16.msra.mxu0 %v491
  %993 = vmatpush.bf16.msra.mxu0 %v490
  %994 = vmatpush.bf16.msra.mxu0 %v489
  %995 = vmatmul.bf16.gmra.mxu0 %v896
  %v996 = vpop.f32.mrf.mxu0
  %v997 = vadd.f32 %v969, %v996
  %v998 = vpop.f32.mrf.mxu0
  %v999 = vadd.f32 %v971, %v998
  %1000 = vmatmul.bf16.gmra.mxu0 %v903
  %v1001 = vpop.f32.mrf.mxu0
  %v1002 = vadd.f32 %v974, %v1001
  %v1003 = vpop.f32.mrf.mxu0
  %v1004 = vadd.f32 %v976, %v1003
  %1005 = vmatmul.bf16.gmra.mxu0 %v910
  %v1006 = vpop.f32.mrf.mxu0
  %v1007 = vadd.f32 %v979, %v1006
  %v1008 = vpop.f32.mrf.mxu0
  %v1009 = vadd.f32 %v981, %v1008
  %1010 = vmatmul.bf16.gmra.mxu0 %v917
  %v1011 = vpop.f32.mrf.mxu0
  %v1012 = vadd.f32 %v984, %v1011
  %v1013 = vpop.f32.mrf.mxu0
  %1014 = vdwg.mxu0
  %1015 = vmatpush.bf16.msra.mxu0 %v504
  %1016 = vmatpush.bf16.msra.mxu0 %v503
  %1017 = vmatpush.bf16.msra.mxu0 %v502
  %1018 = vmatpush.bf16.msra.mxu0 %v501
  %1019 = vmatpush.bf16.msra.mxu0 %v500
  %1020 = vmatpush.bf16.msra.mxu0 %v499
  %1021 = vmatpush.bf16.msra.mxu0 %v498
  %1022 = vmatpush.bf16.msra.mxu0 %v497
  %1023 = vmatmul.bf16.gmra.mxu0 %v897
  %v1024 = vpop.f32.mrf.mxu0
  %v1025 = vadd.f32 %v997, %v1024
  %v1026 = vpop.f32.mrf.mxu0
  %v1027 = vadd.f32 %v999, %v1026
  %1028 = vmatmul.bf16.gmra.mxu0 %v904
  %v1029 = vpop.f32.mrf.mxu0
  %v1030 = vadd.f32 %v1002, %v1029
  %v1031 = vpop.f32.mrf.mxu0
  %v1032 = vadd.f32 %v1004, %v1031
  %1033 = vmatmul.bf16.gmra.mxu0 %v911
  %v1034 = vpop.f32.mrf.mxu0
  %v1035 = vadd.f32 %v1007, %v1034
  %v1036 = vpop.f32.mrf.mxu0
  %v1037 = vadd.f32 %v1009, %v1036
  %1038 = vmatmul.bf16.gmra.mxu0 %v918
  %v1039 = vpop.f32.mrf.mxu0
  %v1040 = vadd.f32 %v1012, %v1039
  %v1041 = vpop.f32.mrf.mxu0
  %1042 = vdwg.mxu0
  %1043 = vmatpush.bf16.msra.mxu0 %v512
  %1044 = vmatpush.bf16.msra.mxu0 %v511
  %1045 = vmatpush.bf16.msra.mxu0 %v510
  %1046 = vmatpush.bf16.msra.mxu0 %v509
  %1047 = vmatpush.bf16.msra.mxu0 %v508
  %1048 = vmatpush.bf16.msra.mxu0 %v507
  %1049 = vmatpush.bf16.msra.mxu0 %v506
  %1050 = vmatpush.bf16.msra.mxu0 %v505
  %1051 = vmatmul.bf16.gmra.mxu0 %v898
  %v1052 = vpop.f32.mrf.mxu0
  %v1053 = vadd.f32 %v1025, %v1052
  %v1054 = vpop.f32.mrf.mxu0
  %v1055 = vadd.f32 %v1027, %v1054
  %1056 = vmatmul.bf16.gmra.mxu0 %v905
  %v1057 = vpop.f32.mrf.mxu0
  %v1058 = vadd.f32 %v1030, %v1057
  %v1059 = vpop.f32.mrf.mxu0
  %v1060 = vadd.f32 %v1032, %v1059
  %1061 = vmatmul.bf16.gmra.mxu0 %v912
  %v1062 = vpop.f32.mrf.mxu0
  %v1063 = vadd.f32 %v1035, %v1062
  %v1064 = vpop.f32.mrf.mxu0
  %v1065 = vadd.f32 %v1037, %v1064
  %1066 = vmatmul.bf16.gmra.mxu0 %v919
  %v1067 = vpop.f32.mrf.mxu0
  %v1068 = vadd.f32 %v1040, %v1067
  %v1069 = vpop.f32.mrf.mxu0
  %1070 = vdwg.mxu0
  %1071 = vmatpush.bf16.msra.mxu0 %v520
  %1072 = vmatpush.bf16.msra.mxu0 %v519
  %1073 = vmatpush.bf16.msra.mxu0 %v518
  %1074 = vmatpush.bf16.msra.mxu0 %v517
  %1075 = vmatpush.bf16.msra.mxu0 %v516
  %1076 = vmatpush.bf16.msra.mxu0 %v515
  %1077 = vmatpush.bf16.msra.mxu0 %v514
  %1078 = vmatpush.bf16.msra.mxu0 %v513
  %1079 = vmatmul.bf16.gmra.mxu0 %v899
  %v1080 = vpop.f32.mrf.mxu0
  %v1081 = vadd.f32 %v1053, %v1080
  %v1082 = vpop.f32.mrf.mxu0
  %v1083 = vadd.f32 %v1055, %v1082
  %1084 = vmatmul.bf16.gmra.mxu0 %v906
  %v1085 = vpop.f32.mrf.mxu0
  %v1086 = vadd.f32 %v1058, %v1085
  %v1087 = vpop.f32.mrf.mxu0
  %v1088 = vadd.f32 %v1060, %v1087
  %1089 = vmatmul.bf16.gmra.mxu0 %v913
  %v1090 = vpop.f32.mrf.mxu0
  %v1091 = vadd.f32 %v1063, %v1090
  %v1092 = vpop.f32.mrf.mxu0
  %v1093 = vadd.f32 %v1065, %v1092
  %1094 = vmatmul.bf16.gmra.mxu0 %v920
  %v1095 = vpop.f32.mrf.mxu0
  %v1096 = vadd.f32 %v1068, %v1095
  %v1097 = vpop.f32.mrf.mxu0
  %1098 = vdwg.mxu0
  %1099 = vmatpush.bf16.msra.mxu0 %v528
  %1100 = vmatpush.bf16.msra.mxu0 %v527
  %1101 = vmatpush.bf16.msra.mxu0 %v526
  %1102 = vmatpush.bf16.msra.mxu0 %v525
  %1103 = vmatpush.bf16.msra.mxu0 %v524
  %1104 = vmatpush.bf16.msra.mxu0 %v523
  %1105 = vmatpush.bf16.msra.mxu0 %v522
  %1106 = vmatpush.bf16.msra.mxu0 %v521
  %1107 = vmatmul.bf16.gmra.mxu0 %v900
  %v1108 = vpop.f32.mrf.mxu0
  %v1109 = vadd.f32 %v1081, %v1108
  %v1110 = vpop.f32.mrf.mxu0
  %v1111 = vadd.f32 %v1083, %v1110
  %1112 = vmatmul.bf16.gmra.mxu0 %v907
  %v1113 = vpop.f32.mrf.mxu0
  %v1114 = vadd.f32 %v1086, %v1113
  %v1115 = vpop.f32.mrf.mxu0
  %v1116 = vadd.f32 %v1088, %v1115
  %1117 = vmatmul.bf16.gmra.mxu0 %v914
  %v1118 = vpop.f32.mrf.mxu0
  %v1119 = vadd.f32 %v1091, %v1118
  %v1120 = vpop.f32.mrf.mxu0
  %v1121 = vadd.f32 %v1093, %v1120
  %1122 = vmatmul.bf16.gmra.mxu0 %v921
  %v1123 = vpop.f32.mrf.mxu0
  %v1124 = vadd.f32 %v1096, %v1123
  %v1125 = vpop.f32.mrf.mxu0
  %1126 = vdwg.mxu0
  %1127 = vmatpush.bf16.msra.mxu0 0
  %1128 = vmatpush.bf16.msra.mxu0 0
  %1129 = vmatpush.bf16.msra.mxu0 0
  %1130 = vmatpush.bf16.msra.mxu0 0
  %1131 = vmatpush.bf16.msra.mxu0 0
  %1132 = vmatpush.bf16.msra.mxu0 0
  %1133 = vmatpush.bf16.msra.mxu0 %v530
  %1134 = vmatpush.bf16.msra.mxu0 %v529
  %1135 = vmatmul.bf16.gmra.mxu0 %v948
  %v1136 = vpop.f32.mrf.mxu0
  %v1137 = vadd.f32 %v1109, %v1136
  %v1138 = vpop.f32.mrf.mxu0
  %v1139 = vadd.f32 %v1111, %v1138
  %1140 = vmatmul.bf16.gmra.mxu0 %v951
  %v1141 = vpop.f32.mrf.mxu0
  %v1142 = vadd.f32 %v1114, %v1141
  %v1143 = vpop.f32.mrf.mxu0
  %v1144 = vadd.f32 %v1116, %v1143
  %1145 = vmatmul.bf16.gmra.mxu0 %v954
  %v1146 = vpop.f32.mrf.mxu0
  %v1147 = vadd.f32 %v1119, %v1146
  %v1148 = vpop.f32.mrf.mxu0
  %v1149 = vadd.f32 %v1121, %v1148
  %1150 = vmatmul.bf16.gmra.mxu0 %v957
  %v1151 = vpop.f32.mrf.mxu0
  %v1152 = vadd.f32 %v1124, %v1151
  %v1153 = vpop.f32.mrf.mxu0
  %1154 = vdwg.mxu0
  %v1155 = vld [vmem:[%s2] sm:$0xff]
  %v1156 = vld [vmem:[%s2 + $0x8] sm:$0xff]
  %v1157 = vld [vmem:[%s2 + $0x10] sm:$0xff]
  %v1158 = vld [vmem:[%s2 + $0x18] sm:$0xf]
  %v1159 = vld [vmem:[%s2 + $0x1c] sm:$0xff]
  %v1160 = vld [vmem:[%s2 + $0x24] sm:$0xff]
  %v1161 = vld [vmem:[%s2 + $0x2c] sm:$0xff]
  %v1162 = vld [vmem:[%s2 + $0x34] sm:$0xf]
  %v1163 = vld [vmem:[%s2 + $0x38] sm:$0xff]
  %v1164 = vld [vmem:[%s2 + $0x40] sm:$0xff]
  %v1165 = vld [vmem:[%s2 + $0x48] sm:$0xff]
  %v1166 = vld [vmem:[%s2 + $0x50] sm:$0xf]
  %v1167 = vld [vmem:[%s2 + $0x54] sm:$0xff]
  %v1168 = vld [vmem:[%s2 + $0x5c] sm:$0xff]
  %v1169 = vld [vmem:[%s2 + $0x64] sm:$0xff]
  %v1170 = vld [vmem:[%s2 + $0x6c] sm:$0xf]
  %v1171 = vld [vmem:[%s2 + $0x70] sm:$0xff]
  %v1172 = vld [vmem:[%s2 + $0x78] sm:$0xff]
  %v1173 = vld [vmem:[%s2 + $0x80] sm:$0xff]
  %v1174 = vld [vmem:[%s2 + $0x88] sm:$0xf]
  %v1175 = vld [vmem:[%s2 + $0x8c] sm:$0xff]
  %v1176 = vld [vmem:[%s2 + $0x94] sm:$0xff]
  %v1177 = vld [vmem:[%s2 + $0x9c] sm:$0xff]
  %v1178 = vld [vmem:[%s2 + $0xa4] sm:$0xf]
  %v1179 = vld [vmem:[%s2 + $0xa8] sm:$0xff]
  %v1180 = vld [vmem:[%s2 + $0xb0] sm:$0xff]
  %v1181 = vld [vmem:[%s2 + $0xb8] sm:$0xff]
  %v1182 = vld [vmem:[%s2 + $0xc0] sm:$0xf]
  %v1211 = vunpack.c.l.b16 %v1155
  %v1212 = vunpack.c.h.b16 %v1155
  %v1213 = vunpack.c.l.b16 %v1156
  %v1214 = vunpack.c.h.b16 %v1156
  %v1215 = vunpack.c.l.b16 %v1157
  %v1216 = vunpack.c.h.b16 %v1157
  %v1217 = vunpack.c.l.b16 %v1158
  %v1218 = vunpack.c.l.b16 %v1159
  %v1219 = vunpack.c.h.b16 %v1159
  %v1220 = vunpack.c.l.b16 %v1160
  %v1221 = vunpack.c.h.b16 %v1160
  %v1222 = vunpack.c.l.b16 %v1161
  %v1223 = vunpack.c.h.b16 %v1161
  %v1224 = vunpack.c.l.b16 %v1162
  %v1225 = vunpack.c.l.b16 %v1163
  %v1226 = vunpack.c.h.b16 %v1163
  %v1227 = vunpack.c.l.b16 %v1164
  %v1228 = vunpack.c.h.b16 %v1164
  %v1229 = vunpack.c.l.b16 %v1165
  %v1230 = vunpack.c.h.b16 %v1165
  %v1231 = vunpack.c.l.b16 %v1166
  %v1232 = vunpack.c.l.b16 %v1167
  %v1233 = vunpack.c.h.b16 %v1167
  %v1234 = vunpack.c.l.b16 %v1168
  %v1235 = vunpack.c.h.b16 %v1168
  %v1236 = vunpack.c.l.b16 %v1169
  %v1237 = vunpack.c.h.b16 %v1169
  %v1238 = vunpack.c.l.b16 %v1170
  %v1239 = vunpack.c.l.b16 %v1171
  %v1240 = vunpack.c.h.b16 %v1171
  %v1241 = vunpack.c.l.b16 %v1172
  %v1242 = vunpack.c.h.b16 %v1172
  %v1243 = vunpack.c.l.b16 %v1173
  %v1244 = vunpack.c.h.b16 %v1173
  %v1245 = vunpack.c.l.b16 %v1174
  %v1246 = vunpack.c.l.b16 %v1175
  %v1247 = vunpack.c.h.b16 %v1175
  %v1248 = vunpack.c.l.b16 %v1176
  %v1249 = vunpack.c.h.b16 %v1176
  %v1250 = vunpack.c.l.b16 %v1177
  %v1251 = vunpack.c.h.b16 %v1177
  %v1252 = vunpack.c.l.b16 %v1178
  %v1253 = vunpack.c.l.b16 %v1179
  %v1254 = vunpack.c.h.b16 %v1179
  %v1255 = vunpack.c.l.b16 %v1180
  %v1256 = vunpack.c.h.b16 %v1180
  %v1257 = vunpack.c.l.b16 %v1181
  %v1258 = vunpack.c.h.b16 %v1181
  %v1259 = vunpack.c.l.b16 %v1182
  %v1260 = vpack.c.b16 %v1218, %v1211
  %v1261 = vpack.c.b16 %v1219, %v1212
  %v1262 = vpack.c.b16 %v1220, %v1213
  %v1263 = vpack.c.b16 %v1221, %v1214
  %v1264 = vpack.c.b16 %v1222, %v1215
  %v1265 = vpack.c.b16 %v1223, %v1216
  %v1266 = vpack.c.b16 %v1224, %v1217
  %v1267 = vpack.c.b16 %v1232, %v1225
  %v1268 = vpack.c.b16 %v1233, %v1226
  %v1269 = vpack.c.b16 %v1234, %v1227
  %v1270 = vpack.c.b16 %v1235, %v1228
  %v1271 = vpack.c.b16 %v1236, %v1229
  %v1272 = vpack.c.b16 %v1237, %v1230
  %v1273 = vpack.c.b16 %v1238, %v1231
  %v1274 = vpack.c.b16 %v1246, %v1239
  %v1275 = vpack.c.b16 %v1247, %v1240
  %v1276 = vpack.c.b16 %v1248, %v1241
  %v1277 = vpack.c.b16 %v1249, %v1242
  %v1278 = vpack.c.b16 %v1250, %v1243
  %v1279 = vpack.c.b16 %v1251, %v1244
  %v1280 = vpack.c.b16 %v1252, %v1245
  %v1281 = vpack.c.b16 %v1253, %v1253
  %v1282 = vpack.c.b16 %v1254, %v1254
  %v1283 = vpack.c.b16 %v1255, %v1255
  %v1284 = vpack.c.b16 %v1256, %v1256
  %v1285 = vpack.c.b16 %v1257, %v1257
  %v1286 = vpack.c.b16 %v1258, %v1258
  %v1287 = vpack.c.b16 %v1259, %v1259
  %v1313 = vsel %vm581, %v1266, 0
  %v1316 = vsel %vm581, %v1273, 0
  %v1319 = vsel %vm581, %v1280, 0
  %v1322 = vsel %vm581, %v1287, 0
  %1324 = vmatpush.bf16.msra.mxu0 %v488
  %1325 = vmatpush.bf16.msra.mxu0 %v487
  %1326 = vmatpush.bf16.msra.mxu0 %v486
  %1327 = vmatpush.bf16.msra.mxu0 %v485
  %1328 = vmatpush.bf16.msra.mxu0 %v484
  %1329 = vmatpush.bf16.msra.mxu0 %v483
  %1330 = vmatpush.bf16.msra.mxu0 %v482
  %1331 = vmatpush.bf16.msra.mxu0 %v481
  %1332 = vmatmul.bf16.gmra.mxu0 %v1260
  %v1333 = vpop.f32.mrf.mxu0
  %v1334 = vadd.f32 0.0, %v1333
  %v1335 = vpop.f32.mrf.mxu0
  %v1336 = vadd.f32 0.0, %v1335
  %1337 = vmatmul.bf16.gmra.mxu0 %v1267
  %v1338 = vpop.f32.mrf.mxu0
  %v1339 = vadd.f32 0.0, %v1338
  %v1340 = vpop.f32.mrf.mxu0
  %v1341 = vadd.f32 0.0, %v1340
  %1342 = vmatmul.bf16.gmra.mxu0 %v1274
  %v1343 = vpop.f32.mrf.mxu0
  %v1344 = vadd.f32 0.0, %v1343
  %v1345 = vpop.f32.mrf.mxu0
  %v1346 = vadd.f32 0.0, %v1345
  %1347 = vmatmul.bf16.gmra.mxu0 %v1281
  %v1348 = vpop.f32.mrf.mxu0
  %v1349 = vadd.f32 0.0, %v1348
  %v1350 = vpop.f32.mrf.mxu0
  %1351 = vdwg.mxu0
  %1352 = vmatpush.bf16.msra.mxu0 %v496
  %1353 = vmatpush.bf16.msra.mxu0 %v495
  %1354 = vmatpush.bf16.msra.mxu0 %v494
  %1355 = vmatpush.bf16.msra.mxu0 %v493
  %1356 = vmatpush.bf16.msra.mxu0 %v492
  %1357 = vmatpush.bf16.msra.mxu0 %v491
  %1358 = vmatpush.bf16.msra.mxu0 %v490
  %1359 = vmatpush.bf16.msra.mxu0 %v489
  %1360 = vmatmul.bf16.gmra.mxu0 %v1261
  %v1361 = vpop.f32.mrf.mxu0
  %v1362 = vadd.f32 %v1334, %v1361
  %v1363 = vpop.f32.mrf.mxu0
  %v1364 = vadd.f32 %v1336, %v1363
  %1365 = vmatmul.bf16.gmra.mxu0 %v1268
  %v1366 = vpop.f32.mrf.mxu0
  %v1367 = vadd.f32 %v1339, %v1366
  %v1368 = vpop.f32.mrf.mxu0
  %v1369 = vadd.f32 %v1341, %v1368
  %1370 = vmatmul.bf16.gmra.mxu0 %v1275
  %v1371 = vpop.f32.mrf.mxu0
  %v1372 = vadd.f32 %v1344, %v1371
  %v1373 = vpop.f32.mrf.mxu0
  %v1374 = vadd.f32 %v1346, %v1373
  %1375 = vmatmul.bf16.gmra.mxu0 %v1282
  %v1376 = vpop.f32.mrf.mxu0
  %v1377 = vadd.f32 %v1349, %v1376
  %v1378 = vpop.f32.mrf.mxu0
  %1379 = vdwg.mxu0
  %1380 = vmatpush.bf16.msra.mxu0 %v504
  %1381 = vmatpush.bf16.msra.mxu0 %v503
  %1382 = vmatpush.bf16.msra.mxu0 %v502
  %1383 = vmatpush.bf16.msra.mxu0 %v501
  %1384 = vmatpush.bf16.msra.mxu0 %v500
  %1385 = vmatpush.bf16.msra.mxu0 %v499
  %1386 = vmatpush.bf16.msra.mxu0 %v498
  %1387 = vmatpush.bf16.msra.mxu0 %v497
  %1388 = vmatmul.bf16.gmra.mxu0 %v1262
  %v1389 = vpop.f32.mrf.mxu0
  %v1390 = vadd.f32 %v1362, %v1389
  %v1391 = vpop.f32.mrf.mxu0
  %v1392 = vadd.f32 %v1364, %v1391
  %1393 = vmatmul.bf16.gmra.mxu0 %v1269
  %v1394 = vpop.f32.mrf.mxu0
  %v1395 = vadd.f32 %v1367, %v1394
  %v1396 = vpop.f32.mrf.mxu0
  %v1397 = vadd.f32 %v1369, %v1396
  %1398 = vmatmul.bf16.gmra.mxu0 %v1276
  %v1399 = vpop.f32.mrf.mxu0
  %v1400 = vadd.f32 %v1372, %v1399
  %v1401 = vpop.f32.mrf.mxu0
  %v1402 = vadd.f32 %v1374, %v1401
  %1403 = vmatmul.bf16.gmra.mxu0 %v1283
  %v1404 = vpop.f32.mrf.mxu0
  %v1405 = vadd.f32 %v1377, %v1404
  %v1406 = vpop.f32.mrf.mxu0
  %1407 = vdwg.mxu0
  %1408 = vmatpush.bf16.msra.mxu0 %v512
  %1409 = vmatpush.bf16.msra.mxu0 %v511
  %1410 = vmatpush.bf16.msra.mxu0 %v510
  %1411 = vmatpush.bf16.msra.mxu0 %v509
  %1412 = vmatpush.bf16.msra.mxu0 %v508
  %1413 = vmatpush.bf16.msra.mxu0 %v507
  %1414 = vmatpush.bf16.msra.mxu0 %v506
  %1415 = vmatpush.bf16.msra.mxu0 %v505
  %1416 = vmatmul.bf16.gmra.mxu0 %v1263
  %v1417 = vpop.f32.mrf.mxu0
  %v1418 = vadd.f32 %v1390, %v1417
  %v1419 = vpop.f32.mrf.mxu0
  %v1420 = vadd.f32 %v1392, %v1419
  %1421 = vmatmul.bf16.gmra.mxu0 %v1270
  %v1422 = vpop.f32.mrf.mxu0
  %v1423 = vadd.f32 %v1395, %v1422
  %v1424 = vpop.f32.mrf.mxu0
  %v1425 = vadd.f32 %v1397, %v1424
  %1426 = vmatmul.bf16.gmra.mxu0 %v1277
  %v1427 = vpop.f32.mrf.mxu0
  %v1428 = vadd.f32 %v1400, %v1427
  %v1429 = vpop.f32.mrf.mxu0
  %v1430 = vadd.f32 %v1402, %v1429
  %1431 = vmatmul.bf16.gmra.mxu0 %v1284
  %v1432 = vpop.f32.mrf.mxu0
  %v1433 = vadd.f32 %v1405, %v1432
  %v1434 = vpop.f32.mrf.mxu0
  %1435 = vdwg.mxu0
  %1436 = vmatpush.bf16.msra.mxu0 %v520
  %1437 = vmatpush.bf16.msra.mxu0 %v519
  %1438 = vmatpush.bf16.msra.mxu0 %v518
  %1439 = vmatpush.bf16.msra.mxu0 %v517
  %1440 = vmatpush.bf16.msra.mxu0 %v516
  %1441 = vmatpush.bf16.msra.mxu0 %v515
  %1442 = vmatpush.bf16.msra.mxu0 %v514
  %1443 = vmatpush.bf16.msra.mxu0 %v513
  %1444 = vmatmul.bf16.gmra.mxu0 %v1264
  %v1445 = vpop.f32.mrf.mxu0
  %v1446 = vadd.f32 %v1418, %v1445
  %v1447 = vpop.f32.mrf.mxu0
  %v1448 = vadd.f32 %v1420, %v1447
  %1449 = vmatmul.bf16.gmra.mxu0 %v1271
  %v1450 = vpop.f32.mrf.mxu0
  %v1451 = vadd.f32 %v1423, %v1450
  %v1452 = vpop.f32.mrf.mxu0
  %v1453 = vadd.f32 %v1425, %v1452
  %1454 = vmatmul.bf16.gmra.mxu0 %v1278
  %v1455 = vpop.f32.mrf.mxu0
  %v1456 = vadd.f32 %v1428, %v1455
  %v1457 = vpop.f32.mrf.mxu0
  %v1458 = vadd.f32 %v1430, %v1457
  %1459 = vmatmul.bf16.gmra.mxu0 %v1285
  %v1460 = vpop.f32.mrf.mxu0
  %v1461 = vadd.f32 %v1433, %v1460
  %v1462 = vpop.f32.mrf.mxu0
  %1463 = vdwg.mxu0
  %1464 = vmatpush.bf16.msra.mxu0 %v528
  %1465 = vmatpush.bf16.msra.mxu0 %v527
  %1466 = vmatpush.bf16.msra.mxu0 %v526
  %1467 = vmatpush.bf16.msra.mxu0 %v525
  %1468 = vmatpush.bf16.msra.mxu0 %v524
  %1469 = vmatpush.bf16.msra.mxu0 %v523
  %1470 = vmatpush.bf16.msra.mxu0 %v522
  %1471 = vmatpush.bf16.msra.mxu0 %v521
  %1472 = vmatmul.bf16.gmra.mxu0 %v1265
  %v1473 = vpop.f32.mrf.mxu0
  %v1474 = vadd.f32 %v1446, %v1473
  %v1475 = vpop.f32.mrf.mxu0
  %v1476 = vadd.f32 %v1448, %v1475
  %1477 = vmatmul.bf16.gmra.mxu0 %v1272
  %v1478 = vpop.f32.mrf.mxu0
  %v1479 = vadd.f32 %v1451, %v1478
  %v1480 = vpop.f32.mrf.mxu0
  %v1481 = vadd.f32 %v1453, %v1480
  %1482 = vmatmul.bf16.gmra.mxu0 %v1279
  %v1483 = vpop.f32.mrf.mxu0
  %v1484 = vadd.f32 %v1456, %v1483
  %v1485 = vpop.f32.mrf.mxu0
  %v1486 = vadd.f32 %v1458, %v1485
  %1487 = vmatmul.bf16.gmra.mxu0 %v1286
  %v1488 = vpop.f32.mrf.mxu0
  %v1489 = vadd.f32 %v1461, %v1488
  %v1490 = vpop.f32.mrf.mxu0
  %1491 = vdwg.mxu0
  %1492 = vmatpush.bf16.msra.mxu0 0
  %1493 = vmatpush.bf16.msra.mxu0 0
  %1494 = vmatpush.bf16.msra.mxu0 0
  %1495 = vmatpush.bf16.msra.mxu0 0
  %1496 = vmatpush.bf16.msra.mxu0 0
  %1497 = vmatpush.bf16.msra.mxu0 0
  %1498 = vmatpush.bf16.msra.mxu0 %v530
  %1499 = vmatpush.bf16.msra.mxu0 %v529
  %1500 = vmatmul.bf16.gmra.mxu0 %v1313
  %v1501 = vpop.f32.mrf.mxu0
  %v1502 = vadd.f32 %v1474, %v1501
  %v1503 = vpop.f32.mrf.mxu0
  %v1504 = vadd.f32 %v1476, %v1503
  %1505 = vmatmul.bf16.gmra.mxu0 %v1316
  %v1506 = vpop.f32.mrf.mxu0
  %v1507 = vadd.f32 %v1479, %v1506
  %v1508 = vpop.f32.mrf.mxu0
  %v1509 = vadd.f32 %v1481, %v1508
  %1510 = vmatmul.bf16.gmra.mxu0 %v1319
  %v1511 = vpop.f32.mrf.mxu0
  %v1512 = vadd.f32 %v1484, %v1511
  %v1513 = vpop.f32.mrf.mxu0
  %v1514 = vadd.f32 %v1486, %v1513
  %1515 = vmatmul.bf16.gmra.mxu0 %v1322
  %v1516 = vpop.f32.mrf.mxu0
  %v1517 = vadd.f32 %v1489, %v1516
  %v1518 = vpop.f32.mrf.mxu0
  %1519 = vdwg.mxu0
  %v1520 = vld [vmem:[%s3] sm:$0xff]
  %v1521 = vld [vmem:[%s3 + $0x8] sm:$0xff]
  %v1522 = vld [vmem:[%s3 + $0x10] sm:$0xff]
  %v1523 = vld [vmem:[%s3 + $0x18] sm:$0xf]
  %v1524 = vld [vmem:[%s3 + $0x1c] sm:$0xff]
  %v1525 = vld [vmem:[%s3 + $0x24] sm:$0xff]
  %v1526 = vld [vmem:[%s3 + $0x2c] sm:$0xff]
  %v1527 = vld [vmem:[%s3 + $0x34] sm:$0xf]
  %v1528 = vld [vmem:[%s3 + $0x38] sm:$0xff]
  %v1529 = vld [vmem:[%s3 + $0x40] sm:$0xff]
  %v1530 = vld [vmem:[%s3 + $0x48] sm:$0xff]
  %v1531 = vld [vmem:[%s3 + $0x50] sm:$0xf]
  %v1532 = vld [vmem:[%s3 + $0x54] sm:$0xff]
  %v1533 = vld [vmem:[%s3 + $0x5c] sm:$0xff]
  %v1534 = vld [vmem:[%s3 + $0x64] sm:$0xff]
  %v1535 = vld [vmem:[%s3 + $0x6c] sm:$0xf]
  %v1536 = vld [vmem:[%s3 + $0x70] sm:$0xff]
  %v1537 = vld [vmem:[%s3 + $0x78] sm:$0xff]
  %v1538 = vld [vmem:[%s3 + $0x80] sm:$0xff]
  %v1539 = vld [vmem:[%s3 + $0x88] sm:$0xf]
  %v1540 = vld [vmem:[%s3 + $0x8c] sm:$0xff]
  %v1541 = vld [vmem:[%s3 + $0x94] sm:$0xff]
  %v1542 = vld [vmem:[%s3 + $0x9c] sm:$0xff]
  %v1543 = vld [vmem:[%s3 + $0xa4] sm:$0xf]
  %v1544 = vld [vmem:[%s3 + $0xa8] sm:$0xff]
  %v1545 = vld [vmem:[%s3 + $0xb0] sm:$0xff]
  %v1546 = vld [vmem:[%s3 + $0xb8] sm:$0xff]
  %v1547 = vld [vmem:[%s3 + $0xc0] sm:$0xf]
  %v1576 = vunpack.c.l.b16 %v1520
  %v1577 = vunpack.c.h.b16 %v1520
  %v1578 = vunpack.c.l.b16 %v1521
  %v1579 = vunpack.c.h.b16 %v1521
  %v1580 = vunpack.c.l.b16 %v1522
  %v1581 = vunpack.c.h.b16 %v1522
  %v1582 = vunpack.c.l.b16 %v1523
  %v1583 = vunpack.c.l.b16 %v1524
  %v1584 = vunpack.c.h.b16 %v1524
  %v1585 = vunpack.c.l.b16 %v1525
  %v1586 = vunpack.c.h.b16 %v1525
  %v1587 = vunpack.c.l.b16 %v1526
  %v1588 = vunpack.c.h.b16 %v1526
  %v1589 = vunpack.c.l.b16 %v1527
  %v1590 = vunpack.c.l.b16 %v1528
  %v1591 = vunpack.c.h.b16 %v1528
  %v1592 = vunpack.c.l.b16 %v1529
  %v1593 = vunpack.c.h.b16 %v1529
  %v1594 = vunpack.c.l.b16 %v1530
  %v1595 = vunpack.c.h.b16 %v1530
  %v1596 = vunpack.c.l.b16 %v1531
  %v1597 = vunpack.c.l.b16 %v1532
  %v1598 = vunpack.c.h.b16 %v1532
  %v1599 = vunpack.c.l.b16 %v1533
  %v1600 = vunpack.c.h.b16 %v1533
  %v1601 = vunpack.c.l.b16 %v1534
  %v1602 = vunpack.c.h.b16 %v1534
  %v1603 = vunpack.c.l.b16 %v1535
  %v1604 = vunpack.c.l.b16 %v1536
  %v1605 = vunpack.c.h.b16 %v1536
  %v1606 = vunpack.c.l.b16 %v1537
  %v1607 = vunpack.c.h.b16 %v1537
  %v1608 = vunpack.c.l.b16 %v1538
  %v1609 = vunpack.c.h.b16 %v1538
  %v1610 = vunpack.c.l.b16 %v1539
  %v1611 = vunpack.c.l.b16 %v1540
  %v1612 = vunpack.c.h.b16 %v1540
  %v1613 = vunpack.c.l.b16 %v1541
  %v1614 = vunpack.c.h.b16 %v1541
  %v1615 = vunpack.c.l.b16 %v1542
  %v1616 = vunpack.c.h.b16 %v1542
  %v1617 = vunpack.c.l.b16 %v1543
  %v1618 = vunpack.c.l.b16 %v1544
  %v1619 = vunpack.c.h.b16 %v1544
  %v1620 = vunpack.c.l.b16 %v1545
  %v1621 = vunpack.c.h.b16 %v1545
  %v1622 = vunpack.c.l.b16 %v1546
  %v1623 = vunpack.c.h.b16 %v1546
  %v1624 = vunpack.c.l.b16 %v1547
  %v1625 = vpack.c.b16 %v1583, %v1576
  %v1626 = vpack.c.b16 %v1584, %v1577
  %v1627 = vpack.c.b16 %v1585, %v1578
  %v1628 = vpack.c.b16 %v1586, %v1579
  %v1629 = vpack.c.b16 %v1587, %v1580
  %v1630 = vpack.c.b16 %v1588, %v1581
  %v1631 = vpack.c.b16 %v1589, %v1582
  %v1632 = vpack.c.b16 %v1597, %v1590
  %v1633 = vpack.c.b16 %v1598, %v1591
  %v1634 = vpack.c.b16 %v1599, %v1592
  %v1635 = vpack.c.b16 %v1600, %v1593
  %v1636 = vpack.c.b16 %v1601, %v1594
  %v1637 = vpack.c.b16 %v1602, %v1595
  %v1638 = vpack.c.b16 %v1603, %v1596
  %v1639 = vpack.c.b16 %v1611, %v1604
  %v1640 = vpack.c.b16 %v1612, %v1605
  %v1641 = vpack.c.b16 %v1613, %v1606
  %v1642 = vpack.c.b16 %v1614, %v1607
  %v1643 = vpack.c.b16 %v1615, %v1608
  %v1644 = vpack.c.b16 %v1616, %v1609
  %v1645 = vpack.c.b16 %v1617, %v1610
  %v1646 = vpack.c.b16 %v1618, %v1618
  %v1647 = vpack.c.b16 %v1619, %v1619
  %v1648 = vpack.c.b16 %v1620, %v1620
  %v1649 = vpack.c.b16 %v1621, %v1621
  %v1650 = vpack.c.b16 %v1622, %v1622
  %v1651 = vpack.c.b16 %v1623, %v1623
  %v1652 = vpack.c.b16 %v1624, %v1624
  %v1678 = vsel %vm581, %v1631, 0
  %v1681 = vsel %vm581, %v1638, 0
  %v1684 = vsel %vm581, %v1645, 0
  %v1687 = vsel %vm581, %v1652, 0
  %1689 = vmatpush.bf16.msra.mxu0 %v488
  %1690 = vmatpush.bf16.msra.mxu0 %v487
  %1691 = vmatpush.bf16.msra.mxu0 %v486
  %1692 = vmatpush.bf16.msra.mxu0 %v485
  %1693 = vmatpush.bf16.msra.mxu0 %v484
  %1694 = vmatpush.bf16.msra.mxu0 %v483
  %1695 = vmatpush.bf16.msra.mxu0 %v482
  %1696 = vmatpush.bf16.msra.mxu0 %v481
  %1697 = vmatmul.bf16.gmra.mxu0 %v1625
  %v1698 = vpop.f32.mrf.mxu0
  %v1699 = vadd.f32 0.0, %v1698
  %v1700 = vpop.f32.mrf.mxu0
  %v1701 = vadd.f32 0.0, %v1700
  %1702 = vmatmul.bf16.gmra.mxu0 %v1632
  %v1703 = vpop.f32.mrf.mxu0
  %v1704 = vadd.f32 0.0, %v1703
  %v1705 = vpop.f32.mrf.mxu0
  %v1706 = vadd.f32 0.0, %v1705
  %1707 = vmatmul.bf16.gmra.mxu0 %v1639
  %v1708 = vpop.f32.mrf.mxu0
  %v1709 = vadd.f32 0.0, %v1708
  %v1710 = vpop.f32.mrf.mxu0
  %v1711 = vadd.f32 0.0, %v1710
  %1712 = vmatmul.bf16.gmra.mxu0 %v1646
  %v1713 = vpop.f32.mrf.mxu0
  %v1714 = vadd.f32 0.0, %v1713
  %v1715 = vpop.f32.mrf.mxu0
  %1716 = vdwg.mxu0
  %1717 = vmatpush.bf16.msra.mxu0 %v496
  %1718 = vmatpush.bf16.msra.mxu0 %v495
  %1719 = vmatpush.bf16.msra.mxu0 %v494
  %1720 = vmatpush.bf16.msra.mxu0 %v493
  %1721 = vmatpush.bf16.msra.mxu0 %v492
  %1722 = vmatpush.bf16.msra.mxu0 %v491
  %1723 = vmatpush.bf16.msra.mxu0 %v490
  %1724 = vmatpush.bf16.msra.mxu0 %v489
  %1725 = vmatmul.bf16.gmra.mxu0 %v1626
  %v1726 = vpop.f32.mrf.mxu0
  %v1727 = vadd.f32 %v1699, %v1726
  %v1728 = vpop.f32.mrf.mxu0
  %v1729 = vadd.f32 %v1701, %v1728
  %1730 = vmatmul.bf16.gmra.mxu0 %v1633
  %v1731 = vpop.f32.mrf.mxu0
  %v1732 = vadd.f32 %v1704, %v1731
  %v1733 = vpop.f32.mrf.mxu0
  %v1734 = vadd.f32 %v1706, %v1733
  %1735 = vmatmul.bf16.gmra.mxu0 %v1640
  %v1736 = vpop.f32.mrf.mxu0
  %v1737 = vadd.f32 %v1709, %v1736
  %v1738 = vpop.f32.mrf.mxu0
  %v1739 = vadd.f32 %v1711, %v1738
  %1740 = vmatmul.bf16.gmra.mxu0 %v1647
  %v1741 = vpop.f32.mrf.mxu0
  %v1742 = vadd.f32 %v1714, %v1741
  %v1743 = vpop.f32.mrf.mxu0
  %1744 = vdwg.mxu0
  %1745 = vmatpush.bf16.msra.mxu0 %v504
  %1746 = vmatpush.bf16.msra.mxu0 %v503
  %1747 = vmatpush.bf16.msra.mxu0 %v502
  %1748 = vmatpush.bf16.msra.mxu0 %v501
  %1749 = vmatpush.bf16.msra.mxu0 %v500
  %1750 = vmatpush.bf16.msra.mxu0 %v499
  %1751 = vmatpush.bf16.msra.mxu0 %v498
  %1752 = vmatpush.bf16.msra.mxu0 %v497
  %1753 = vmatmul.bf16.gmra.mxu0 %v1627
  %v1754 = vpop.f32.mrf.mxu0
  %v1755 = vadd.f32 %v1727, %v1754
  %v1756 = vpop.f32.mrf.mxu0
  %v1757 = vadd.f32 %v1729, %v1756
  %1758 = vmatmul.bf16.gmra.mxu0 %v1634
  %v1759 = vpop.f32.mrf.mxu0
  %v1760 = vadd.f32 %v1732, %v1759
  %v1761 = vpop.f32.mrf.mxu0
  %v1762 = vadd.f32 %v1734, %v1761
  %1763 = vmatmul.bf16.gmra.mxu0 %v1641
  %v1764 = vpop.f32.mrf.mxu0
  %v1765 = vadd.f32 %v1737, %v1764
  %v1766 = vpop.f32.mrf.mxu0
  %v1767 = vadd.f32 %v1739, %v1766
  %1768 = vmatmul.bf16.gmra.mxu0 %v1648
  %v1769 = vpop.f32.mrf.mxu0
  %v1770 = vadd.f32 %v1742, %v1769
  %v1771 = vpop.f32.mrf.mxu0
  %1772 = vdwg.mxu0
  %1773 = vmatpush.bf16.msra.mxu0 %v512
  %1774 = vmatpush.bf16.msra.mxu0 %v511
  %1775 = vmatpush.bf16.msra.mxu0 %v510
  %1776 = vmatpush.bf16.msra.mxu0 %v509
  %1777 = vmatpush.bf16.msra.mxu0 %v508
  %1778 = vmatpush.bf16.msra.mxu0 %v507
  %1779 = vmatpush.bf16.msra.mxu0 %v506
  %1780 = vmatpush.bf16.msra.mxu0 %v505
  %1781 = vmatmul.bf16.gmra.mxu0 %v1628
  %v1782 = vpop.f32.mrf.mxu0
  %v1783 = vadd.f32 %v1755, %v1782
  %v1784 = vpop.f32.mrf.mxu0
  %v1785 = vadd.f32 %v1757, %v1784
  %1786 = vmatmul.bf16.gmra.mxu0 %v1635
  %v1787 = vpop.f32.mrf.mxu0
  %v1788 = vadd.f32 %v1760, %v1787
  %v1789 = vpop.f32.mrf.mxu0
  %v1790 = vadd.f32 %v1762, %v1789
  %1791 = vmatmul.bf16.gmra.mxu0 %v1642
  %v1792 = vpop.f32.mrf.mxu0
  %v1793 = vadd.f32 %v1765, %v1792
  %v1794 = vpop.f32.mrf.mxu0
  %v1795 = vadd.f32 %v1767, %v1794
  %1796 = vmatmul.bf16.gmra.mxu0 %v1649
  %v1797 = vpop.f32.mrf.mxu0
  %v1798 = vadd.f32 %v1770, %v1797
  %v1799 = vpop.f32.mrf.mxu0
  %1800 = vdwg.mxu0
  %1801 = vmatpush.bf16.msra.mxu0 %v520
  %1802 = vmatpush.bf16.msra.mxu0 %v519
  %1803 = vmatpush.bf16.msra.mxu0 %v518
  %1804 = vmatpush.bf16.msra.mxu0 %v517
  %1805 = vmatpush.bf16.msra.mxu0 %v516
  %1806 = vmatpush.bf16.msra.mxu0 %v515
  %1807 = vmatpush.bf16.msra.mxu0 %v514
  %1808 = vmatpush.bf16.msra.mxu0 %v513
  %1809 = vmatmul.bf16.gmra.mxu0 %v1629
  %v1810 = vpop.f32.mrf.mxu0
  %v1811 = vadd.f32 %v1783, %v1810
  %v1812 = vpop.f32.mrf.mxu0
  %v1813 = vadd.f32 %v1785, %v1812
  %1814 = vmatmul.bf16.gmra.mxu0 %v1636
  %v1815 = vpop.f32.mrf.mxu0
  %v1816 = vadd.f32 %v1788, %v1815
  %v1817 = vpop.f32.mrf.mxu0
  %v1818 = vadd.f32 %v1790, %v1817
  %1819 = vmatmul.bf16.gmra.mxu0 %v1643
  %v1820 = vpop.f32.mrf.mxu0
  %v1821 = vadd.f32 %v1793, %v1820
  %v1822 = vpop.f32.mrf.mxu0
  %v1823 = vadd.f32 %v1795, %v1822
  %1824 = vmatmul.bf16.gmra.mxu0 %v1650
  %v1825 = vpop.f32.mrf.mxu0
  %v1826 = vadd.f32 %v1798, %v1825
  %v1827 = vpop.f32.mrf.mxu0
  %1828 = vdwg.mxu0
  %1829 = vmatpush.bf16.msra.mxu0 %v528
  %1830 = vmatpush.bf16.msra.mxu0 %v527
  %1831 = vmatpush.bf16.msra.mxu0 %v526
  %1832 = vmatpush.bf16.msra.mxu0 %v525
  %1833 = vmatpush.bf16.msra.mxu0 %v524
  %1834 = vmatpush.bf16.msra.mxu0 %v523
  %1835 = vmatpush.bf16.msra.mxu0 %v522
  %1836 = vmatpush.bf16.msra.mxu0 %v521
  %1837 = vmatmul.bf16.gmra.mxu0 %v1630
  %v1838 = vpop.f32.mrf.mxu0
  %v1839 = vadd.f32 %v1811, %v1838
  %v1840 = vpop.f32.mrf.mxu0
  %v1841 = vadd.f32 %v1813, %v1840
  %1842 = vmatmul.bf16.gmra.mxu0 %v1637
  %v1843 = vpop.f32.mrf.mxu0
  %v1844 = vadd.f32 %v1816, %v1843
  %v1845 = vpop.f32.mrf.mxu0
  %v1846 = vadd.f32 %v1818, %v1845
  %1847 = vmatmul.bf16.gmra.mxu0 %v1644
  %v1848 = vpop.f32.mrf.mxu0
  %v1849 = vadd.f32 %v1821, %v1848
  %v1850 = vpop.f32.mrf.mxu0
  %v1851 = vadd.f32 %v1823, %v1850
  %1852 = vmatmul.bf16.gmra.mxu0 %v1651
  %v1853 = vpop.f32.mrf.mxu0
  %v1854 = vadd.f32 %v1826, %v1853
  %v1855 = vpop.f32.mrf.mxu0
  %1856 = vdwg.mxu0
  %1857 = vmatpush.bf16.msra.mxu0 0
  %1858 = vmatpush.bf16.msra.mxu0 0
  %1859 = vmatpush.bf16.msra.mxu0 0
  %1860 = vmatpush.bf16.msra.mxu0 0
  %1861 = vmatpush.bf16.msra.mxu0 0
  %1862 = vmatpush.bf16.msra.mxu0 0
  %1863 = vmatpush.bf16.msra.mxu0 %v530
  %1864 = vmatpush.bf16.msra.mxu0 %v529
  %1865 = vmatmul.bf16.gmra.mxu0 %v1678
  %v1866 = vpop.f32.mrf.mxu0
  %v1867 = vadd.f32 %v1839, %v1866
  %v1868 = vpop.f32.mrf.mxu0
  %v1869 = vadd.f32 %v1841, %v1868
  %1870 = vmatmul.bf16.gmra.mxu0 %v1681
  %v1871 = vpop.f32.mrf.mxu0
  %v1872 = vadd.f32 %v1844, %v1871
  %v1873 = vpop.f32.mrf.mxu0
  %v1874 = vadd.f32 %v1846, %v1873
  %1875 = vmatmul.bf16.gmra.mxu0 %v1684
  %v1876 = vpop.f32.mrf.mxu0
  %v1877 = vadd.f32 %v1849, %v1876
  %v1878 = vpop.f32.mrf.mxu0
  %v1879 = vadd.f32 %v1851, %v1878
  %1880 = vmatmul.bf16.gmra.mxu0 %v1687
  %v1881 = vpop.f32.mrf.mxu0
  %v1882 = vadd.f32 %v1854, %v1881
  %v1883 = vpop.f32.mrf.mxu0
  %1884 = vdwg.mxu0
  %v1885 = vmax.f32 %v772, %v1137
  %v1886 = vmax.f32 %v774, %v1139
  %v1887 = vmax.f32 %v777, %v1142
  %v1888 = vmax.f32 %v779, %v1144
  %v1889 = vmax.f32 %v782, %v1147
  %v1890 = vmax.f32 %v784, %v1149
  %v1891 = vmax.f32 %v787, %v1152
  %v1892 = vmax.f32 %v1502, %v1867
  %v1893 = vmax.f32 %v1504, %v1869
  %v1894 = vmax.f32 %v1507, %v1872
  %v1895 = vmax.f32 %v1509, %v1874
  %v1896 = vmax.f32 %v1512, %v1877
  %v1897 = vmax.f32 %v1514, %v1879
  %v1898 = vmax.f32 %v1517, %v1882
  %v1899 = vmax.f32 %v1885, %v1892
  %v1900 = vmax.f32 %v1886, %v1893
  %v1901 = vmax.f32 %v1887, %v1894
  %v1902 = vmax.f32 %v1888, %v1895
  %v1903 = vmax.f32 %v1889, %v1896
  %v1904 = vmax.f32 %v1890, %v1897
  %v1905 = vmax.f32 %v1891, %v1898
  %v1906 = vld [vmem:[%s5] sm:$0x1]
  %v1908 = vperm.slane %v1906, 0
  %v1910 = vadd.f32 %v1899, %v1908
  %v1911 = vadd.f32 %v1900, %v1908
  %v1912 = vadd.f32 %v1901, %v1908
  %v1913 = vadd.f32 %v1902, %v1908
  %v1914 = vadd.f32 %v1903, %v1908
  %v1915 = vadd.f32 %v1904, %v1908
  %v1916 = vadd.f32 %v1905, %v1908
  %v1917 = vmax.f32 %v1910, 0.0
  %v1918 = vmax.f32 %v1911, 0.0
  %v1919 = vmax.f32 %v1912, 0.0
  %v1920 = vmax.f32 %v1913, 0.0
  %v1921 = vmax.f32 %v1914, 0.0
  %v1922 = vmax.f32 %v1915, 0.0
  %v1923 = vmax.f32 %v1916, 0.0
  %v1924 = vpack.c.bf16 %v1917, %v1917
  %v1925 = vpack.c.bf16 %v1918, %v1918
  %v1926 = vpack.c.bf16 %v1919, %v1919
  %v1927 = vpack.c.bf16 %v1920, %v1920
  %v1928 = vpack.c.bf16 %v1921, %v1921
  %v1929 = vpack.c.bf16 %v1922, %v1922
  %v1930 = vpack.c.bf16 %v1923, %v1923
  %vm1931 = vcmask 519168
  %1932 = vst.msk [vmem:[%s6] sm:$0xf] %vm1931, %v1924
  %1933 = vst.msk [vmem:[%s6 + $0x4] sm:$0xf] %vm1931, %v1925
  %1934 = vst.msk [vmem:[%s6 + $0x8] sm:$0xf] %vm1931, %v1926
  %1935 = vst.msk [vmem:[%s6 + $0xc] sm:$0xf] %vm1931, %v1927
  %1936 = vst.msk [vmem:[%s6 + $0x10] sm:$0xf] %vm1931, %v1928
  %1937 = vst.msk [vmem:[%s6 + $0x14] sm:$0xf] %vm1931, %v1929
  %1938 = vst.msk [vmem:[%s6 + $0x18] sm:$0xf] %vm1931, %v1930
  // Predicated region
  $region26: #{net_forward.4} parent=0 // pred_check
    _
  $region27: #{net_forward.4} parent=0 // pred_check_branch
    %1940 = sbr.rel (0) target = $region29
  $region28: #{net_forward.4} parent=0 // pred_region
    _
  $region29: #{net_forward.4} parent=0 // pred_fallthru
    _
  // Predicated region
  $region30: #{net_forward.4} parent=0 // pred_check
    _
  $region31: #{net_forward.4} parent=0 // pred_check_branch
    %1942 = sbr.rel (0) target = $region33
  $region32: #{net_forward.4} parent=0 // pred_region
    _
  $region33: #{net_forward.4} parent=0 // pred_fallthru
    _

</llo_original>
